<compile_context>
chip_gen: v5e
topology: v5e:2x2
jax: 0.10.0
libtpu: 0.0.40
codegen_flags: <defaults>
</compile_context>

<pallas_src>
import functools

import jax
import jax.numpy as jnp
import numpy as np
from jax.experimental import pallas as pl
from jax.experimental.pallas import tpu as pltpu


# ----------------------------------------------------------------------------
# Fused AttING kernel: one grid step == one batch image, layout (C, H*W)
# ----------------------------------------------------------------------------
def _atting_kernel(x_ref, w1_ref, gamma_ref, beta_ref, w21_ref, w22_ref,
                   wg_ref, wp1_ref, bp1_ref, wp2_ref, bp2_ref,
                   w1x1_ref, b1x1_ref, mask_ref,
                   xout_ref, inst_ref,
                   col_ref, cat_ref, *, W):
    f32 = jnp.float32
    x = x_ref[0].astype(f32)                        # (Cin, L)
    L = x.shape[1]
    C = w1_ref.shape[0]

    def lrelu(v):
        # LeakyReLU(0.1): max(v, 0.1*v) is exact for both signs, single VALU op
        return jnp.maximum(v, 0.1 * v)

    def conv3x3(xins, w2d):
        """3x3 stride-1 pad-1 conv on channel-stacked (Ci, L) tiles.

        For each of the 9 taps, the (shifted, boundary-masked) inputs are
        written contiguously into the im2col column buffer; then one MXU
        matmul with K = 9 * sum(Ci) produces the (Cout, L) result.  Stacking
        several inputs here implements torch.cat along channels for free."""
        ctot = sum(a.shape[0] for a in xins)
        t = 0
        for dh in (-1, 0, 1):
            for dw in (-1, 0, 1):
                off = dh * W + dw                    # flattened spatial offset
                base = t * ctot
                for a in xins:
                    c = a.shape[0]
                    if off == 0:
                        # center tap: mask is identically 1, skip the multiply
                        col_ref[base:base + c, :] = a
                    else:
                        shifted = pltpu.roll(a, shift=(-off) % L, axis=1)
                        col_ref[base:base + c, :] = shifted * mask_ref[t:t + 1, :]
                    base += c
                t += 1
        return jnp.dot(w2d, col_ref[0:9 * ctot, :],
                       preferred_element_type=f32)

    # conv1: 1x1, bias=False
    x1 = jnp.dot(w1_ref[...], x, preferred_element_type=f32)        # (C, L)

    # InstanceNorm2d(affine=True, eps=1e-5), biased variance over spatial dims
    mu = jnp.mean(x1, axis=1, keepdims=True)
    var = jnp.mean((x1 - mu) ** 2, axis=1, keepdims=True)
    inst = (x1 - mu) * jax.lax.rsqrt(var + 1e-5)
    inst = inst * gamma_ref[...] + beta_ref[...]
    inst_ref[0] = inst.astype(inst_ref.dtype)

    # two parallel 3x3 convs (bias=False)
    out1 = conv3x3((inst,), w21_ref[...])                            # (C, L)
    out2 = conv3x3((x1,), w22_ref[...])                              # (C, L)

    # interative gate on cat(out1, out2): conv3x3 -> LeakyReLU(0.1) -> Sigmoid
    # (computed once; the PyTorch module calls it twice with identical result)
    gate = jax.nn.sigmoid(lrelu(conv3x3((out1, out2), wg_ref[...])))  # (C, L)
    xp1 = gate * out2 + out1
    xp2 = (1.0 - gate) * out1 + out2

    # xp = cat(xp1, xp2) as a (2C, L) slab (needed for stats + scaling + 1x1)
    cat_ref[0:C, :] = xp1
    cat_ref[C:2 * C, :] = xp2
    xp = cat_ref[...]                                                # (2C, L)

    # stdv_channels(xp) + avgpool(xp): per-channel population std + mean
    m = jnp.mean(xp, axis=1, keepdims=True)                          # (2C, 1)
    v = jnp.mean((xp - m) ** 2, axis=1, keepdims=True)
    s = m + jnp.sqrt(v)                                              # (2C, 1)

    # process: 3x3 convs on a 1x1 spatial map == center-tap 1x1 matmuls
    t1 = lrelu(jnp.dot(wp1_ref[...], s, preferred_element_type=f32)
               + bp1_ref[...])                                       # (C//2, 1)
    t2 = jax.nn.sigmoid(jnp.dot(wp2_ref[...], t1, preferred_element_type=f32)
                        + bp2_ref[...])                              # (2C, 1)

    xp = t2 * xp                                                     # broadcast

    # conv1x1 (bias=True)
    xout = jnp.dot(w1x1_ref[...], xp, preferred_element_type=f32) + b1x1_ref[...]
    xout_ref[0] = xout.astype(xout_ref.dtype)


# ----------------------------------------------------------------------------
# Host-side wrapper: weight re-layout + pallas_call
# ----------------------------------------------------------------------------
def _rearrange_w3x3(w):
    """torch (Cout, Cin, 3, 3) -> (Cout, 9*Cin), columns ordered tap-major."""
    co, ci, kh, kw = w.shape
    return jnp.transpose(w, (0, 2, 3, 1)).reshape(co, kh * kw * ci)


def _tap_masks(H, W):
    """(9, H*W) f32 validity masks for the 3x3 taps (zero-padding semantics)."""
    h = jnp.arange(H)[:, None]
    w = jnp.arange(W)[None, :]
    rows = []
    for dh in (-1, 0, 1):
        for dw in (-1, 0, 1):
            m = ((h + dh >= 0) & (h + dh < H) & (w + dw >= 0) & (w + dw < W))
            rows.append(m.reshape(-1))
    return jnp.stack(rows).astype(jnp.float32)


@jax.jit
def atting_forward(params, x):
    """x: (N, Cin, H, W) NCHW f32 -> (xout (N,C,H,W), out_instance (N,C,H,W))."""
    N, Cin, H, W = x.shape
    C = params["conv1_w"].shape[0]
    L = H * W

    xf = x.reshape(N, Cin, L).astype(jnp.float32)
    w1 = params["conv1_w"].reshape(C, Cin)
    gamma = params["in_gamma"].reshape(C, 1)
    beta = params["in_beta"].reshape(C, 1)
    w21 = _rearrange_w3x3(params["conv2_1_w"])          # (C, 9C)
    w22 = _rearrange_w3x3(params["conv2_2_w"])          # (C, 9C)
    wg = _rearrange_w3x3(params["inter_w"])             # (C, 18C)
    wp1 = params["proc1_w"][:, :, 1, 1]                 # (C//2, 2C) center tap
    bp1 = params["proc1_b"].reshape(-1, 1)
    wp2 = params["proc2_w"][:, :, 1, 1]                 # (2C, C//2) center tap
    bp2 = params["proc2_b"].reshape(-1, 1)
    w1x1 = params["conv1x1_w"].reshape(C, 2 * C)
    b1x1 = params["conv1x1_b"].reshape(C, 1)
    masks = _tap_masks(H, W)                            # (9, L)

    const_ops = (w1, gamma, beta, w21, w22, wg, wp1, bp1, wp2, bp2,
                 w1x1, b1x1, masks)

    kernel = functools.partial(_atting_kernel, W=W)
    xout, inst = pl.pallas_call(
        kernel,
        out_shape=(jax.ShapeDtypeStruct((N, C, L), jnp.float32),
                   jax.ShapeDtypeStruct((N, C, L), jnp.float32)),
        grid=(N,),
        in_specs=[pl.BlockSpec((1, Cin, L), lambda n: (n, 0, 0))]
                 + [pl.BlockSpec(a.shape, lambda n: (0, 0)) for a in const_ops],
        out_specs=(pl.BlockSpec((1, C, L), lambda n: (n, 0, 0)),
                   pl.BlockSpec((1, C, L), lambda n: (n, 0, 0))),
        scratch_shapes=[
            pltpu.VMEM((9 * 2 * C, L), jnp.float32),    # im2col column buffer
            pltpu.VMEM((2 * C, L), jnp.float32),        # xp channel-concat slab
        ],
        compiler_params=pltpu.CompilerParams(
            dimension_semantics=("parallel",)),
    )(xf, *const_ops)

    return xout.reshape(N, C, H, W), inst.reshape(N, C, H, W)


# ----------------------------------------------------------------------------
# Plain-JAX reference of the PyTorch AttING forward (for verification)
# ----------------------------------------------------------------------------
def _leaky(v):
    return jnp.where(v >= 0, v, 0.1 * v)


def atting_reference(p, x):
    dn = ("NCHW", "OIHW", "NCHW")

    def conv(inp, w, pad):
        return jax.lax.conv_general_dilated(
            inp, w, (1, 1), [(pad, pad), (pad, pad)], dimension_numbers=dn)

    x1 = conv(x, p["conv1_w"], 0)
    mu = x1.mean(axis=(2, 3), keepdims=True)
    var = ((x1 - mu) ** 2).mean(axis=(2, 3), keepdims=True)
    inst = (x1 - mu) / jnp.sqrt(var + 1e-5)
    inst = inst * p["in_gamma"].reshape(1, -1, 1, 1) \
                + p["in_beta"].reshape(1, -1, 1, 1)
    out1 = conv(inst, p["conv2_1_w"], 1)
    out2 = conv(x1, p["conv2_2_w"], 1)
    out = jnp.concatenate([out1, out2], axis=1)
    gate = jax.nn.sigmoid(_leaky(conv(out, p["inter_w"], 1)))
    xp1 = gate * out2 + out1
    xp2 = (1.0 - gate) * out1 + out2
    xp = jnp.concatenate([xp1, xp2], axis=1)
    mu2 = xp.mean(axis=(2, 3), keepdims=True)
    var2 = ((xp - mu2) ** 2).mean(axis=(2, 3), keepdims=True)
    s = mu2 + jnp.sqrt(var2)
    t = _leaky(conv(s, p["proc1_w"], 1) + p["proc1_b"].reshape(1, -1, 1, 1))
    t = jax.nn.sigmoid(conv(t, p["proc2_w"], 1)
                       + p["proc2_b"].reshape(1, -1, 1, 1))
    xp = t * xp
    xout = conv(xp, p["conv1x1_w"], 0) + p["conv1x1_b"].reshape(1, -1, 1, 1)
    return xout, inst


# ----------------------------------------------------------------------------
# Deterministic parameter init (torch weight layout)
# ----------------------------------------------------------------------------
def atting_init(key, in_ch, ch, scale=0.05):
    ks = jax.random.split(key, 12)

    def w(k, shape):
        return jax.random.normal(k, shape, jnp.float32) * scale

    return {
        "conv1_w": w(ks[0], (ch, in_ch, 1, 1)),
        "in_gamma": 1.0 + 0.1 * jax.random.normal(ks[1], (ch,), jnp.float32),
        "in_beta": 0.1 * jax.random.normal(ks[2], (ch,), jnp.float32),
        "conv2_1_w": w(ks[3], (ch, ch, 3, 3)),
        "conv2_2_w": w(ks[4], (ch, ch, 3, 3)),
        "inter_w": w(ks[5], (ch, 2 * ch, 3, 3)),
        "proc1_w": w(ks[6], (ch // 2, 2 * ch, 3, 3)),
        "proc1_b": w(ks[7], (ch // 2,)),
        "proc2_w": w(ks[8], (2 * ch, ch // 2, 3, 3)),
        "proc2_b": w(ks[9], (2 * ch,)),
        "conv1x1_w": w(ks[10], (ch, 2 * ch, 1, 1)),
        "conv1x1_b": w(ks[11], (ch,)),
    }


# ----------------------------------------------------------------------------
if __name__ == "__main__":
    key = jax.random.PRNGKey(0)
    pkey, xkey = jax.random.split(key)

    N, in_ch, ch, H, W = 2, 3, 16, 16, 16
    params = atting_init(pkey, in_ch, ch)
    x = jax.random.normal(xkey, (N, in_ch, H, W), jnp.float32)

    xout, inst = atting_forward(params, x)
    jax.block_until_ready((xout, inst))

    assert xout.shape == (N, ch, H, W)
    assert inst.shape == (N, ch, H, W)

    # verify against the plain-JAX reference of the PyTorch module
    xout_ref, inst_ref = atting_reference(params, x)
    np.testing.assert_allclose(np.asarray(xout), np.asarray(xout_ref),
                               rtol=2e-2, atol=2e-2)
    np.testing.assert_allclose(np.asarray(inst), np.asarray(inst_ref),
                               rtol=2e-2, atol=2e-2)

    print("KERNEL_OK")
</pallas_src>

<mosaic_0001>
module attributes {stable_mosaic.version = 11 : i64} {
  func.func @_atting_kernel(%arg0: i32, %arg1: memref<1x3x256xf32, #tpu.memory_space<vmem>>, %arg2: memref<16x3xf32, #tpu.memory_space<vmem>>, %arg3: memref<16x1xf32, #tpu.memory_space<vmem>>, %arg4: memref<16x1xf32, #tpu.memory_space<vmem>>, %arg5: memref<16x144xf32, #tpu.memory_space<vmem>>, %arg6: memref<16x144xf32, #tpu.memory_space<vmem>>, %arg7: memref<16x288xf32, #tpu.memory_space<vmem>>, %arg8: memref<8x32xf32, #tpu.memory_space<vmem>>, %arg9: memref<8x1xf32, #tpu.memory_space<vmem>>, %arg10: memref<32x8xf32, #tpu.memory_space<vmem>>, %arg11: memref<32x1xf32, #tpu.memory_space<vmem>>, %arg12: memref<16x32xf32, #tpu.memory_space<vmem>>, %arg13: memref<16x1xf32, #tpu.memory_space<vmem>>, %arg14: memref<9x256xf32, #tpu.memory_space<vmem>>, %arg15: memref<1x16x256xf32, #tpu.memory_space<vmem>>, %arg16: memref<1x16x256xf32, #tpu.memory_space<vmem>>, %arg17: memref<288x256xf32, #tpu.memory_space<vmem>>, %arg18: memref<32x256xf32, #tpu.memory_space<vmem>>) attributes {dimension_semantics = [#tpu.dimension_semantics<parallel>], iteration_bounds = array<i64: 2>, scalar_prefetch = 0 : i64, scratch_operands = 2 : i64, tpu.core_type = #tpu.core_type<tc>, window_params = [{transform_indices = @transform_0, window_bounds = array<i64: 1, 3, 256>}, {pipeline_mode = #tpu.pipeline_mode<synchronous>, transform_indices = @transform_1, window_bounds = array<i64: 16, 3>}, {pipeline_mode = #tpu.pipeline_mode<synchronous>, transform_indices = @transform_2, window_bounds = array<i64: 16, 1>}, {pipeline_mode = #tpu.pipeline_mode<synchronous>, transform_indices = @transform_3, window_bounds = array<i64: 16, 1>}, {pipeline_mode = #tpu.pipeline_mode<synchronous>, transform_indices = @transform_4, window_bounds = array<i64: 16, 144>}, {pipeline_mode = #tpu.pipeline_mode<synchronous>, transform_indices = @transform_5, window_bounds = array<i64: 16, 144>}, {pipeline_mode = #tpu.pipeline_mode<synchronous>, transform_indices = @transform_6, window_bounds = array<i64: 16, 288>}, {pipeline_mode = #tpu.pipeline_mode<synchronous>, transform_indices = @transform_7, window_bounds = array<i64: 8, 32>}, {pipeline_mode = #tpu.pipeline_mode<synchronous>, transform_indices = @transform_8, window_bounds = array<i64: 8, 1>}, {pipeline_mode = #tpu.pipeline_mode<synchronous>, transform_indices = @transform_9, window_bounds = array<i64: 32, 8>}, {pipeline_mode = #tpu.pipeline_mode<synchronous>, transform_indices = @transform_10, window_bounds = array<i64: 32, 1>}, {pipeline_mode = #tpu.pipeline_mode<synchronous>, transform_indices = @transform_11, window_bounds = array<i64: 16, 32>}, {pipeline_mode = #tpu.pipeline_mode<synchronous>, transform_indices = @transform_12, window_bounds = array<i64: 16, 1>}, {pipeline_mode = #tpu.pipeline_mode<synchronous>, transform_indices = @transform_13, window_bounds = array<i64: 9, 256>}, {transform_indices = @transform_14, window_bounds = array<i64: 1, 16, 256>}, {transform_indices = @transform_15, window_bounds = array<i64: 1, 16, 256>}]} {
    %c0 = arith.constant 0 : index
    %c0_0 = arith.constant 0 : index
    %c0_1 = arith.constant 0 : index
    %0 = vector.load %arg1[%c0, %c0_0, %c0_1] : memref<1x3x256xf32, #tpu.memory_space<vmem>>, vector<1x3x256xf32>
    %1 = vector.shape_cast %0 : vector<1x3x256xf32> to vector<3x256xf32>
    %c0_2 = arith.constant 0 : index
    %c0_3 = arith.constant 0 : index
    %2 = vector.load %arg2[%c0_2, %c0_3] : memref<16x3xf32, #tpu.memory_space<vmem>>, vector<16x3xf32>
    %cst = arith.constant dense<0.000000e+00> : vector<16x256xf32>
    %3 = tpu.matmul %2, %1, %cst {dimension_numbers = #tpu.dot_dimension_numbers<[1], [0], [0], [1], [0, 0, 1, 1], [], []>} : vector<16x3xf32>, vector<3x256xf32>, vector<16x256xf32> -> vector<16x256xf32>
    %cst_4 = arith.constant dense<0.000000e+00> : vector<16xf32>
    %4 = vector.multi_reduction <add>, %3, %cst_4 [1] : vector<16x256xf32> to vector<16xf32>
    %5 = vector.shape_cast %4 : vector<16xf32> to vector<16x1xf32>
    %cst_5 = arith.constant 2.560000e+02 : f32
    %6 = vector.broadcast %cst_5 : f32 to vector<16x1xf32>
    %7 = arith.divf %5, %6 : vector<16x1xf32>
    %8 = vector.broadcast %7 : vector<16x1xf32> to vector<16x256xf32>
    %9 = arith.subf %3, %8 : vector<16x256xf32>
    %10 = arith.mulf %9, %9 : vector<16x256xf32>
    %cst_6 = arith.constant dense<0.000000e+00> : vector<16xf32>
    %11 = vector.multi_reduction <add>, %10, %cst_6 [1] : vector<16x256xf32> to vector<16xf32>
    %12 = vector.shape_cast %11 : vector<16xf32> to vector<16x1xf32>
    %cst_7 = arith.constant 2.560000e+02 : f32
    %13 = vector.broadcast %cst_7 : f32 to vector<16x1xf32>
    %14 = arith.divf %12, %13 : vector<16x1xf32>
    %15 = vector.broadcast %7 : vector<16x1xf32> to vector<16x256xf32>
    %16 = arith.subf %3, %15 : vector<16x256xf32>
    %cst_8 = arith.constant 9.99999974E-6 : f32
    %17 = vector.broadcast %cst_8 : f32 to vector<16x1xf32>
    %18 = arith.addf %14, %17 : vector<16x1xf32>
    %19 = math.rsqrt %18 : vector<16x1xf32>
    %20 = vector.broadcast %19 : vector<16x1xf32> to vector<16x256xf32>
    %21 = arith.mulf %16, %20 : vector<16x256xf32>
    %c0_9 = arith.constant 0 : index
    %c0_10 = arith.constant 0 : index
    %22 = vector.load %arg3[%c0_9, %c0_10] : memref<16x1xf32, #tpu.memory_space<vmem>>, vector<16x1xf32>
    %23 = vector.broadcast %22 : vector<16x1xf32> to vector<16x256xf32>
    %24 = arith.mulf %21, %23 : vector<16x256xf32>
    %c0_11 = arith.constant 0 : index
    %c0_12 = arith.constant 0 : index
    %25 = vector.load %arg4[%c0_11, %c0_12] : memref<16x1xf32, #tpu.memory_space<vmem>>, vector<16x1xf32>
    %26 = vector.broadcast %25 : vector<16x1xf32> to vector<16x256xf32>
    %27 = arith.addf %24, %26 : vector<16x256xf32>
    %c0_13 = arith.constant 0 : index
    %c0_14 = arith.constant 0 : index
    %c0_15 = arith.constant 0 : index
    %28 = vector.load %arg16[%c0_13, %c0_14, %c0_15] : memref<1x16x256xf32, #tpu.memory_space<vmem>>, vector<1x16x256xf32>
    %29 = vector.shape_cast %28 : vector<1x16x256xf32> to vector<16x256xf32>
    %30 = vector.shape_cast %27 : vector<16x256xf32> to vector<1x16x256xf32>
    tpu.vector_store %arg16[%c0_13, %c0_14, %c0_15], %30 {strides = array<i32>} : memref<1x16x256xf32, #tpu.memory_space<vmem>>, vector<1x16x256xf32>,
    %c0_16 = arith.constant 0 : index
    %c0_17 = arith.constant 0 : index
    %31 = vector.load %arg5[%c0_16, %c0_17] : memref<16x144xf32, #tpu.memory_space<vmem>>, vector<16x144xf32>
    %c17_i32 = arith.constant 17 : i32
    %32 = tpu.dynamic_rotate %27 by %c17_i32 dim 1 : vector<16x256xf32>, i32 -> vector<16x256xf32>
    %c0_18 = arith.constant 0 : index
    %c0_19 = arith.constant 0 : index
    %33 = vector.load %arg14[%c0_18, %c0_19] : memref<9x256xf32, #tpu.memory_space<vmem>>, vector<1x256xf32>
    %34 = vector.broadcast %33 : vector<1x256xf32> to vector<16x256xf32>
    %35 = arith.mulf %32, %34 : vector<16x256xf32>
    %c0_20 = arith.constant 0 : index
    %c0_21 = arith.constant 0 : index
    %36 = vector.load %arg17[%c0_20, %c0_21] : memref<288x256xf32, #tpu.memory_space<vmem>>, vector<16x256xf32>
    tpu.vector_store %arg17[%c0_20, %c0_21], %35 {strides = array<i32>} : memref<288x256xf32, #tpu.memory_space<vmem>>, vector<16x256xf32>,
    %c16_i32 = arith.constant 16 : i32
    %37 = tpu.dynamic_rotate %27 by %c16_i32 dim 1 : vector<16x256xf32>, i32 -> vector<16x256xf32>
    %c1 = arith.constant 1 : index
    %c0_22 = arith.constant 0 : index
    %38 = vector.load %arg14[%c1, %c0_22] : memref<9x256xf32, #tpu.memory_space<vmem>>, vector<1x256xf32>
    %39 = vector.broadcast %38 : vector<1x256xf32> to vector<16x256xf32>
    %40 = arith.mulf %37, %39 : vector<16x256xf32>
    %c16 = arith.constant 16 : index
    %c0_23 = arith.constant 0 : index
    %41 = vector.load %arg17[%c16, %c0_23] : memref<288x256xf32, #tpu.memory_space<vmem>>, vector<16x256xf32>
    tpu.vector_store %arg17[%c16, %c0_23], %40 {strides = array<i32>} : memref<288x256xf32, #tpu.memory_space<vmem>>, vector<16x256xf32>,
    %c15_i32 = arith.constant 15 : i32
    %42 = tpu.dynamic_rotate %27 by %c15_i32 dim 1 : vector<16x256xf32>, i32 -> vector<16x256xf32>
    %c2 = arith.constant 2 : index
    %c0_24 = arith.constant 0 : index
    %43 = vector.load %arg14[%c2, %c0_24] : memref<9x256xf32, #tpu.memory_space<vmem>>, vector<1x256xf32>
    %44 = vector.broadcast %43 : vector<1x256xf32> to vector<16x256xf32>
    %45 = arith.mulf %42, %44 : vector<16x256xf32>
    %c32 = arith.constant 32 : index
    %c0_25 = arith.constant 0 : index
    %46 = vector.load %arg17[%c32, %c0_25] : memref<288x256xf32, #tpu.memory_space<vmem>>, vector<16x256xf32>
    tpu.vector_store %arg17[%c32, %c0_25], %45 {strides = array<i32>} : memref<288x256xf32, #tpu.memory_space<vmem>>, vector<16x256xf32>,
    %c1_i32 = arith.constant 1 : i32
    %47 = tpu.dynamic_rotate %27 by %c1_i32 dim 1 : vector<16x256xf32>, i32 -> vector<16x256xf32>
    %c3 = arith.constant 3 : index
    %c0_26 = arith.constant 0 : index
    %48 = vector.load %arg14[%c3, %c0_26] : memref<9x256xf32, #tpu.memory_space<vmem>>, vector<1x256xf32>
    %49 = vector.broadcast %48 : vector<1x256xf32> to vector<16x256xf32>
    %50 = arith.mulf %47, %49 : vector<16x256xf32>
    %c48 = arith.constant 48 : index
    %c0_27 = arith.constant 0 : index
    %51 = vector.load %arg17[%c48, %c0_27] : memref<288x256xf32, #tpu.memory_space<vmem>>, vector<16x256xf32>
    tpu.vector_store %arg17[%c48, %c0_27], %50 {strides = array<i32>} : memref<288x256xf32, #tpu.memory_space<vmem>>, vector<16x256xf32>,
    %c64 = arith.constant 64 : index
    %c0_28 = arith.constant 0 : index
    %52 = vector.load %arg17[%c64, %c0_28] : memref<288x256xf32, #tpu.memory_space<vmem>>, vector<16x256xf32>
    tpu.vector_store %arg17[%c64, %c0_28], %27 {strides = array<i32>} : memref<288x256xf32, #tpu.memory_space<vmem>>, vector<16x256xf32>,
    %c255_i32 = arith.constant 255 : i32
    %53 = tpu.dynamic_rotate %27 by %c255_i32 dim 1 : vector<16x256xf32>, i32 -> vector<16x256xf32>
    %c5 = arith.constant 5 : index
    %c0_29 = arith.constant 0 : index
    %54 = vector.load %arg14[%c5, %c0_29] : memref<9x256xf32, #tpu.memory_space<vmem>>, vector<1x256xf32>
    %55 = vector.broadcast %54 : vector<1x256xf32> to vector<16x256xf32>
    %56 = arith.mulf %53, %55 : vector<16x256xf32>
    %c80 = arith.constant 80 : index
    %c0_30 = arith.constant 0 : index
    %57 = vector.load %arg17[%c80, %c0_30] : memref<288x256xf32, #tpu.memory_space<vmem>>, vector<16x256xf32>
    tpu.vector_store %arg17[%c80, %c0_30], %56 {strides = array<i32>} : memref<288x256xf32, #tpu.memory_space<vmem>>, vector<16x256xf32>,
    %c241_i32 = arith.constant 241 : i32
    %58 = tpu.dynamic_rotate %27 by %c241_i32 dim 1 : vector<16x256xf32>, i32 -> vector<16x256xf32>
    %c6 = arith.constant 6 : index
    %c0_31 = arith.constant 0 : index
    %59 = vector.load %arg14[%c6, %c0_31] : memref<9x256xf32, #tpu.memory_space<vmem>>, vector<1x256xf32>
    %60 = vector.broadcast %59 : vector<1x256xf32> to vector<16x256xf32>
    %61 = arith.mulf %58, %60 : vector<16x256xf32>
    %c96 = arith.constant 96 : index
    %c0_32 = arith.constant 0 : index
    %62 = vector.load %arg17[%c96, %c0_32] : memref<288x256xf32, #tpu.memory_space<vmem>>, vector<16x256xf32>
    tpu.vector_store %arg17[%c96, %c0_32], %61 {strides = array<i32>} : memref<288x256xf32, #tpu.memory_space<vmem>>, vector<16x256xf32>,
    %c240_i32 = arith.constant 240 : i32
    %63 = tpu.dynamic_rotate %27 by %c240_i32 dim 1 : vector<16x256xf32>, i32 -> vector<16x256xf32>
    %c7 = arith.constant 7 : index
    %c0_33 = arith.constant 0 : index
    %64 = vector.load %arg14[%c7, %c0_33] : memref<9x256xf32, #tpu.memory_space<vmem>>, vector<1x256xf32>
    %65 = vector.broadcast %64 : vector<1x256xf32> to vector<16x256xf32>
    %66 = arith.mulf %63, %65 : vector<16x256xf32>
    %c112 = arith.constant 112 : index
    %c0_34 = arith.constant 0 : index
    %67 = vector.load %arg17[%c112, %c0_34] : memref<288x256xf32, #tpu.memory_space<vmem>>, vector<16x256xf32>
    tpu.vector_store %arg17[%c112, %c0_34], %66 {strides = array<i32>} : memref<288x256xf32, #tpu.memory_space<vmem>>, vector<16x256xf32>,
    %c239_i32 = arith.constant 239 : i32
    %68 = tpu.dynamic_rotate %27 by %c239_i32 dim 1 : vector<16x256xf32>, i32 -> vector<16x256xf32>
    %c8 = arith.constant 8 : index
    %c0_35 = arith.constant 0 : index
    %69 = vector.load %arg14[%c8, %c0_35] : memref<9x256xf32, #tpu.memory_space<vmem>>, vector<1x256xf32>
    %70 = vector.broadcast %69 : vector<1x256xf32> to vector<16x256xf32>
    %71 = arith.mulf %68, %70 : vector<16x256xf32>
    %c128 = arith.constant 128 : index
    %c0_36 = arith.constant 0 : index
    %72 = vector.load %arg17[%c128, %c0_36] : memref<288x256xf32, #tpu.memory_space<vmem>>, vector<16x256xf32>
    tpu.vector_store %arg17[%c128, %c0_36], %71 {strides = array<i32>} : memref<288x256xf32, #tpu.memory_space<vmem>>, vector<16x256xf32>,
    %c0_37 = arith.constant 0 : index
    %c0_38 = arith.constant 0 : index
    %73 = vector.load %arg17[%c0_37, %c0_38] : memref<288x256xf32, #tpu.memory_space<vmem>>, vector<144x256xf32>
    %cst_39 = arith.constant dense<0.000000e+00> : vector<16x256xf32>
    %74 = tpu.matmul %31, %73, %cst_39 {dimension_numbers = #tpu.dot_dimension_numbers<[1], [0], [0], [1], [0, 0, 1, 1], [], []>} : vector<16x144xf32>, vector<144x256xf32>, vector<16x256xf32> -> vector<16x256xf32>
    %c0_40 = arith.constant 0 : index
    %c0_41 = arith.constant 0 : index
    %75 = vector.load %arg6[%c0_40, %c0_41] : memref<16x144xf32, #tpu.memory_space<vmem>>, vector<16x144xf32>
    %c17_i32_42 = arith.constant 17 : i32
    %76 = tpu.dynamic_rotate %3 by %c17_i32_42 dim 1 : vector<16x256xf32>, i32 -> vector<16x256xf32>
    %c0_43 = arith.constant 0 : index
    %c0_44 = arith.constant 0 : index
    %77 = vector.load %arg14[%c0_43, %c0_44] : memref<9x256xf32, #tpu.memory_space<vmem>>, vector<1x256xf32>
    %78 = vector.broadcast %77 : vector<1x256xf32> to vector<16x256xf32>
    %79 = arith.mulf %76, %78 : vector<16x256xf32>
    %c0_45 = arith.constant 0 : index
    %c0_46 = arith.constant 0 : index
    %80 = vector.load %arg17[%c0_45, %c0_46] : memref<288x256xf32, #tpu.memory_space<vmem>>, vector<16x256xf32>
    tpu.vector_store %arg17[%c0_45, %c0_46], %79 {strides = array<i32>} : memref<288x256xf32, #tpu.memory_space<vmem>>, vector<16x256xf32>,
    %c16_i32_47 = arith.constant 16 : i32
    %81 = tpu.dynamic_rotate %3 by %c16_i32_47 dim 1 : vector<16x256xf32>, i32 -> vector<16x256xf32>
    %c1_48 = arith.constant 1 : index
    %c0_49 = arith.constant 0 : index
    %82 = vector.load %arg14[%c1_48, %c0_49] : memref<9x256xf32, #tpu.memory_space<vmem>>, vector<1x256xf32>
    %83 = vector.broadcast %82 : vector<1x256xf32> to vector<16x256xf32>
    %84 = arith.mulf %81, %83 : vector<16x256xf32>
    %c16_50 = arith.constant 16 : index
    %c0_51 = arith.constant 0 : index
    %85 = vector.load %arg17[%c16_50, %c0_51] : memref<288x256xf32, #tpu.memory_space<vmem>>, vector<16x256xf32>
    tpu.vector_store %arg17[%c16_50, %c0_51], %84 {strides = array<i32>} : memref<288x256xf32, #tpu.memory_space<vmem>>, vector<16x256xf32>,
    %c15_i32_52 = arith.constant 15 : i32
    %86 = tpu.dynamic_rotate %3 by %c15_i32_52 dim 1 : vector<16x256xf32>, i32 -> vector<16x256xf32>
    %c2_53 = arith.constant 2 : index
    %c0_54 = arith.constant 0 : index
    %87 = vector.load %arg14[%c2_53, %c0_54] : memref<9x256xf32, #tpu.memory_space<vmem>>, vector<1x256xf32>
    %88 = vector.broadcast %87 : vector<1x256xf32> to vector<16x256xf32>
    %89 = arith.mulf %86, %88 : vector<16x256xf32>
    %c32_55 = arith.constant 32 : index
    %c0_56 = arith.constant 0 : index
    %90 = vector.load %arg17[%c32_55, %c0_56] : memref<288x256xf32, #tpu.memory_space<vmem>>, vector<16x256xf32>
    tpu.vector_store %arg17[%c32_55, %c0_56], %89 {strides = array<i32>} : memref<288x256xf32, #tpu.memory_space<vmem>>, vector<16x256xf32>,
    %c1_i32_57 = arith.constant 1 : i32
    %91 = tpu.dynamic_rotate %3 by %c1_i32_57 dim 1 : vector<16x256xf32>, i32 -> vector<16x256xf32>
    %c3_58 = arith.constant 3 : index
    %c0_59 = arith.constant 0 : index
    %92 = vector.load %arg14[%c3_58, %c0_59] : memref<9x256xf32, #tpu.memory_space<vmem>>, vector<1x256xf32>
    %93 = vector.broadcast %92 : vector<1x256xf32> to vector<16x256xf32>
    %94 = arith.mulf %91, %93 : vector<16x256xf32>
    %c48_60 = arith.constant 48 : index
    %c0_61 = arith.constant 0 : index
    %95 = vector.load %arg17[%c48_60, %c0_61] : memref<288x256xf32, #tpu.memory_space<vmem>>, vector<16x256xf32>
    tpu.vector_store %arg17[%c48_60, %c0_61], %94 {strides = array<i32>} : memref<288x256xf32, #tpu.memory_space<vmem>>, vector<16x256xf32>,
    %c64_62 = arith.constant 64 : index
    %c0_63 = arith.constant 0 : index
    %96 = vector.load %arg17[%c64_62, %c0_63] : memref<288x256xf32, #tpu.memory_space<vmem>>, vector<16x256xf32>
    tpu.vector_store %arg17[%c64_62, %c0_63], %3 {strides = array<i32>} : memref<288x256xf32, #tpu.memory_space<vmem>>, vector<16x256xf32>,
    %c255_i32_64 = arith.constant 255 : i32
    %97 = tpu.dynamic_rotate %3 by %c255_i32_64 dim 1 : vector<16x256xf32>, i32 -> vector<16x256xf32>
    %c5_65 = arith.constant 5 : index
    %c0_66 = arith.constant 0 : index
    %98 = vector.load %arg14[%c5_65, %c0_66] : memref<9x256xf32, #tpu.memory_space<vmem>>, vector<1x256xf32>
    %99 = vector.broadcast %98 : vector<1x256xf32> to vector<16x256xf32>
    %100 = arith.mulf %97, %99 : vector<16x256xf32>
    %c80_67 = arith.constant 80 : index
    %c0_68 = arith.constant 0 : index
    %101 = vector.load %arg17[%c80_67, %c0_68] : memref<288x256xf32, #tpu.memory_space<vmem>>, vector<16x256xf32>
    tpu.vector_store %arg17[%c80_67, %c0_68], %100 {strides = array<i32>} : memref<288x256xf32, #tpu.memory_space<vmem>>, vector<16x256xf32>,
    %c241_i32_69 = arith.constant 241 : i32
    %102 = tpu.dynamic_rotate %3 by %c241_i32_69 dim 1 : vector<16x256xf32>, i32 -> vector<16x256xf32>
    %c6_70 = arith.constant 6 : index
    %c0_71 = arith.constant 0 : index
    %103 = vector.load %arg14[%c6_70, %c0_71] : memref<9x256xf32, #tpu.memory_space<vmem>>, vector<1x256xf32>
    %104 = vector.broadcast %103 : vector<1x256xf32> to vector<16x256xf32>
    %105 = arith.mulf %102, %104 : vector<16x256xf32>
    %c96_72 = arith.constant 96 : index
    %c0_73 = arith.constant 0 : index
    %106 = vector.load %arg17[%c96_72, %c0_73] : memref<288x256xf32, #tpu.memory_space<vmem>>, vector<16x256xf32>
    tpu.vector_store %arg17[%c96_72, %c0_73], %105 {strides = array<i32>} : memref<288x256xf32, #tpu.memory_space<vmem>>, vector<16x256xf32>,
    %c240_i32_74 = arith.constant 240 : i32
    %107 = tpu.dynamic_rotate %3 by %c240_i32_74 dim 1 : vector<16x256xf32>, i32 -> vector<16x256xf32>
    %c7_75 = arith.constant 7 : index
    %c0_76 = arith.constant 0 : index
    %108 = vector.load %arg14[%c7_75, %c0_76] : memref<9x256xf32, #tpu.memory_space<vmem>>, vector<1x256xf32>
    %109 = vector.broadcast %108 : vector<1x256xf32> to vector<16x256xf32>
    %110 = arith.mulf %107, %109 : vector<16x256xf32>
    %c112_77 = arith.constant 112 : index
    %c0_78 = arith.constant 0 : index
    %111 = vector.load %arg17[%c112_77, %c0_78] : memref<288x256xf32, #tpu.memory_space<vmem>>, vector<16x256xf32>
    tpu.vector_store %arg17[%c112_77, %c0_78], %110 {strides = array<i32>} : memref<288x256xf32, #tpu.memory_space<vmem>>, vector<16x256xf32>,
    %c239_i32_79 = arith.constant 239 : i32
    %112 = tpu.dynamic_rotate %3 by %c239_i32_79 dim 1 : vector<16x256xf32>, i32 -> vector<16x256xf32>
    %c8_80 = arith.constant 8 : index
    %c0_81 = arith.constant 0 : index
    %113 = vector.load %arg14[%c8_80, %c0_81] : memref<9x256xf32, #tpu.memory_space<vmem>>, vector<1x256xf32>
    %114 = vector.broadcast %113 : vector<1x256xf32> to vector<16x256xf32>
    %115 = arith.mulf %112, %114 : vector<16x256xf32>
    %c128_82 = arith.constant 128 : index
    %c0_83 = arith.constant 0 : index
    %116 = vector.load %arg17[%c128_82, %c0_83] : memref<288x256xf32, #tpu.memory_space<vmem>>, vector<16x256xf32>
    tpu.vector_store %arg17[%c128_82, %c0_83], %115 {strides = array<i32>} : memref<288x256xf32, #tpu.memory_space<vmem>>, vector<16x256xf32>,
    %c0_84 = arith.constant 0 : index
    %c0_85 = arith.constant 0 : index
    %117 = vector.load %arg17[%c0_84, %c0_85] : memref<288x256xf32, #tpu.memory_space<vmem>>, vector<144x256xf32>
    %cst_86 = arith.constant dense<0.000000e+00> : vector<16x256xf32>
    %118 = tpu.matmul %75, %117, %cst_86 {dimension_numbers = #tpu.dot_dimension_numbers<[1], [0], [0], [1], [0, 0, 1, 1], [], []>} : vector<16x144xf32>, vector<144x256xf32>, vector<16x256xf32> -> vector<16x256xf32>
    %c0_87 = arith.constant 0 : index
    %c0_88 = arith.constant 0 : index
    %119 = vector.load %arg7[%c0_87, %c0_88] : memref<16x288xf32, #tpu.memory_space<vmem>>, vector<16x288xf32>
    %c17_i32_89 = arith.constant 17 : i32
    %120 = tpu.dynamic_rotate %74 by %c17_i32_89 dim 1 : vector<16x256xf32>, i32 -> vector<16x256xf32>
    %c0_90 = arith.constant 0 : index
    %c0_91 = arith.constant 0 : index
    %121 = vector.load %arg14[%c0_90, %c0_91] : memref<9x256xf32, #tpu.memory_space<vmem>>, vector<1x256xf32>
    %122 = vector.broadcast %121 : vector<1x256xf32> to vector<16x256xf32>
    %123 = arith.mulf %120, %122 : vector<16x256xf32>
    %c0_92 = arith.constant 0 : index
    %c0_93 = arith.constant 0 : index
    %124 = vector.load %arg17[%c0_92, %c0_93] : memref<288x256xf32, #tpu.memory_space<vmem>>, vector<16x256xf32>
    tpu.vector_store %arg17[%c0_92, %c0_93], %123 {strides = array<i32>} : memref<288x256xf32, #tpu.memory_space<vmem>>, vector<16x256xf32>,
    %c17_i32_94 = arith.constant 17 : i32
    %125 = tpu.dynamic_rotate %118 by %c17_i32_94 dim 1 : vector<16x256xf32>, i32 -> vector<16x256xf32>
    %c0_95 = arith.constant 0 : index
    %c0_96 = arith.constant 0 : index
    %126 = vector.load %arg14[%c0_95, %c0_96] : memref<9x256xf32, #tpu.memory_space<vmem>>, vector<1x256xf32>
    %127 = vector.broadcast %126 : vector<1x256xf32> to vector<16x256xf32>
    %128 = arith.mulf %125, %127 : vector<16x256xf32>
    %c16_97 = arith.constant 16 : index
    %c0_98 = arith.constant 0 : index
    %129 = vector.load %arg17[%c16_97, %c0_98] : memref<288x256xf32, #tpu.memory_space<vmem>>, vector<16x256xf32>
    tpu.vector_store %arg17[%c16_97, %c0_98], %128 {strides = array<i32>} : memref<288x256xf32, #tpu.memory_space<vmem>>, vector<16x256xf32>,
    %c16_i32_99 = arith.constant 16 : i32
    %130 = tpu.dynamic_rotate %74 by %c16_i32_99 dim 1 : vector<16x256xf32>, i32 -> vector<16x256xf32>
    %c1_100 = arith.constant 1 : index
    %c0_101 = arith.constant 0 : index
    %131 = vector.load %arg14[%c1_100, %c0_101] : memref<9x256xf32, #tpu.memory_space<vmem>>, vector<1x256xf32>
    %132 = vector.broadcast %131 : vector<1x256xf32> to vector<16x256xf32>
    %133 = arith.mulf %130, %132 : vector<16x256xf32>
    %c32_102 = arith.constant 32 : index
    %c0_103 = arith.constant 0 : index
    %134 = vector.load %arg17[%c32_102, %c0_103] : memref<288x256xf32, #tpu.memory_space<vmem>>, vector<16x256xf32>
    tpu.vector_store %arg17[%c32_102, %c0_103], %133 {strides = array<i32>} : memref<288x256xf32, #tpu.memory_space<vmem>>, vector<16x256xf32>,
    %c16_i32_104 = arith.constant 16 : i32
    %135 = tpu.dynamic_rotate %118 by %c16_i32_104 dim 1 : vector<16x256xf32>, i32 -> vector<16x256xf32>
    %c1_105 = arith.constant 1 : index
    %c0_106 = arith.constant 0 : index
    %136 = vector.load %arg14[%c1_105, %c0_106] : memref<9x256xf32, #tpu.memory_space<vmem>>, vector<1x256xf32>
    %137 = vector.broadcast %136 : vector<1x256xf32> to vector<16x256xf32>
    %138 = arith.mulf %135, %137 : vector<16x256xf32>
    %c48_107 = arith.constant 48 : index
    %c0_108 = arith.constant 0 : index
    %139 = vector.load %arg17[%c48_107, %c0_108] : memref<288x256xf32, #tpu.memory_space<vmem>>, vector<16x256xf32>
    tpu.vector_store %arg17[%c48_107, %c0_108], %138 {strides = array<i32>} : memref<288x256xf32, #tpu.memory_space<vmem>>, vector<16x256xf32>,
    %c15_i32_109 = arith.constant 15 : i32
    %140 = tpu.dynamic_rotate %74 by %c15_i32_109 dim 1 : vector<16x256xf32>, i32 -> vector<16x256xf32>
    %c2_110 = arith.constant 2 : index
    %c0_111 = arith.constant 0 : index
    %141 = vector.load %arg14[%c2_110, %c0_111] : memref<9x256xf32, #tpu.memory_space<vmem>>, vector<1x256xf32>
    %142 = vector.broadcast %141 : vector<1x256xf32> to vector<16x256xf32>
    %143 = arith.mulf %140, %142 : vector<16x256xf32>
    %c64_112 = arith.constant 64 : index
    %c0_113 = arith.constant 0 : index
    %144 = vector.load %arg17[%c64_112, %c0_113] : memref<288x256xf32, #tpu.memory_space<vmem>>, vector<16x256xf32>
    tpu.vector_store %arg17[%c64_112, %c0_113], %143 {strides = array<i32>} : memref<288x256xf32, #tpu.memory_space<vmem>>, vector<16x256xf32>,
    %c15_i32_114 = arith.constant 15 : i32
    %145 = tpu.dynamic_rotate %118 by %c15_i32_114 dim 1 : vector<16x256xf32>, i32 -> vector<16x256xf32>
    %c2_115 = arith.constant 2 : index
    %c0_116 = arith.constant 0 : index
    %146 = vector.load %arg14[%c2_115, %c0_116] : memref<9x256xf32, #tpu.memory_space<vmem>>, vector<1x256xf32>
    %147 = vector.broadcast %146 : vector<1x256xf32> to vector<16x256xf32>
    %148 = arith.mulf %145, %147 : vector<16x256xf32>
    %c80_117 = arith.constant 80 : index
    %c0_118 = arith.constant 0 : index
    %149 = vector.load %arg17[%c80_117, %c0_118] : memref<288x256xf32, #tpu.memory_space<vmem>>, vector<16x256xf32>
    tpu.vector_store %arg17[%c80_117, %c0_118], %148 {strides = array<i32>} : memref<288x256xf32, #tpu.memory_space<vmem>>, vector<16x256xf32>,
    %c1_i32_119 = arith.constant 1 : i32
    %150 = tpu.dynamic_rotate %74 by %c1_i32_119 dim 1 : vector<16x256xf32>, i32 -> vector<16x256xf32>
    %c3_120 = arith.constant 3 : index
    %c0_121 = arith.constant 0 : index
    %151 = vector.load %arg14[%c3_120, %c0_121] : memref<9x256xf32, #tpu.memory_space<vmem>>, vector<1x256xf32>
    %152 = vector.broadcast %151 : vector<1x256xf32> to vector<16x256xf32>
    %153 = arith.mulf %150, %152 : vector<16x256xf32>
    %c96_122 = arith.constant 96 : index
    %c0_123 = arith.constant 0 : index
    %154 = vector.load %arg17[%c96_122, %c0_123] : memref<288x256xf32, #tpu.memory_space<vmem>>, vector<16x256xf32>
    tpu.vector_store %arg17[%c96_122, %c0_123], %153 {strides = array<i32>} : memref<288x256xf32, #tpu.memory_space<vmem>>, vector<16x256xf32>,
    %c1_i32_124 = arith.constant 1 : i32
    %155 = tpu.dynamic_rotate %118 by %c1_i32_124 dim 1 : vector<16x256xf32>, i32 -> vector<16x256xf32>
    %c3_125 = arith.constant 3 : index
    %c0_126 = arith.constant 0 : index
    %156 = vector.load %arg14[%c3_125, %c0_126] : memref<9x256xf32, #tpu.memory_space<vmem>>, vector<1x256xf32>
    %157 = vector.broadcast %156 : vector<1x256xf32> to vector<16x256xf32>
    %158 = arith.mulf %155, %157 : vector<16x256xf32>
    %c112_127 = arith.constant 112 : index
    %c0_128 = arith.constant 0 : index
    %159 = vector.load %arg17[%c112_127, %c0_128] : memref<288x256xf32, #tpu.memory_space<vmem>>, vector<16x256xf32>
    tpu.vector_store %arg17[%c112_127, %c0_128], %158 {strides = array<i32>} : memref<288x256xf32, #tpu.memory_space<vmem>>, vector<16x256xf32>,
    %c128_129 = arith.constant 128 : index
    %c0_130 = arith.constant 0 : index
    %160 = vector.load %arg17[%c128_129, %c0_130] : memref<288x256xf32, #tpu.memory_space<vmem>>, vector<16x256xf32>
    tpu.vector_store %arg17[%c128_129, %c0_130], %74 {strides = array<i32>} : memref<288x256xf32, #tpu.memory_space<vmem>>, vector<16x256xf32>,
    %c144 = arith.constant 144 : index
    %c0_131 = arith.constant 0 : index
    %161 = vector.load %arg17[%c144, %c0_131] : memref<288x256xf32, #tpu.memory_space<vmem>>, vector<16x256xf32>
    tpu.vector_store %arg17[%c144, %c0_131], %118 {strides = array<i32>} : memref<288x256xf32, #tpu.memory_space<vmem>>, vector<16x256xf32>,
    %c255_i32_132 = arith.constant 255 : i32
    %162 = tpu.dynamic_rotate %74 by %c255_i32_132 dim 1 : vector<16x256xf32>, i32 -> vector<16x256xf32>
    %c5_133 = arith.constant 5 : index
    %c0_134 = arith.constant 0 : index
    %163 = vector.load %arg14[%c5_133, %c0_134] : memref<9x256xf32, #tpu.memory_space<vmem>>, vector<1x256xf32>
    %164 = vector.broadcast %163 : vector<1x256xf32> to vector<16x256xf32>
    %165 = arith.mulf %162, %164 : vector<16x256xf32>
    %c160 = arith.constant 160 : index
    %c0_135 = arith.constant 0 : index
    %166 = vector.load %arg17[%c160, %c0_135] : memref<288x256xf32, #tpu.memory_space<vmem>>, vector<16x256xf32>
    tpu.vector_store %arg17[%c160, %c0_135], %165 {strides = array<i32>} : memref<288x256xf32, #tpu.memory_space<vmem>>, vector<16x256xf32>,
    %c255_i32_136 = arith.constant 255 : i32
    %167 = tpu.dynamic_rotate %118 by %c255_i32_136 dim 1 : vector<16x256xf32>, i32 -> vector<16x256xf32>
    %c5_137 = arith.constant 5 : index
    %c0_138 = arith.constant 0 : index
    %168 = vector.load %arg14[%c5_137, %c0_138] : memref<9x256xf32, #tpu.memory_space<vmem>>, vector<1x256xf32>
    %169 = vector.broadcast %168 : vector<1x256xf32> to vector<16x256xf32>
    %170 = arith.mulf %167, %169 : vector<16x256xf32>
    %c176 = arith.constant 176 : index
    %c0_139 = arith.constant 0 : index
    %171 = vector.load %arg17[%c176, %c0_139] : memref<288x256xf32, #tpu.memory_space<vmem>>, vector<16x256xf32>
    tpu.vector_store %arg17[%c176, %c0_139], %170 {strides = array<i32>} : memref<288x256xf32, #tpu.memory_space<vmem>>, vector<16x256xf32>,
    %c241_i32_140 = arith.constant 241 : i32
    %172 = tpu.dynamic_rotate %74 by %c241_i32_140 dim 1 : vector<16x256xf32>, i32 -> vector<16x256xf32>
    %c6_141 = arith.constant 6 : index
    %c0_142 = arith.constant 0 : index
    %173 = vector.load %arg14[%c6_141, %c0_142] : memref<9x256xf32, #tpu.memory_space<vmem>>, vector<1x256xf32>
    %174 = vector.broadcast %173 : vector<1x256xf32> to vector<16x256xf32>
    %175 = arith.mulf %172, %174 : vector<16x256xf32>
    %c192 = arith.constant 192 : index
    %c0_143 = arith.constant 0 : index
    %176 = vector.load %arg17[%c192, %c0_143] : memref<288x256xf32, #tpu.memory_space<vmem>>, vector<16x256xf32>
    tpu.vector_store %arg17[%c192, %c0_143], %175 {strides = array<i32>} : memref<288x256xf32, #tpu.memory_space<vmem>>, vector<16x256xf32>,
    %c241_i32_144 = arith.constant 241 : i32
    %177 = tpu.dynamic_rotate %118 by %c241_i32_144 dim 1 : vector<16x256xf32>, i32 -> vector<16x256xf32>
    %c6_145 = arith.constant 6 : index
    %c0_146 = arith.constant 0 : index
    %178 = vector.load %arg14[%c6_145, %c0_146] : memref<9x256xf32, #tpu.memory_space<vmem>>, vector<1x256xf32>
    %179 = vector.broadcast %178 : vector<1x256xf32> to vector<16x256xf32>
    %180 = arith.mulf %177, %179 : vector<16x256xf32>
    %c208 = arith.constant 208 : index
    %c0_147 = arith.constant 0 : index
    %181 = vector.load %arg17[%c208, %c0_147] : memref<288x256xf32, #tpu.memory_space<vmem>>, vector<16x256xf32>
    tpu.vector_store %arg17[%c208, %c0_147], %180 {strides = array<i32>} : memref<288x256xf32, #tpu.memory_space<vmem>>, vector<16x256xf32>,
    %c240_i32_148 = arith.constant 240 : i32
    %182 = tpu.dynamic_rotate %74 by %c240_i32_148 dim 1 : vector<16x256xf32>, i32 -> vector<16x256xf32>
    %c7_149 = arith.constant 7 : index
    %c0_150 = arith.constant 0 : index
    %183 = vector.load %arg14[%c7_149, %c0_150] : memref<9x256xf32, #tpu.memory_space<vmem>>, vector<1x256xf32>
    %184 = vector.broadcast %183 : vector<1x256xf32> to vector<16x256xf32>
    %185 = arith.mulf %182, %184 : vector<16x256xf32>
    %c224 = arith.constant 224 : index
    %c0_151 = arith.constant 0 : index
    %186 = vector.load %arg17[%c224, %c0_151] : memref<288x256xf32, #tpu.memory_space<vmem>>, vector<16x256xf32>
    tpu.vector_store %arg17[%c224, %c0_151], %185 {strides = array<i32>} : memref<288x256xf32, #tpu.memory_space<vmem>>, vector<16x256xf32>,
    %c240_i32_152 = arith.constant 240 : i32
    %187 = tpu.dynamic_rotate %118 by %c240_i32_152 dim 1 : vector<16x256xf32>, i32 -> vector<16x256xf32>
    %c7_153 = arith.constant 7 : index
    %c0_154 = arith.constant 0 : index
    %188 = vector.load %arg14[%c7_153, %c0_154] : memref<9x256xf32, #tpu.memory_space<vmem>>, vector<1x256xf32>
    %189 = vector.broadcast %188 : vector<1x256xf32> to vector<16x256xf32>
    %190 = arith.mulf %187, %189 : vector<16x256xf32>
    %c240 = arith.constant 240 : index
    %c0_155 = arith.constant 0 : index
    %191 = vector.load %arg17[%c240, %c0_155] : memref<288x256xf32, #tpu.memory_space<vmem>>, vector<16x256xf32>
    tpu.vector_store %arg17[%c240, %c0_155], %190 {strides = array<i32>} : memref<288x256xf32, #tpu.memory_space<vmem>>, vector<16x256xf32>,
    %c239_i32_156 = arith.constant 239 : i32
    %192 = tpu.dynamic_rotate %74 by %c239_i32_156 dim 1 : vector<16x256xf32>, i32 -> vector<16x256xf32>
    %c8_157 = arith.constant 8 : index
    %c0_158 = arith.constant 0 : index
    %193 = vector.load %arg14[%c8_157, %c0_158] : memref<9x256xf32, #tpu.memory_space<vmem>>, vector<1x256xf32>
    %194 = vector.broadcast %193 : vector<1x256xf32> to vector<16x256xf32>
    %195 = arith.mulf %192, %194 : vector<16x256xf32>
    %c256 = arith.constant 256 : index
    %c0_159 = arith.constant 0 : index
    %196 = vector.load %arg17[%c256, %c0_159] : memref<288x256xf32, #tpu.memory_space<vmem>>, vector<16x256xf32>
    tpu.vector_store %arg17[%c256, %c0_159], %195 {strides = array<i32>} : memref<288x256xf32, #tpu.memory_space<vmem>>, vector<16x256xf32>,
    %c239_i32_160 = arith.constant 239 : i32
    %197 = tpu.dynamic_rotate %118 by %c239_i32_160 dim 1 : vector<16x256xf32>, i32 -> vector<16x256xf32>
    %c8_161 = arith.constant 8 : index
    %c0_162 = arith.constant 0 : index
    %198 = vector.load %arg14[%c8_161, %c0_162] : memref<9x256xf32, #tpu.memory_space<vmem>>, vector<1x256xf32>
    %199 = vector.broadcast %198 : vector<1x256xf32> to vector<16x256xf32>
    %200 = arith.mulf %197, %199 : vector<16x256xf32>
    %c272 = arith.constant 272 : index
    %c0_163 = arith.constant 0 : index
    %201 = vector.load %arg17[%c272, %c0_163] : memref<288x256xf32, #tpu.memory_space<vmem>>, vector<16x256xf32>
    tpu.vector_store %arg17[%c272, %c0_163], %200 {strides = array<i32>} : memref<288x256xf32, #tpu.memory_space<vmem>>, vector<16x256xf32>,
    %c0_164 = arith.constant 0 : index
    %c0_165 = arith.constant 0 : index
    %202 = vector.load %arg17[%c0_164, %c0_165] : memref<288x256xf32, #tpu.memory_space<vmem>>, vector<288x256xf32>
    %cst_166 = arith.constant dense<0.000000e+00> : vector<16x256xf32>
    %203 = tpu.matmul %119, %202, %cst_166 {dimension_numbers = #tpu.dot_dimension_numbers<[1], [0], [0], [1], [0, 0, 1, 1], [], []>} : vector<16x288xf32>, vector<288x256xf32>, vector<16x256xf32> -> vector<16x256xf32>
    %cst_167 = arith.constant 1.000000e-01 : f32
    %204 = vector.broadcast %cst_167 : f32 to vector<16x256xf32>
    %205 = arith.mulf %204, %203 : vector<16x256xf32>
    %206 = arith.maximumf %203, %205 : vector<16x256xf32>
    %207 = arith.negf %206 : vector<16x256xf32>
    %208 = math.exp %207 : vector<16x256xf32>
    %cst_168 = arith.constant 1.000000e+00 : f32
    %209 = vector.broadcast %cst_168 : f32 to vector<16x256xf32>
    %210 = arith.addf %209, %208 : vector<16x256xf32>
    %211 = arith.divf %209, %210 : vector<16x256xf32>
    %212 = arith.mulf %211, %118 : vector<16x256xf32>
    %213 = arith.addf %212, %74 : vector<16x256xf32>
    %cst_169 = arith.constant 1.000000e+00 : f32
    %214 = vector.broadcast %cst_169 : f32 to vector<16x256xf32>
    %215 = arith.subf %214, %211 : vector<16x256xf32>
    %216 = arith.mulf %215, %74 : vector<16x256xf32>
    %217 = arith.addf %216, %118 : vector<16x256xf32>
    %c0_170 = arith.constant 0 : index
    %c0_171 = arith.constant 0 : index
    %218 = vector.load %arg18[%c0_170, %c0_171] : memref<32x256xf32, #tpu.memory_space<vmem>>, vector<16x256xf32>
    tpu.vector_store %arg18[%c0_170, %c0_171], %213 {strides = array<i32>} : memref<32x256xf32, #tpu.memory_space<vmem>>, vector<16x256xf32>,
    %c16_172 = arith.constant 16 : index
    %c0_173 = arith.constant 0 : index
    %219 = vector.load %arg18[%c16_172, %c0_173] : memref<32x256xf32, #tpu.memory_space<vmem>>, vector<16x256xf32>
    tpu.vector_store %arg18[%c16_172, %c0_173], %217 {strides = array<i32>} : memref<32x256xf32, #tpu.memory_space<vmem>>, vector<16x256xf32>,
    %c0_174 = arith.constant 0 : index
    %c0_175 = arith.constant 0 : index
    %220 = vector.load %arg18[%c0_174, %c0_175] : memref<32x256xf32, #tpu.memory_space<vmem>>, vector<32x256xf32>
    %cst_176 = arith.constant dense<0.000000e+00> : vector<32xf32>
    %221 = vector.multi_reduction <add>, %220, %cst_176 [1] : vector<32x256xf32> to vector<32xf32>
    %222 = vector.shape_cast %221 : vector<32xf32> to vector<32x1xf32>
    %cst_177 = arith.constant 2.560000e+02 : f32
    %223 = vector.broadcast %cst_177 : f32 to vector<32x1xf32>
    %224 = arith.divf %222, %223 : vector<32x1xf32>
    %225 = vector.broadcast %224 : vector<32x1xf32> to vector<32x256xf32>
    %226 = arith.subf %220, %225 : vector<32x256xf32>
    %227 = arith.mulf %226, %226 : vector<32x256xf32>
    %cst_178 = arith.constant dense<0.000000e+00> : vector<32xf32>
    %228 = vector.multi_reduction <add>, %227, %cst_178 [1] : vector<32x256xf32> to vector<32xf32>
    %229 = vector.shape_cast %228 : vector<32xf32> to vector<32x1xf32>
    %cst_179 = arith.constant 2.560000e+02 : f32
    %230 = vector.broadcast %cst_179 : f32 to vector<32x1xf32>
    %231 = arith.divf %229, %230 : vector<32x1xf32>
    %232 = math.sqrt %231 : vector<32x1xf32>
    %233 = arith.addf %224, %232 : vector<32x1xf32>
    %c0_180 = arith.constant 0 : index
    %c0_181 = arith.constant 0 : index
    %234 = vector.load %arg8[%c0_180, %c0_181] : memref<8x32xf32, #tpu.memory_space<vmem>>, vector<8x32xf32>
    %cst_182 = arith.constant dense<0.000000e+00> : vector<8x1xf32>
    %235 = tpu.matmul %234, %233, %cst_182 {dimension_numbers = #tpu.dot_dimension_numbers<[1], [0], [0], [1], [0, 0, 1, 1], [], []>} : vector<8x32xf32>, vector<32x1xf32>, vector<8x1xf32> -> vector<8x1xf32>
    %c0_183 = arith.constant 0 : index
    %c0_184 = arith.constant 0 : index
    %236 = vector.load %arg9[%c0_183, %c0_184] : memref<8x1xf32, #tpu.memory_space<vmem>>, vector<8x1xf32>
    %237 = arith.addf %235, %236 : vector<8x1xf32>
    %cst_185 = arith.constant 1.000000e-01 : f32
    %238 = vector.broadcast %cst_185 : f32 to vector<8x1xf32>
    %239 = arith.mulf %238, %237 : vector<8x1xf32>
    %240 = arith.maximumf %237, %239 : vector<8x1xf32>
    %c0_186 = arith.constant 0 : index
    %c0_187 = arith.constant 0 : index
    %241 = vector.load %arg10[%c0_186, %c0_187] : memref<32x8xf32, #tpu.memory_space<vmem>>, vector<32x8xf32>
    %cst_188 = arith.constant dense<0.000000e+00> : vector<32x1xf32>
    %242 = tpu.matmul %241, %240, %cst_188 {dimension_numbers = #tpu.dot_dimension_numbers<[1], [0], [0], [1], [0, 0, 1, 1], [], []>} : vector<32x8xf32>, vector<8x1xf32>, vector<32x1xf32> -> vector<32x1xf32>
    %c0_189 = arith.constant 0 : index
    %c0_190 = arith.constant 0 : index
    %243 = vector.load %arg11[%c0_189, %c0_190] : memref<32x1xf32, #tpu.memory_space<vmem>>, vector<32x1xf32>
    %244 = arith.addf %242, %243 : vector<32x1xf32>
    %245 = arith.negf %244 : vector<32x1xf32>
    %246 = math.exp %245 : vector<32x1xf32>
    %cst_191 = arith.constant 1.000000e+00 : f32
    %247 = vector.broadcast %cst_191 : f32 to vector<32x1xf32>
    %248 = arith.addf %247, %246 : vector<32x1xf32>
    %249 = arith.divf %247, %248 : vector<32x1xf32>
    %250 = vector.broadcast %249 : vector<32x1xf32> to vector<32x256xf32>
    %251 = arith.mulf %250, %220 : vector<32x256xf32>
    %c0_192 = arith.constant 0 : index
    %c0_193 = arith.constant 0 : index
    %252 = vector.load %arg12[%c0_192, %c0_193] : memref<16x32xf32, #tpu.memory_space<vmem>>, vector<16x32xf32>
    %cst_194 = arith.constant dense<0.000000e+00> : vector<16x256xf32>
    %253 = tpu.matmul %252, %251, %cst_194 {dimension_numbers = #tpu.dot_dimension_numbers<[1], [0], [0], [1], [0, 0, 1, 1], [], []>} : vector<16x32xf32>, vector<32x256xf32>, vector<16x256xf32> -> vector<16x256xf32>
    %c0_195 = arith.constant 0 : index
    %c0_196 = arith.constant 0 : index
    %254 = vector.load %arg13[%c0_195, %c0_196] : memref<16x1xf32, #tpu.memory_space<vmem>>, vector<16x1xf32>
    %255 = vector.broadcast %254 : vector<16x1xf32> to vector<16x256xf32>
    %256 = arith.addf %253, %255 : vector<16x256xf32>
    %c0_197 = arith.constant 0 : index
    %c0_198 = arith.constant 0 : index
    %c0_199 = arith.constant 0 : index
    %257 = vector.load %arg15[%c0_197, %c0_198, %c0_199] : memref<1x16x256xf32, #tpu.memory_space<vmem>>, vector<1x16x256xf32>
    %258 = vector.shape_cast %257 : vector<1x16x256xf32> to vector<16x256xf32>
    %259 = vector.shape_cast %256 : vector<16x256xf32> to vector<1x16x256xf32>
    tpu.vector_store %arg15[%c0_197, %c0_198, %c0_199], %259 {strides = array<i32>} : memref<1x16x256xf32, #tpu.memory_space<vmem>>, vector<1x16x256xf32>,
    return
  }
  func.func @transform_0(%arg0: i32) -> (i32, i32, i32) {
    %c0_i32 = arith.constant 0 : i32
    %c0_i32_0 = arith.constant 0 : i32
    %c0_i32_1 = arith.constant 0 : i32
    return %arg0, %c0_i32, %c0_i32_0 : i32, i32, i32
  }
  func.func @transform_1(%arg0: i32) -> (i32, i32) {
    %c0_i32 = arith.constant 0 : i32
    %c0_i32_0 = arith.constant 0 : i32
    %c0_i32_1 = arith.constant 0 : i32
    return %c0_i32, %c0_i32_0 : i32, i32
  }
  func.func @transform_2(%arg0: i32) -> (i32, i32) {
    %c0_i32 = arith.constant 0 : i32
    %c0_i32_0 = arith.constant 0 : i32
    %c0_i32_1 = arith.constant 0 : i32
    return %c0_i32, %c0_i32_0 : i32, i32
  }
  func.func @transform_3(%arg0: i32) -> (i32, i32) {
    %c0_i32 = arith.constant 0 : i32
    %c0_i32_0 = arith.constant 0 : i32
    %c0_i32_1 = arith.constant 0 : i32
    return %c0_i32, %c0_i32_0 : i32, i32
  }
  func.func @transform_4(%arg0: i32) -> (i32, i32) {
    %c0_i32 = arith.constant 0 : i32
    %c0_i32_0 = arith.constant 0 : i32
    %c0_i32_1 = arith.constant 0 : i32
    return %c0_i32, %c0_i32_0 : i32, i32
  }
  func.func @transform_5(%arg0: i32) -> (i32, i32) {
    %c0_i32 = arith.constant 0 : i32
    %c0_i32_0 = arith.constant 0 : i32
    %c0_i32_1 = arith.constant 0 : i32
    return %c0_i32, %c0_i32_0 : i32, i32
  }
  func.func @transform_6(%arg0: i32) -> (i32, i32) {
    %c0_i32 = arith.constant 0 : i32
    %c0_i32_0 = arith.constant 0 : i32
    %c0_i32_1 = arith.constant 0 : i32
    return %c0_i32, %c0_i32_0 : i32, i32
  }
  func.func @transform_7(%arg0: i32) -> (i32, i32) {
    %c0_i32 = arith.constant 0 : i32
    %c0_i32_0 = arith.constant 0 : i32
    %c0_i32_1 = arith.constant 0 : i32
    return %c0_i32, %c0_i32_0 : i32, i32
  }
  func.func @transform_8(%arg0: i32) -> (i32, i32) {
    %c0_i32 = arith.constant 0 : i32
    %c0_i32_0 = arith.constant 0 : i32
    %c0_i32_1 = arith.constant 0 : i32
    return %c0_i32, %c0_i32_0 : i32, i32
  }
  func.func @transform_9(%arg0: i32) -> (i32, i32) {
    %c0_i32 = arith.constant 0 : i32
    %c0_i32_0 = arith.constant 0 : i32
    %c0_i32_1 = arith.constant 0 : i32
    return %c0_i32, %c0_i32_0 : i32, i32
  }
  func.func @transform_10(%arg0: i32) -> (i32, i32) {
    %c0_i32 = arith.constant 0 : i32
    %c0_i32_0 = arith.constant 0 : i32
    %c0_i32_1 = arith.constant 0 : i32
    return %c0_i32, %c0_i32_0 : i32, i32
  }
  func.func @transform_11(%arg0: i32) -> (i32, i32) {
    %c0_i32 = arith.constant 0 : i32
    %c0_i32_0 = arith.constant 0 : i32
    %c0_i32_1 = arith.constant 0 : i32
    return %c0_i32, %c0_i32_0 : i32, i32
  }
  func.func @transform_12(%arg0: i32) -> (i32, i32) {
    %c0_i32 = arith.constant 0 : i32
    %c0_i32_0 = arith.constant 0 : i32
    %c0_i32_1 = arith.constant 0 : i32
    return %c0_i32, %c0_i32_0 : i32, i32
  }
  func.func @transform_13(%arg0: i32) -> (i32, i32) {
    %c0_i32 = arith.constant 0 : i32
    %c0_i32_0 = arith.constant 0 : i32
    %c0_i32_1 = arith.constant 0 : i32
    return %c0_i32, %c0_i32_0 : i32, i32
  }
  func.func @transform_14(%arg0: i32) -> (i32, i32, i32) {
    %c0_i32 = arith.constant 0 : i32
    %c0_i32_0 = arith.constant 0 : i32
    %c0_i32_1 = arith.constant 0 : i32
    return %arg0, %c0_i32, %c0_i32_0 : i32, i32, i32
  }
  func.func @transform_15(%arg0: i32) -> (i32, i32, i32) {
    %c0_i32 = arith.constant 0 : i32
    %c0_i32_0 = arith.constant 0 : i32
    %c0_i32_1 = arith.constant 0 : i32
    return %arg0, %c0_i32, %c0_i32_0 : i32, i32, i32
  }
}

</mosaic_0001>

<llo_original>
// kernel: atting_forward.1
$region0: #{atting_forward.1}
  #allocation0 [shape = 'u32[]', space=smem, size = 0x4, offset = 0x4, fixed_abs, tag = 'smem constant byte address 0x4 - core index']
  #allocation1 [shape = 'u32[72,128]{1,0:T(1,128)}', space=vmem, size = 0x9000, scoped, tag = 'internal scratch']
  #allocation2 [shape = 'f32[288,256]{1,0:T(8,128)}', space=vmem, size = 0x48000, scoped, tag = 'scratch operand']
  #allocation3 [shape = 'f32[32,256]{1,0:T(8,128)}', space=vmem, size = 0x8000, scoped, tag = 'scratch operand']
  %s0 = inlined_call_operand.vmem [shape: f32[2,3,256], index: 0, kind: input, shape index: {}]
  %s1 = inlined_call_operand.vmem [shape: f32[16,3], index: 1, kind: input, shape index: {}]
  %s2 = inlined_call_operand.vmem [shape: f32[16,1], index: 2, kind: input, shape index: {}]
  %s3 = inlined_call_operand.vmem [shape: f32[16,1], index: 3, kind: input, shape index: {}]
  %s4 = inlined_call_operand.vmem [shape: f32[16,144], index: 4, kind: input, shape index: {}]
  %s5 = inlined_call_operand.vmem [shape: f32[16,144], index: 5, kind: input, shape index: {}]
  %s6 = inlined_call_operand.vmem [shape: f32[16,288], index: 6, kind: input, shape index: {}]
  %s7 = inlined_call_operand.vmem [shape: f32[8,32], index: 7, kind: input, shape index: {}]
  %s8 = inlined_call_operand.vmem [shape: f32[8,1], index: 8, kind: input, shape index: {}]
  %s9 = inlined_call_operand.vmem [shape: f32[32,8], index: 9, kind: input, shape index: {}]
  %s10 = inlined_call_operand.vmem [shape: f32[32,1], index: 10, kind: input, shape index: {}]
  %s11 = inlined_call_operand.vmem [shape: f32[16,32], index: 11, kind: input, shape index: {}]
  %s12 = inlined_call_operand.vmem [shape: f32[16,1], index: 12, kind: input, shape index: {}]
  %s13 = inlined_call_operand.vmem [shape: f32[9,256], index: 13, kind: input, shape index: {}]
  %s14 = inlined_call_operand.vmem [shape: f32[2,16,256], index: 14, kind: output, shape index: {0}]
  %s15 = inlined_call_operand.vmem [shape: f32[2,16,256], index: 15, kind: output, shape index: {1}]
  %16 = xla_tuple %s14, %s15
  %s17 = sld [smem:[#allocation0]]
  $region97: #{atting_forward.1} parent=0
    _
  %s19 = ssub.s32 1, %s17
  %s20 = scalar_select 0, %s19, %s17
  loop: start=0, step=1, limit=4
  $region2: #{atting_forward.1} parent=0 // loop_pre_header
    _
  $region3: #{atting_forward.1} parent=0 // loop_header
    %s22 = sphi 0, %s26
    %p23 = scmp.ge.s32.totalorder %s22, 4
    %s32 = sphi 0, %s34
    %s35 = sphi 0, %s32
    %s36 = sphi 0, %s35
    %s52 = sphi 0, %s36
    %s56 = sphi 0, %s56
    %s58 = sphi 0, %s56
    %s59 = sphi 0, %s58
    %s73 = sphi 0, %s59
    %s77 = sphi 0, %s77
    %s79 = sphi 0, %s77
    %s80 = sphi 0, %s79
    %s94 = sphi 0, %s80
    %s98 = sphi 0, %s98
    %s100 = sphi 0, %s98
    %s101 = sphi 0, %s100
    %s115 = sphi 0, %s101
    %s119 = sphi 0, %s119
    %s121 = sphi 0, %s119
    %s122 = sphi 0, %s121
    %s136 = sphi 0, %s122
    %s140 = sphi 0, %s140
    %s142 = sphi 0, %s140
    %s143 = sphi 0, %s142
    %s157 = sphi 0, %s143
    %s161 = sphi 0, %s161
    %s163 = sphi 0, %s161
    %s164 = sphi 0, %s163
    %s178 = sphi 0, %s164
    %s182 = sphi 0, %s182
    %s184 = sphi 0, %s182
    %s185 = sphi 0, %s184
    %s199 = sphi 0, %s185
    %s203 = sphi 0, %s203
    %s205 = sphi 0, %s203
    %s206 = sphi 0, %s205
    %s220 = sphi 0, %s206
    %s224 = sphi 0, %s224
    %s226 = sphi 0, %s224
    %s227 = sphi 0, %s226
    %s241 = sphi 0, %s227
    %s245 = sphi 0, %s245
    %s247 = sphi 0, %s245
    %s248 = sphi 0, %s247
    %s262 = sphi 0, %s248
    %s266 = sphi 0, %s266
    %s268 = sphi 0, %s266
    %s269 = sphi 0, %s268
    %s283 = sphi 0, %s269
    %s287 = sphi 0, %s287
    %s289 = sphi 0, %s287
    %s290 = sphi 0, %s289
    %s304 = sphi 0, %s290
    %s308 = sphi 0, %s308
    %s310 = sphi 0, %s308
    %s311 = sphi 0, %s310
    %s325 = sphi 0, %s311
    %s331 = sphi 0, %s333
    %s334 = sphi 0, %s331
    %s335 = sphi 0, %s334
    %s351 = sphi 0, %s335
    %s357 = sphi 0, %s359
    %s360 = sphi 0, %s357
    %s361 = sphi 0, %s360
    %s377 = sphi 0, %s361
  $region4: #{atting_forward.1} parent=0 // loop_header_branch
    %25 = sbr.rel (%p23) target = $region8
  $region5: #{atting_forward.1} parent=0 // loop_body
    %s27 = ssub.s32 %s22, 1
    %s28 = ssub.s32 %s22, 2
    %s29 = sadd.s32 %s22, 1
    %s30 = ssub.s32 %s22, %s29
    %p31 = scmp.eq.s32.totalorder %s30, 0
    %s33 = sadd.s32 %s32, 1
    %s34 = scalar_select %p31, %s32, %s33
    %p37 = pneg %p31
    %p38 = scmp.eq.s32.totalorder %s22, 1
    %p39 = por %p37, %p38
    %p40 = scmp.ne.s32.totalorder %s32, %s35
    %p41 = scmp.eq.s32.totalorder %s22, 0
    %p42 = por %p40, %p41
    %p43 = scmp.ne.s32.totalorder %s32, %s35
    %p44 = scmp.eq.s32.totalorder %s27, 1
    %p45 = por %p43, %p44
    %p46 = scmp.ne.s32.totalorder %s35, %s36
    %p47 = scmp.eq.s32.totalorder %s27, 0
    %p48 = por %p46, %p47
    %p49 = scmp.ne.s32.totalorder %s35, %s36
    %p50 = scmp.eq.s32.totalorder %s28, 1
    %p51 = por %p49, %p50
    %p53 = scmp.ne.s32.totalorder %s36, %s52
    %p54 = scmp.eq.s32.totalorder %s28, 0
    %p55 = por %p53, %p54
    %s57 = sadd.s32 %s56, 1
    %p60 = scmp.eq.s32.totalorder %s22, 1
    %p61 = scmp.ne.s32.totalorder %s56, %s58
    %p62 = scmp.eq.s32.totalorder %s22, 0
    %p63 = por %p61, %p62
    %p64 = scmp.ne.s32.totalorder %s56, %s58
    %p65 = scmp.eq.s32.totalorder %s27, 1
    %p66 = por %p64, %p65
    %p67 = scmp.ne.s32.totalorder %s58, %s59
    %p68 = scmp.eq.s32.totalorder %s27, 0
    %p69 = por %p67, %p68
    %p70 = scmp.ne.s32.totalorder %s58, %s59
    %p71 = scmp.eq.s32.totalorder %s28, 1
    %p72 = por %p70, %p71
    %p74 = scmp.ne.s32.totalorder %s59, %s73
    %p75 = scmp.eq.s32.totalorder %s28, 0
    %p76 = por %p74, %p75
    %s78 = sadd.s32 %s77, 1
    %p81 = scmp.eq.s32.totalorder %s22, 1
    %p82 = scmp.ne.s32.totalorder %s77, %s79
    %p83 = scmp.eq.s32.totalorder %s22, 0
    %p84 = por %p82, %p83
    %p85 = scmp.ne.s32.totalorder %s77, %s79
    %p86 = scmp.eq.s32.totalorder %s27, 1
    %p87 = por %p85, %p86
    %p88 = scmp.ne.s32.totalorder %s79, %s80
    %p89 = scmp.eq.s32.totalorder %s27, 0
    %p90 = por %p88, %p89
    %p91 = scmp.ne.s32.totalorder %s79, %s80
    %p92 = scmp.eq.s32.totalorder %s28, 1
    %p93 = por %p91, %p92
    %p95 = scmp.ne.s32.totalorder %s80, %s94
    %p96 = scmp.eq.s32.totalorder %s28, 0
    %p97 = por %p95, %p96
    %s99 = sadd.s32 %s98, 1
    %p102 = scmp.eq.s32.totalorder %s22, 1
    %p103 = scmp.ne.s32.totalorder %s98, %s100
    %p104 = scmp.eq.s32.totalorder %s22, 0
    %p105 = por %p103, %p104
    %p106 = scmp.ne.s32.totalorder %s98, %s100
    %p107 = scmp.eq.s32.totalorder %s27, 1
    %p108 = por %p106, %p107
    %p109 = scmp.ne.s32.totalorder %s100, %s101
    %p110 = scmp.eq.s32.totalorder %s27, 0
    %p111 = por %p109, %p110
    %p112 = scmp.ne.s32.totalorder %s100, %s101
    %p113 = scmp.eq.s32.totalorder %s28, 1
    %p114 = por %p112, %p113
    %p116 = scmp.ne.s32.totalorder %s101, %s115
    %p117 = scmp.eq.s32.totalorder %s28, 0
    %p118 = por %p116, %p117
    %s120 = sadd.s32 %s119, 1
    %p123 = scmp.eq.s32.totalorder %s22, 1
    %p124 = scmp.ne.s32.totalorder %s119, %s121
    %p125 = scmp.eq.s32.totalorder %s22, 0
    %p126 = por %p124, %p125
    %p127 = scmp.ne.s32.totalorder %s119, %s121
    %p128 = scmp.eq.s32.totalorder %s27, 1
    %p129 = por %p127, %p128
    %p130 = scmp.ne.s32.totalorder %s121, %s122
    %p131 = scmp.eq.s32.totalorder %s27, 0
    %p132 = por %p130, %p131
    %p133 = scmp.ne.s32.totalorder %s121, %s122
    %p134 = scmp.eq.s32.totalorder %s28, 1
    %p135 = por %p133, %p134
    %p137 = scmp.ne.s32.totalorder %s122, %s136
    %p138 = scmp.eq.s32.totalorder %s28, 0
    %p139 = por %p137, %p138
    %s141 = sadd.s32 %s140, 1
    %p144 = scmp.eq.s32.totalorder %s22, 1
    %p145 = scmp.ne.s32.totalorder %s140, %s142
    %p146 = scmp.eq.s32.totalorder %s22, 0
    %p147 = por %p145, %p146
    %p148 = scmp.ne.s32.totalorder %s140, %s142
    %p149 = scmp.eq.s32.totalorder %s27, 1
    %p150 = por %p148, %p149
    %p151 = scmp.ne.s32.totalorder %s142, %s143
    %p152 = scmp.eq.s32.totalorder %s27, 0
    %p153 = por %p151, %p152
    %p154 = scmp.ne.s32.totalorder %s142, %s143
    %p155 = scmp.eq.s32.totalorder %s28, 1
    %p156 = por %p154, %p155
    %p158 = scmp.ne.s32.totalorder %s143, %s157
    %p159 = scmp.eq.s32.totalorder %s28, 0
    %p160 = por %p158, %p159
    %s162 = sadd.s32 %s161, 1
    %p165 = scmp.eq.s32.totalorder %s22, 1
    %p166 = scmp.ne.s32.totalorder %s161, %s163
    %p167 = scmp.eq.s32.totalorder %s22, 0
    %p168 = por %p166, %p167
    %p169 = scmp.ne.s32.totalorder %s161, %s163
    %p170 = scmp.eq.s32.totalorder %s27, 1
    %p171 = por %p169, %p170
    %p172 = scmp.ne.s32.totalorder %s163, %s164
    %p173 = scmp.eq.s32.totalorder %s27, 0
    %p174 = por %p172, %p173
    %p175 = scmp.ne.s32.totalorder %s163, %s164
    %p176 = scmp.eq.s32.totalorder %s28, 1
    %p177 = por %p175, %p176
    %p179 = scmp.ne.s32.totalorder %s164, %s178
    %p180 = scmp.eq.s32.totalorder %s28, 0
    %p181 = por %p179, %p180
    %s183 = sadd.s32 %s182, 1
    %p186 = scmp.eq.s32.totalorder %s22, 1
    %p187 = scmp.ne.s32.totalorder %s182, %s184
    %p188 = scmp.eq.s32.totalorder %s22, 0
    %p189 = por %p187, %p188
    %p190 = scmp.ne.s32.totalorder %s182, %s184
    %p191 = scmp.eq.s32.totalorder %s27, 1
    %p192 = por %p190, %p191
    %p193 = scmp.ne.s32.totalorder %s184, %s185
    %p194 = scmp.eq.s32.totalorder %s27, 0
    %p195 = por %p193, %p194
    %p196 = scmp.ne.s32.totalorder %s184, %s185
    %p197 = scmp.eq.s32.totalorder %s28, 1
    %p198 = por %p196, %p197
    %p200 = scmp.ne.s32.totalorder %s185, %s199
    %p201 = scmp.eq.s32.totalorder %s28, 0
    %p202 = por %p200, %p201
    %s204 = sadd.s32 %s203, 1
    %p207 = scmp.eq.s32.totalorder %s22, 1
    %p208 = scmp.ne.s32.totalorder %s203, %s205
    %p209 = scmp.eq.s32.totalorder %s22, 0
    %p210 = por %p208, %p209
    %p211 = scmp.ne.s32.totalorder %s203, %s205
    %p212 = scmp.eq.s32.totalorder %s27, 1
    %p213 = por %p211, %p212
    %p214 = scmp.ne.s32.totalorder %s205, %s206
    %p215 = scmp.eq.s32.totalorder %s27, 0
    %p216 = por %p214, %p215
    %p217 = scmp.ne.s32.totalorder %s205, %s206
    %p218 = scmp.eq.s32.totalorder %s28, 1
    %p219 = por %p217, %p218
    %p221 = scmp.ne.s32.totalorder %s206, %s220
    %p222 = scmp.eq.s32.totalorder %s28, 0
    %p223 = por %p221, %p222
    %s225 = sadd.s32 %s224, 1
    %p228 = scmp.eq.s32.totalorder %s22, 1
    %p229 = scmp.ne.s32.totalorder %s224, %s226
    %p230 = scmp.eq.s32.totalorder %s22, 0
    %p231 = por %p229, %p230
    %p232 = scmp.ne.s32.totalorder %s224, %s226
    %p233 = scmp.eq.s32.totalorder %s27, 1
    %p234 = por %p232, %p233
    %p235 = scmp.ne.s32.totalorder %s226, %s227
    %p236 = scmp.eq.s32.totalorder %s27, 0
    %p237 = por %p235, %p236
    %p238 = scmp.ne.s32.totalorder %s226, %s227
    %p239 = scmp.eq.s32.totalorder %s28, 1
    %p240 = por %p238, %p239
    %p242 = scmp.ne.s32.totalorder %s227, %s241
    %p243 = scmp.eq.s32.totalorder %s28, 0
    %p244 = por %p242, %p243
    %s246 = sadd.s32 %s245, 1
    %p249 = scmp.eq.s32.totalorder %s22, 1
    %p250 = scmp.ne.s32.totalorder %s245, %s247
    %p251 = scmp.eq.s32.totalorder %s22, 0
    %p252 = por %p250, %p251
    %p253 = scmp.ne.s32.totalorder %s245, %s247
    %p254 = scmp.eq.s32.totalorder %s27, 1
    %p255 = por %p253, %p254
    %p256 = scmp.ne.s32.totalorder %s247, %s248
    %p257 = scmp.eq.s32.totalorder %s27, 0
    %p258 = por %p256, %p257
    %p259 = scmp.ne.s32.totalorder %s247, %s248
    %p260 = scmp.eq.s32.totalorder %s28, 1
    %p261 = por %p259, %p260
    %p263 = scmp.ne.s32.totalorder %s248, %s262
    %p264 = scmp.eq.s32.totalorder %s28, 0
    %p265 = por %p263, %p264
    %s267 = sadd.s32 %s266, 1
    %p270 = scmp.eq.s32.totalorder %s22, 1
    %p271 = scmp.ne.s32.totalorder %s266, %s268
    %p272 = scmp.eq.s32.totalorder %s22, 0
    %p273 = por %p271, %p272
    %p274 = scmp.ne.s32.totalorder %s266, %s268
    %p275 = scmp.eq.s32.totalorder %s27, 1
    %p276 = por %p274, %p275
    %p277 = scmp.ne.s32.totalorder %s268, %s269
    %p278 = scmp.eq.s32.totalorder %s27, 0
    %p279 = por %p277, %p278
    %p280 = scmp.ne.s32.totalorder %s268, %s269
    %p281 = scmp.eq.s32.totalorder %s28, 1
    %p282 = por %p280, %p281
    %p284 = scmp.ne.s32.totalorder %s269, %s283
    %p285 = scmp.eq.s32.totalorder %s28, 0
    %p286 = por %p284, %p285
    %s288 = sadd.s32 %s287, 1
    %p291 = scmp.eq.s32.totalorder %s22, 1
    %p292 = scmp.ne.s32.totalorder %s287, %s289
    %p293 = scmp.eq.s32.totalorder %s22, 0
    %p294 = por %p292, %p293
    %p295 = scmp.ne.s32.totalorder %s287, %s289
    %p296 = scmp.eq.s32.totalorder %s27, 1
    %p297 = por %p295, %p296
    %p298 = scmp.ne.s32.totalorder %s289, %s290
    %p299 = scmp.eq.s32.totalorder %s27, 0
    %p300 = por %p298, %p299
    %p301 = scmp.ne.s32.totalorder %s289, %s290
    %p302 = scmp.eq.s32.totalorder %s28, 1
    %p303 = por %p301, %p302
    %p305 = scmp.ne.s32.totalorder %s290, %s304
    %p306 = scmp.eq.s32.totalorder %s28, 0
    %p307 = por %p305, %p306
    %s309 = sadd.s32 %s308, 1
    %p312 = scmp.eq.s32.totalorder %s22, 1
    %p313 = scmp.ne.s32.totalorder %s308, %s310
    %p314 = scmp.eq.s32.totalorder %s22, 0
    %p315 = por %p313, %p314
    %p316 = scmp.ne.s32.totalorder %s308, %s310
    %p317 = scmp.eq.s32.totalorder %s27, 1
    %p318 = por %p316, %p317
    %p319 = scmp.ne.s32.totalorder %s310, %s311
    %p320 = scmp.eq.s32.totalorder %s27, 0
    %p321 = por %p319, %p320
    %p322 = scmp.ne.s32.totalorder %s310, %s311
    %p323 = scmp.eq.s32.totalorder %s28, 1
    %p324 = por %p322, %p323
    %p326 = scmp.ne.s32.totalorder %s311, %s325
    %p327 = scmp.eq.s32.totalorder %s28, 0
    %p328 = por %p326, %p327
    %s329 = ssub.s32 %s22, %s29
    %p330 = scmp.eq.s32.totalorder %s329, 0
    %s332 = sadd.s32 %s331, 1
    %s333 = scalar_select %p330, %s331, %s332
    %p336 = pneg %p330
    %p337 = scmp.eq.s32.totalorder %s22, 1
    %p338 = por %p336, %p337
    %p339 = scmp.ne.s32.totalorder %s331, %s334
    %p340 = scmp.eq.s32.totalorder %s22, 0
    %p341 = por %p339, %p340
    %p342 = scmp.ne.s32.totalorder %s331, %s334
    %p343 = scmp.eq.s32.totalorder %s27, 1
    %p344 = por %p342, %p343
    %p345 = scmp.ne.s32.totalorder %s334, %s335
    %p346 = scmp.eq.s32.totalorder %s27, 0
    %p347 = por %p345, %p346
    %p348 = scmp.ne.s32.totalorder %s334, %s335
    %p349 = scmp.eq.s32.totalorder %s28, 1
    %p350 = por %p348, %p349
    %p352 = scmp.ne.s32.totalorder %s335, %s351
    %p353 = scmp.eq.s32.totalorder %s28, 0
    %p354 = por %p352, %p353
    %s355 = ssub.s32 %s22, %s29
    %p356 = scmp.eq.s32.totalorder %s355, 0
    %s358 = sadd.s32 %s357, 1
    %s359 = scalar_select %p356, %s357, %s358
    %p362 = pneg %p356
    %p363 = scmp.eq.s32.totalorder %s22, 1
    %p364 = por %p362, %p363
    %p365 = scmp.ne.s32.totalorder %s357, %s360
    %p366 = scmp.eq.s32.totalorder %s22, 0
    %p367 = por %p365, %p366
    %p368 = scmp.ne.s32.totalorder %s357, %s360
    %p369 = scmp.eq.s32.totalorder %s27, 1
    %p370 = por %p368, %p369
    %p371 = scmp.ne.s32.totalorder %s360, %s361
    %p372 = scmp.eq.s32.totalorder %s27, 0
    %p373 = por %p371, %p372
    %p374 = scmp.ne.s32.totalorder %s360, %s361
    %p375 = scmp.eq.s32.totalorder %s28, 1
    %p376 = por %p374, %p375
    %p378 = scmp.ne.s32.totalorder %s361, %s377
    %p379 = scmp.eq.s32.totalorder %s28, 0
    %p380 = por %p378, %p379
    %p381 = scmp.le.s32.totalorder 1, %s22
    %p382 = scmp.lt.s32.totalorder %s22, 3
    %p383 = pnand %p381, %p382
    %p384 = pneg %p383
    // Predicated region
    $region9: #{atting_forward.1} parent=5 // pred_check
      _
    $region10: #{atting_forward.1} parent=5 // pred_check_branch
      %386 = sbr.rel (%p383) target = $region12
    $region11: #{atting_forward.1} parent=5 // pred_region
      %s387 = ssub.s32 %s22, 1
      // Predicated region
      $region13: #{atting_forward.1} parent=11 // pred_check
        %p388 = pneg %p69
      $region14: #{atting_forward.1} parent=11 // pred_check_branch
        %390 = sbr.rel (%p388) target = $region16
      $region15: #{atting_forward.1} parent=11 // pred_region
        _
      $region16: #{atting_forward.1} parent=11 // pred_fallthru
        _
      // Predicated region
      $region17: #{atting_forward.1} parent=11 // pred_check
        %p391 = pneg %p90
      $region18: #{atting_forward.1} parent=11 // pred_check_branch
        %393 = sbr.rel (%p391) target = $region20
      $region19: #{atting_forward.1} parent=11 // pred_region
        _
      $region20: #{atting_forward.1} parent=11 // pred_fallthru
        _
      // Predicated region
      $region21: #{atting_forward.1} parent=11 // pred_check
        %p394 = pneg %p111
      $region22: #{atting_forward.1} parent=11 // pred_check_branch
        %396 = sbr.rel (%p394) target = $region24
      $region23: #{atting_forward.1} parent=11 // pred_region
        _
      $region24: #{atting_forward.1} parent=11 // pred_fallthru
        _
      // Predicated region
      $region25: #{atting_forward.1} parent=11 // pred_check
        %p397 = pneg %p132
      $region26: #{atting_forward.1} parent=11 // pred_check_branch
        %399 = sbr.rel (%p397) target = $region28
      $region27: #{atting_forward.1} parent=11 // pred_region
        _
      $region28: #{atting_forward.1} parent=11 // pred_fallthru
        _
      // Predicated region
      $region29: #{atting_forward.1} parent=11 // pred_check
        %p400 = pneg %p153
      $region30: #{atting_forward.1} parent=11 // pred_check_branch
        %402 = sbr.rel (%p400) target = $region32
      $region31: #{atting_forward.1} parent=11 // pred_region
        _
      $region32: #{atting_forward.1} parent=11 // pred_fallthru
        _
      // Predicated region
      $region33: #{atting_forward.1} parent=11 // pred_check
        %p403 = pneg %p174
      $region34: #{atting_forward.1} parent=11 // pred_check_branch
        %405 = sbr.rel (%p403) target = $region36
      $region35: #{atting_forward.1} parent=11 // pred_region
        _
      $region36: #{atting_forward.1} parent=11 // pred_fallthru
        _
      // Predicated region
      $region37: #{atting_forward.1} parent=11 // pred_check
        %p406 = pneg %p195
      $region38: #{atting_forward.1} parent=11 // pred_check_branch
        %408 = sbr.rel (%p406) target = $region40
      $region39: #{atting_forward.1} parent=11 // pred_region
        _
      $region40: #{atting_forward.1} parent=11 // pred_fallthru
        _
      // Predicated region
      $region41: #{atting_forward.1} parent=11 // pred_check
        %p409 = pneg %p216
      $region42: #{atting_forward.1} parent=11 // pred_check_branch
        %411 = sbr.rel (%p409) target = $region44
      $region43: #{atting_forward.1} parent=11 // pred_region
        _
      $region44: #{atting_forward.1} parent=11 // pred_fallthru
        _
      // Predicated region
      $region45: #{atting_forward.1} parent=11 // pred_check
        %p412 = pneg %p237
      $region46: #{atting_forward.1} parent=11 // pred_check_branch
        %414 = sbr.rel (%p412) target = $region48
      $region47: #{atting_forward.1} parent=11 // pred_region
        _
      $region48: #{atting_forward.1} parent=11 // pred_fallthru
        _
      // Predicated region
      $region49: #{atting_forward.1} parent=11 // pred_check
        %p415 = pneg %p258
      $region50: #{atting_forward.1} parent=11 // pred_check_branch
        %417 = sbr.rel (%p415) target = $region52
      $region51: #{atting_forward.1} parent=11 // pred_region
        _
      $region52: #{atting_forward.1} parent=11 // pred_fallthru
        _
      // Predicated region
      $region53: #{atting_forward.1} parent=11 // pred_check
        %p418 = pneg %p279
      $region54: #{atting_forward.1} parent=11 // pred_check_branch
        %420 = sbr.rel (%p418) target = $region56
      $region55: #{atting_forward.1} parent=11 // pred_region
        _
      $region56: #{atting_forward.1} parent=11 // pred_fallthru
        _
      // Predicated region
      $region57: #{atting_forward.1} parent=11 // pred_check
        %p421 = pneg %p300
      $region58: #{atting_forward.1} parent=11 // pred_check_branch
        %423 = sbr.rel (%p421) target = $region60
      $region59: #{atting_forward.1} parent=11 // pred_region
        _
      $region60: #{atting_forward.1} parent=11 // pred_fallthru
        _
      // Predicated region
      $region61: #{atting_forward.1} parent=11 // pred_check
        %p424 = pneg %p321
      $region62: #{atting_forward.1} parent=11 // pred_check_branch
        %426 = sbr.rel (%p424) target = $region64
      $region63: #{atting_forward.1} parent=11 // pred_region
        _
      $region64: #{atting_forward.1} parent=11 // pred_fallthru
        _
    $region12: #{atting_forward.1} parent=5 // pred_fallthru
      _
    %p427 = scmp.lt.s32.totalorder %s22, 2
    // Predicated region
    $region65: #{atting_forward.1} parent=5 // pred_check
      %p428 = pneg %p427
    $region66: #{atting_forward.1} parent=5 // pred_check_branch
      %430 = sbr.rel (%p428) target = $region68
    $region67: #{atting_forward.1} parent=5 // pred_region
      // Predicated region
      $region69: #{atting_forward.1} parent=67 // pred_check
        %p431 = pneg %p42
      $region70: #{atting_forward.1} parent=67 // pred_check_branch
        %433 = sbr.rel (%p431) target = $region72
      $region71: #{atting_forward.1} parent=67 // pred_region
        %p434 = scmp.lt.s32.totalorder %s22, 1
        %s435 = scalar_select %p434, %s22, 1
        %s436 = smul.addr %s435, 2
        %s437 = smul.addr %s436, 4
        %s438 = scalar_lea.vmem %s0, %s437
      $region72: #{atting_forward.1} parent=67 // pred_fallthru
        _
    $region68: #{atting_forward.1} parent=5 // pred_fallthru
      _
    %p439 = scmp.le.s32.totalorder 1, %s22
    %p440 = scmp.lt.s32.totalorder %s22, 3
    %p441 = pnand %p439, %p440
    %p442 = pneg %p441
    // Predicated region
    $region73: #{atting_forward.1} parent=5 // pred_check
      _
    $region74: #{atting_forward.1} parent=5 // pred_check_branch
      %444 = sbr.rel (%p441) target = $region76
    $region75: #{atting_forward.1} parent=5 // pred_region
      %s445 = ssub.s32 %s22, 1
      %p446 = scmp.lt.s32.totalorder %s27, 1
      %s447 = scalar_select %p446, %s27, 1
      %s448 = smul.addr %s447, 2
      %s449 = smul.addr %s448, 4
      %s450 = scalar_lea.vmem %s0, %s449
      %p451 = pneg %p48
      %p452 = pneg %p45
      %p453 = pneg %p69
      %p454 = pneg %p66
      %p455 = pneg %p90
      %p456 = pneg %p87
      %p457 = pneg %p111
      %p458 = pneg %p108
      %p459 = pneg %p132
      %p460 = pneg %p129
      %p461 = pneg %p153
      %p462 = pneg %p150
      %p463 = pneg %p174
      %p464 = pneg %p171
      %p465 = pneg %p195
      %p466 = pneg %p192
      %p467 = pneg %p216
      %p468 = pneg %p213
      %p469 = pneg %p237
      %p470 = pneg %p234
      %p471 = pneg %p258
      %p472 = pneg %p255
      %p473 = pneg %p279
      %p474 = pneg %p276
      %p475 = pneg %p300
      %p476 = pneg %p297
      %p477 = pneg %p321
      %p478 = pneg %p318
      %p479 = pneg %p347
      %p480 = pneg %p344
      %p481 = scmp.lt.s32.totalorder %s27, 1
      %s482 = scalar_select %p481, %s27, 1
      %s483 = smul.addr %s482, 4
      %s484 = smul.addr %s483, 8
      %s485 = scalar_lea.vmem %s14, %s484
      %p486 = pneg %p373
      %p487 = pneg %p370
      %p488 = scmp.lt.s32.totalorder %s27, 1
      %s489 = scalar_select %p488, %s27, 1
      %s490 = smul.addr %s489, 4
      %s491 = smul.addr %s490, 8
      %s492 = scalar_lea.vmem %s15, %s491
      %p493 = scmp.lt.s32.totalorder %s27, 1
      %s494 = scalar_select %p493, %s27, 1
      %s495 = smul.addr %s494, 2
      %s496 = smul.addr %s495, 4
      %s497 = scalar_lea.vmem %s0, %s496
      %p498 = scmp.lt.s32.totalorder %s27, 1
      %s499 = scalar_select %p498, %s27, 1
      %s500 = smul.addr %s499, 4
      %s501 = smul.addr %s500, 8
      %s502 = scalar_lea.vmem %s14, %s501
      %p503 = scmp.lt.s32.totalorder %s27, 1
      %s504 = scalar_select %p503, %s27, 1
      %s505 = smul.addr %s504, 4
      %s506 = smul.addr %s505, 8
      %s507 = scalar_lea.vmem %s15, %s506
      %v508 = vld [vmem:[%s497] sm:$0x77]
      %v509 = vld [vmem:[%s1] sm:$0xff]
      %v510 = vld [vmem:[%s1 + $0x8] sm:$0xff]
      %512 = vst [vmem:[#allocation1] ss:$2 sm:$0xff] %v508
      %v513 = vld.sshfl [vmem:[#allocation1] sm:$0xff pattern:$0x75316420]
      %v514 = vld.sshfl [vmem:[#allocation1 + $0x8] sm:$0xff pattern:$0x75316420]
      %vm515 = vcmask 23552
      %v517 = vsel %vm515, %v509, 0
      %v520 = vsel %vm515, %v510, 0
      %vm522 = vcmask 1042432
      %v523 = vsel %vm522, %v513, 0
      %v525 = vsel %vm522, %v514, 0
      %527 = vmatpush.msra.mxu0 0.0
      %528 = vmatpush.msra.mxu0 0.0
      %529 = vmatpush.msra.mxu0 0.0
      %530 = vmatpush.msra.mxu0 0.0
      %531 = vmatpush.msra.mxu0 0.0
      %532 = vmatpush.msra.mxu0 0.0
      %533 = vmatpush.msra.mxu0 0.0
      %534 = vmatpush.msra.mxu0 0.0
      %535 = vmatpush.msra.mxu0 0.0
      %536 = vmatpush.msra.mxu0 0.0
      %537 = vmatpush.msra.mxu0 0.0
      %538 = vmatpush.msra.mxu0 0.0
      %539 = vmatpush.msra.mxu0 0.0
      %540 = vmatpush.msra.mxu0 0.0
      %541 = vmatpush.msra.mxu0 0.0
      %542 = vmatpush.msra.mxu0 %v523
      %543 = vmatmul.f32.gmra.mxu0 %v517
      %v544 = vpop.f32.mrf.mxu0
      %v545 = vadd.f32 0.0, %v544
      %546 = vmatmul.f32.gmra.mxu0 %v520
      %v547 = vpop.f32.mrf.mxu0
      %v548 = vadd.f32 0.0, %v547
      %549 = vdwg.mxu0
      %550 = vmatpush.msra.mxu0 0.0
      %551 = vmatpush.msra.mxu0 0.0
      %552 = vmatpush.msra.mxu0 0.0
      %553 = vmatpush.msra.mxu0 0.0
      %554 = vmatpush.msra.mxu0 0.0
      %555 = vmatpush.msra.mxu0 0.0
      %556 = vmatpush.msra.mxu0 0.0
      %557 = vmatpush.msra.mxu0 0.0
      %558 = vmatpush.msra.mxu0 0.0
      %559 = vmatpush.msra.mxu0 0.0
      %560 = vmatpush.msra.mxu0 0.0
      %561 = vmatpush.msra.mxu0 0.0
      %562 = vmatpush.msra.mxu0 0.0
      %563 = vmatpush.msra.mxu0 0.0
      %564 = vmatpush.msra.mxu0 0.0
      %565 = vmatpush.msra.mxu0 %v525
      %566 = vmatmul.f32.gmra.mxu0 %v517
      %v567 = vpop.f32.mrf.mxu0
      %v568 = vadd.f32 0.0, %v567
      %569 = vmatmul.f32.gmra.mxu0 %v520
      %v570 = vpop.f32.mrf.mxu0
      %v571 = vadd.f32 0.0, %v570
      %572 = vdwg.mxu0
      %v573 = vadd.f32 %v545, %v568
      %574 = vadd.xlane.f32.xlu0 %v573
      %v575 = vpop.xlane.xlu0 %574
      %v576 = vadd.f32 %v548, %v571
      %577 = vadd.xlane.f32.xlu0 %v576
      %v578 = vpop.xlane.xlu0 %577
      %v579 = vrcp.pop 256.0
      %v580 = vmul.f32 256.0, %v579
      %v581 = vsub.f32 1.0, %v580
      %v582 = vmul.f32 %v579, %v581
      %v583 = vadd.f32 %v579, %v582
      %vm584 = vweird.f32 %v579
      %v585 = vsel %vm584, %v579, %v583
      %v586 = vmul.f32 %v575, %v585
      %v587 = vmul.f32 %v578, %v585
      %v588 = vsub.f32 %v545, %v586
      %v589 = vsub.f32 %v568, %v586
      %v590 = vsub.f32 %v548, %v587
      %v591 = vsub.f32 %v571, %v587
      %v592 = vmul.f32 %v588, %v588
      %v593 = vmul.f32 %v589, %v589
      %v594 = vmul.f32 %v590, %v590
      %v595 = vmul.f32 %v591, %v591
      %v596 = vadd.f32 %v592, %v593
      %597 = vadd.xlane.f32.xlu0 %v596
      %v598 = vpop.xlane.xlu0 %597
      %v599 = vadd.f32 %v594, %v595
      %600 = vadd.xlane.f32.xlu0 %v599
      %v601 = vpop.xlane.xlu0 %600
      %v602 = vmul.f32 %v598, %v585
      %v603 = vmul.f32 %v601, %v585
      %v604 = vadd.f32 %v602, 1e-05
      %v605 = vadd.f32 %v603, 1e-05
      %v606 = vrsqrt.pop %v604
      %v607 = vmul.f32 %v606, %v604
      %v608 = vmul.f32 %v607, %v606
      %v609 = vmul.f32 0.5, %v608
      %v610 = vsub.f32 1.5, %v609
      %v611 = vmul.f32 %v606, %v610
      %vm612 = vweird.f32 %v604
      %vm613 = vweird.f32 %v606
      %vm614 = vmor %vm612, %vm613
      %v615 = vsel %vm614, %v606, %v611
      %v616 = vrsqrt.pop %v605
      %v617 = vmul.f32 %v616, %v605
      %v618 = vmul.f32 %v617, %v616
      %v619 = vmul.f32 0.5, %v618
      %v620 = vsub.f32 1.5, %v619
      %v621 = vmul.f32 %v616, %v620
      %vm622 = vweird.f32 %v605
      %vm623 = vweird.f32 %v616
      %vm624 = vmor %vm622, %vm623
      %v625 = vsel %vm624, %v616, %v621
      %v626 = vmul.f32 %v588, %v615
      %v627 = vmul.f32 %v589, %v615
      %v628 = vmul.f32 %v590, %v625
      %v629 = vmul.f32 %v591, %v625
      %v630 = vld [vmem:[%s2] sm:$0xff]
      %v631 = vld [vmem:[%s2 + $0x8] sm:$0xff]
      %633 = vset.pattern.permute.xlu0 0
      %634 = vperm.xlu0 %633, %v630
      %v635 = vpop.permute.xlu0 %634
      %638 = vset.pattern.permute.xlu0 0
      %639 = vperm.xlu0 %638, %v631
      %v640 = vpop.permute.xlu0 %639
      %v642 = vmul.f32 %v626, %v635
      %v643 = vmul.f32 %v627, %v635
      %v644 = vmul.f32 %v628, %v640
      %v645 = vmul.f32 %v629, %v640
      %v646 = vld [vmem:[%s3] sm:$0xff]
      %v647 = vld [vmem:[%s3 + $0x8] sm:$0xff]
      %649 = vset.pattern.permute.xlu0 0
      %650 = vperm.xlu0 %649, %v646
      %v651 = vpop.permute.xlu0 %650
      %654 = vset.pattern.permute.xlu0 0
      %655 = vperm.xlu0 %654, %v647
      %v656 = vpop.permute.xlu0 %655
      %v658 = vadd.f32 %v642, %v651
      %v659 = vadd.f32 %v643, %v651
      %v660 = vadd.f32 %v644, %v656
      %v661 = vadd.f32 %v645, %v656
      %662 = vst [vmem:[%s507] sm:$0xff] %v658
      %663 = vst [vmem:[%s507 + $0x8] sm:$0xff] %v659
      %664 = vst [vmem:[%s507 + $0x10] sm:$0xff] %v660
      %665 = vst [vmem:[%s507 + $0x18] sm:$0xff] %v661
      %v666 = vld [vmem:[%s4] sm:$0xff]
      %v667 = vld [vmem:[%s4 + $0x8] sm:$0xff]
      %v668 = vld [vmem:[%s4 + $0x10] sm:$0xff]
      %v669 = vld [vmem:[%s4 + $0x18] sm:$0xff]
      %670 = vrot.lane.b32.xlu0 %v658, 17
      %v671 = vpop.permute.xlu0 %670
      %672 = vrot.lane.b32.xlu0 %v660, 17
      %v673 = vpop.permute.xlu0 %672
      %674 = vrot.lane.b32.xlu0 %v659, 17
      %v675 = vpop.permute.xlu0 %674
      %676 = vrot.lane.b32.xlu0 %v661, 17
      %v677 = vpop.permute.xlu0 %676
      %v678 = vlaneseq
      %v679 = vand.u32 %v678, 127
      %vm680 = vcmp.lt.s32.totalorder %v679, 17
      %v681 = vsel %vm680, %v671, %v675
      %v682 = vsel %vm680, %v673, %v677
      %v683 = vsel %vm680, %v675, %v671
      %v684 = vsel %vm680, %v677, %v673
      %v685 = vld [vmem:[%s13] ss:$8 sm:$0x3]
      %v687 = vperm.slane %v685, 0
      %v688 = vperm.slane %v685, 1
      %v691 = vmul.f32 %v683, %v687
      %v692 = vmul.f32 %v681, %v688
      %v693 = vmul.f32 %v684, %v687
      %v694 = vmul.f32 %v682, %v688
      %695 = vst [vmem:[#allocation2] sm:$0xff] %v691
      %696 = vst [vmem:[#allocation2 + $0x8] sm:$0xff] %v692
      %697 = vst [vmem:[#allocation2 + $0x10] sm:$0xff] %v693
      %698 = vst [vmem:[#allocation2 + $0x18] sm:$0xff] %v694
      %699 = vrot.lane.b32.xlu0 %v658, 16
      %v700 = vpop.permute.xlu0 %699
      %701 = vrot.lane.b32.xlu0 %v660, 16
      %v702 = vpop.permute.xlu0 %701
      %703 = vrot.lane.b32.xlu0 %v659, 16
      %v704 = vpop.permute.xlu0 %703
      %705 = vrot.lane.b32.xlu0 %v661, 16
      %v706 = vpop.permute.xlu0 %705
      %vm707 = vcmp.lt.s32.totalorder %v679, 16
      %v708 = vsel %vm707, %v700, %v704
      %v709 = vsel %vm707, %v702, %v706
      %v710 = vsel %vm707, %v704, %v700
      %v711 = vsel %vm707, %v706, %v702
      %s712 = scalar_lea.vmem %s13, 1
      %v713 = vld [vmem:[%s712] ss:$8 sm:$0x3]
      %v715 = vperm.slane %v713, 0
      %v716 = vperm.slane %v713, 1
      %v719 = vmul.f32 %v710, %v715
      %v720 = vmul.f32 %v708, %v716
      %v721 = vmul.f32 %v711, %v715
      %v722 = vmul.f32 %v709, %v716
      %723 = vst [vmem:[#allocation2 + $0x20] sm:$0xff] %v719
      %724 = vst [vmem:[#allocation2 + $0x28] sm:$0xff] %v720
      %725 = vst [vmem:[#allocation2 + $0x30] sm:$0xff] %v721
      %726 = vst [vmem:[#allocation2 + $0x38] sm:$0xff] %v722
      %727 = vrot.lane.b32.xlu0 %v658, 15
      %v728 = vpop.permute.xlu0 %727
      %729 = vrot.lane.b32.xlu0 %v660, 15
      %v730 = vpop.permute.xlu0 %729
      %731 = vrot.lane.b32.xlu0 %v659, 15
      %v732 = vpop.permute.xlu0 %731
      %733 = vrot.lane.b32.xlu0 %v661, 15
      %v734 = vpop.permute.xlu0 %733
      %vm735 = vcmp.lt.s32.totalorder %v679, 15
      %v736 = vsel %vm735, %v728, %v732
      %v737 = vsel %vm735, %v730, %v734
      %v738 = vsel %vm735, %v732, %v728
      %v739 = vsel %vm735, %v734, %v730
      %s740 = scalar_lea.vmem %s13, 2
      %v741 = vld [vmem:[%s740] ss:$8 sm:$0x3]
      %v743 = vperm.slane %v741, 0
      %v744 = vperm.slane %v741, 1
      %v747 = vmul.f32 %v738, %v743
      %v748 = vmul.f32 %v736, %v744
      %v749 = vmul.f32 %v739, %v743
      %v750 = vmul.f32 %v737, %v744
      %751 = vst [vmem:[#allocation2 + $0x40] sm:$0xff] %v747
      %752 = vst [vmem:[#allocation2 + $0x48] sm:$0xff] %v748
      %753 = vst [vmem:[#allocation2 + $0x50] sm:$0xff] %v749
      %754 = vst [vmem:[#allocation2 + $0x58] sm:$0xff] %v750
      %755 = vrot.lane.b32.xlu0 %v658, 1
      %v756 = vpop.permute.xlu0 %755
      %757 = vrot.lane.b32.xlu0 %v660, 1
      %v758 = vpop.permute.xlu0 %757
      %759 = vrot.lane.b32.xlu0 %v659, 1
      %v760 = vpop.permute.xlu0 %759
      %761 = vrot.lane.b32.xlu0 %v661, 1
      %v762 = vpop.permute.xlu0 %761
      %vm763 = vcmp.lt.s32.totalorder %v679, 1
      %v764 = vsel %vm763, %v756, %v760
      %v765 = vsel %vm763, %v758, %v762
      %v766 = vsel %vm763, %v760, %v756
      %v767 = vsel %vm763, %v762, %v758
      %s768 = scalar_lea.vmem %s13, 3
      %v769 = vld [vmem:[%s768] ss:$8 sm:$0x3]
      %v771 = vperm.slane %v769, 0
      %v772 = vperm.slane %v769, 1
      %v775 = vmul.f32 %v766, %v771
      %v776 = vmul.f32 %v764, %v772
      %v777 = vmul.f32 %v767, %v771
      %v778 = vmul.f32 %v765, %v772
      %779 = vst [vmem:[#allocation2 + $0x60] sm:$0xff] %v775
      %780 = vst [vmem:[#allocation2 + $0x68] sm:$0xff] %v776
      %781 = vst [vmem:[#allocation2 + $0x70] sm:$0xff] %v777
      %782 = vst [vmem:[#allocation2 + $0x78] sm:$0xff] %v778
      %783 = vst [vmem:[#allocation2 + $0x80] sm:$0xff] %v658
      %784 = vst [vmem:[#allocation2 + $0x88] sm:$0xff] %v659
      %785 = vst [vmem:[#allocation2 + $0x90] sm:$0xff] %v660
      %786 = vst [vmem:[#allocation2 + $0x98] sm:$0xff] %v661
      %787 = vrot.lane.b32.xlu0 %v658, 127
      %v788 = vpop.permute.xlu0 %787
      %789 = vrot.lane.b32.xlu0 %v660, 127
      %v790 = vpop.permute.xlu0 %789
      %791 = vrot.lane.b32.xlu0 %v659, 127
      %v792 = vpop.permute.xlu0 %791
      %793 = vrot.lane.b32.xlu0 %v661, 127
      %v794 = vpop.permute.xlu0 %793
      %vm795 = vcmp.lt.s32.totalorder %v679, 127
      %v796 = vsel %vm795, %v788, %v792
      %v797 = vsel %vm795, %v790, %v794
      %v798 = vsel %vm795, %v792, %v788
      %v799 = vsel %vm795, %v794, %v790
      %s800 = scalar_lea.vmem %s13, 5
      %v801 = vld [vmem:[%s800] ss:$8 sm:$0x3]
      %v803 = vperm.slane %v801, 0
      %v804 = vperm.slane %v801, 1
      %v807 = vmul.f32 %v796, %v803
      %v808 = vmul.f32 %v798, %v804
      %v809 = vmul.f32 %v797, %v803
      %v810 = vmul.f32 %v799, %v804
      %811 = vst [vmem:[#allocation2 + $0xa0] sm:$0xff] %v807
      %812 = vst [vmem:[#allocation2 + $0xa8] sm:$0xff] %v808
      %813 = vst [vmem:[#allocation2 + $0xb0] sm:$0xff] %v809
      %814 = vst [vmem:[#allocation2 + $0xb8] sm:$0xff] %v810
      %815 = vrot.lane.b32.xlu0 %v658, 113
      %v816 = vpop.permute.xlu0 %815
      %817 = vrot.lane.b32.xlu0 %v660, 113
      %v818 = vpop.permute.xlu0 %817
      %819 = vrot.lane.b32.xlu0 %v659, 113
      %v820 = vpop.permute.xlu0 %819
      %821 = vrot.lane.b32.xlu0 %v661, 113
      %v822 = vpop.permute.xlu0 %821
      %vm823 = vcmp.lt.s32.totalorder %v679, 113
      %v824 = vsel %vm823, %v816, %v820
      %v825 = vsel %vm823, %v818, %v822
      %v826 = vsel %vm823, %v820, %v816
      %v827 = vsel %vm823, %v822, %v818
      %s828 = scalar_lea.vmem %s13, 6
      %v829 = vld [vmem:[%s828] ss:$8 sm:$0x3]
      %v831 = vperm.slane %v829, 0
      %v832 = vperm.slane %v829, 1
      %v835 = vmul.f32 %v824, %v831
      %v836 = vmul.f32 %v826, %v832
      %v837 = vmul.f32 %v825, %v831
      %v838 = vmul.f32 %v827, %v832
      %839 = vst [vmem:[#allocation2 + $0xc0] sm:$0xff] %v835
      %840 = vst [vmem:[#allocation2 + $0xc8] sm:$0xff] %v836
      %841 = vst [vmem:[#allocation2 + $0xd0] sm:$0xff] %v837
      %842 = vst [vmem:[#allocation2 + $0xd8] sm:$0xff] %v838
      %843 = vrot.lane.b32.xlu0 %v658, 112
      %v844 = vpop.permute.xlu0 %843
      %845 = vrot.lane.b32.xlu0 %v660, 112
      %v846 = vpop.permute.xlu0 %845
      %847 = vrot.lane.b32.xlu0 %v659, 112
      %v848 = vpop.permute.xlu0 %847
      %849 = vrot.lane.b32.xlu0 %v661, 112
      %v850 = vpop.permute.xlu0 %849
      %vm851 = vcmp.lt.s32.totalorder %v679, 112
      %v852 = vsel %vm851, %v844, %v848
      %v853 = vsel %vm851, %v846, %v850
      %v854 = vsel %vm851, %v848, %v844
      %v855 = vsel %vm851, %v850, %v846
      %s856 = scalar_lea.vmem %s13, 7
      %v857 = vld [vmem:[%s856] ss:$8 sm:$0x3]
      %v859 = vperm.slane %v857, 0
      %v860 = vperm.slane %v857, 1
      %v863 = vmul.f32 %v852, %v859
      %v864 = vmul.f32 %v854, %v860
      %v865 = vmul.f32 %v853, %v859
      %v866 = vmul.f32 %v855, %v860
      %867 = vst [vmem:[#allocation2 + $0xe0] sm:$0xff] %v863
      %868 = vst [vmem:[#allocation2 + $0xe8] sm:$0xff] %v864
      %869 = vst [vmem:[#allocation2 + $0xf0] sm:$0xff] %v865
      %870 = vst [vmem:[#allocation2 + $0xf8] sm:$0xff] %v866
      %871 = vrot.lane.b32.xlu0 %v658, 111
      %v872 = vpop.permute.xlu0 %871
      %873 = vrot.lane.b32.xlu0 %v660, 111
      %v874 = vpop.permute.xlu0 %873
      %875 = vrot.lane.b32.xlu0 %v659, 111
      %v876 = vpop.permute.xlu0 %875
      %877 = vrot.lane.b32.xlu0 %v661, 111
      %v878 = vpop.permute.xlu0 %877
      %vm879 = vcmp.lt.s32.totalorder %v679, 111
      %v880 = vsel %vm879, %v872, %v876
      %v881 = vsel %vm879, %v874, %v878
      %v882 = vsel %vm879, %v876, %v872
      %v883 = vsel %vm879, %v878, %v874
      %s884 = scalar_lea.vmem %s13, 16
      %v885 = vld [vmem:[%s884] ss:$8 sm:$0x3]
      %v887 = vperm.slane %v885, 0
      %v888 = vperm.slane %v885, 1
      %v891 = vmul.f32 %v880, %v887
      %v892 = vmul.f32 %v882, %v888
      %v893 = vmul.f32 %v881, %v887
      %v894 = vmul.f32 %v883, %v888
      %895 = vst [vmem:[#allocation2 + $0x100] sm:$0xff] %v891
      %896 = vst [vmem:[#allocation2 + $0x108] sm:$0xff] %v892
      %897 = vst [vmem:[#allocation2 + $0x110] sm:$0xff] %v893
      %898 = vst [vmem:[#allocation2 + $0x118] sm:$0xff] %v894
      %v899 = vld [vmem:[#allocation2] sm:$0xff]
      %v900 = vld [vmem:[#allocation2 + $0x8] sm:$0xff]
      %v901 = vld [vmem:[#allocation2 + $0x10] sm:$0xff]
      %v902 = vld [vmem:[#allocation2 + $0x18] sm:$0xff]
      %v903 = vld [vmem:[#allocation2 + $0x20] sm:$0xff]
      %v904 = vld [vmem:[#allocation2 + $0x28] sm:$0xff]
      %v905 = vld [vmem:[#allocation2 + $0x30] sm:$0xff]
      %v906 = vld [vmem:[#allocation2 + $0x38] sm:$0xff]
      %v907 = vld [vmem:[#allocation2 + $0x40] sm:$0xff]
      %v908 = vld [vmem:[#allocation2 + $0x48] sm:$0xff]
      %v909 = vld [vmem:[#allocation2 + $0x50] sm:$0xff]
      %v910 = vld [vmem:[#allocation2 + $0x58] sm:$0xff]
      %v911 = vld [vmem:[#allocation2 + $0x60] sm:$0xff]
      %v912 = vld [vmem:[#allocation2 + $0x68] sm:$0xff]
      %v913 = vld [vmem:[#allocation2 + $0x70] sm:$0xff]
      %v914 = vld [vmem:[#allocation2 + $0x78] sm:$0xff]
      %v915 = vld [vmem:[#allocation2 + $0x80] sm:$0xff]
      %v916 = vld [vmem:[#allocation2 + $0x88] sm:$0xff]
      %v917 = vld [vmem:[#allocation2 + $0x90] sm:$0xff]
      %v918 = vld [vmem:[#allocation2 + $0x98] sm:$0xff]
      %v919 = vld [vmem:[#allocation2 + $0xa0] sm:$0xff]
      %v920 = vld [vmem:[#allocation2 + $0xa8] sm:$0xff]
      %v921 = vld [vmem:[#allocation2 + $0xb0] sm:$0xff]
      %v922 = vld [vmem:[#allocation2 + $0xb8] sm:$0xff]
      %v923 = vld [vmem:[#allocation2 + $0xc0] sm:$0xff]
      %v924 = vld [vmem:[#allocation2 + $0xc8] sm:$0xff]
      %v925 = vld [vmem:[#allocation2 + $0xd0] sm:$0xff]
      %v926 = vld [vmem:[#allocation2 + $0xd8] sm:$0xff]
      %v927 = vld [vmem:[#allocation2 + $0xe0] sm:$0xff]
      %v928 = vld [vmem:[#allocation2 + $0xe8] sm:$0xff]
      %v929 = vld [vmem:[#allocation2 + $0xf0] sm:$0xff]
      %v930 = vld [vmem:[#allocation2 + $0xf8] sm:$0xff]
      %v931 = vld [vmem:[#allocation2 + $0x100] sm:$0xff]
      %v932 = vld [vmem:[#allocation2 + $0x108] sm:$0xff]
      %v933 = vld [vmem:[#allocation2 + $0x110] sm:$0xff]
      %v934 = vld [vmem:[#allocation2 + $0x118] sm:$0xff]
      %vm935 = vcmask 130048
      %v937 = vsel %vm935, %v667, 0
      %v940 = vsel %vm935, %v669, 0
      %942 = vmatpush.msra.mxu0 %v929
      %943 = vmatpush.msra.mxu0 %v927
      %944 = vmatpush.msra.mxu0 %v925
      %945 = vmatpush.msra.mxu0 %v923
      %946 = vmatpush.msra.mxu0 %v921
      %947 = vmatpush.msra.mxu0 %v919
      %948 = vmatpush.msra.mxu0 %v917
      %949 = vmatpush.msra.mxu0 %v915
      %950 = vmatpush.msra.mxu0 %v913
      %951 = vmatpush.msra.mxu0 %v911
      %952 = vmatpush.msra.mxu0 %v909
      %953 = vmatpush.msra.mxu0 %v907
      %954 = vmatpush.msra.mxu0 %v905
      %955 = vmatpush.msra.mxu0 %v903
      %956 = vmatpush.msra.mxu0 %v901
      %957 = vmatpush.msra.mxu0 %v899
      %958 = vmatmul.f32.gmra.mxu0 %v666
      %v959 = vpop.f32.mrf.mxu0
      %v960 = vadd.f32 0.0, %v959
      %961 = vmatmul.f32.gmra.mxu0 %v668
      %v962 = vpop.f32.mrf.mxu0
      %v963 = vadd.f32 0.0, %v962
      %964 = vdwg.mxu0
      %965 = vmatpush.msra.mxu0 0.0
      %966 = vmatpush.msra.mxu0 0.0
      %967 = vmatpush.msra.mxu0 0.0
      %968 = vmatpush.msra.mxu0 0.0
      %969 = vmatpush.msra.mxu0 0.0
      %970 = vmatpush.msra.mxu0 0.0
      %971 = vmatpush.msra.mxu0 0.0
      %972 = vmatpush.msra.mxu0 0.0
      %973 = vmatpush.msra.mxu0 0.0
      %974 = vmatpush.msra.mxu0 0.0
      %975 = vmatpush.msra.mxu0 0.0
      %976 = vmatpush.msra.mxu0 0.0
      %977 = vmatpush.msra.mxu0 0.0
      %978 = vmatpush.msra.mxu0 0.0
      %979 = vmatpush.msra.mxu0 %v933
      %980 = vmatpush.msra.mxu0 %v931
      %981 = vmatmul.f32.gmra.mxu0 %v937
      %v982 = vpop.f32.mrf.mxu0
      %v983 = vadd.f32 %v960, %v982
      %984 = vmatmul.f32.gmra.mxu0 %v940
      %v985 = vpop.f32.mrf.mxu0
      %v986 = vadd.f32 %v963, %v985
      %987 = vdwg.mxu0
      %988 = vmatpush.msra.mxu0 %v930
      %989 = vmatpush.msra.mxu0 %v928
      %990 = vmatpush.msra.mxu0 %v926
      %991 = vmatpush.msra.mxu0 %v924
      %992 = vmatpush.msra.mxu0 %v922
      %993 = vmatpush.msra.mxu0 %v920
      %994 = vmatpush.msra.mxu0 %v918
      %995 = vmatpush.msra.mxu0 %v916
      %996 = vmatpush.msra.mxu0 %v914
      %997 = vmatpush.msra.mxu0 %v912
      %998 = vmatpush.msra.mxu0 %v910
      %999 = vmatpush.msra.mxu0 %v908
      %1000 = vmatpush.msra.mxu0 %v906
      %1001 = vmatpush.msra.mxu0 %v904
      %1002 = vmatpush.msra.mxu0 %v902
      %1003 = vmatpush.msra.mxu0 %v900
      %1004 = vmatmul.f32.gmra.mxu0 %v666
      %v1005 = vpop.f32.mrf.mxu0
      %v1006 = vadd.f32 0.0, %v1005
      %1007 = vmatmul.f32.gmra.mxu0 %v668
      %v1008 = vpop.f32.mrf.mxu0
      %v1009 = vadd.f32 0.0, %v1008
      %1010 = vdwg.mxu0
      %1011 = vmatpush.msra.mxu0 0.0
      %1012 = vmatpush.msra.mxu0 0.0
      %1013 = vmatpush.msra.mxu0 0.0
      %1014 = vmatpush.msra.mxu0 0.0
      %1015 = vmatpush.msra.mxu0 0.0
      %1016 = vmatpush.msra.mxu0 0.0
      %1017 = vmatpush.msra.mxu0 0.0
      %1018 = vmatpush.msra.mxu0 0.0
      %1019 = vmatpush.msra.mxu0 0.0
      %1020 = vmatpush.msra.mxu0 0.0
      %1021 = vmatpush.msra.mxu0 0.0
      %1022 = vmatpush.msra.mxu0 0.0
      %1023 = vmatpush.msra.mxu0 0.0
      %1024 = vmatpush.msra.mxu0 0.0
      %1025 = vmatpush.msra.mxu0 %v934
      %1026 = vmatpush.msra.mxu0 %v932
      %1027 = vmatmul.f32.gmra.mxu0 %v937
      %v1028 = vpop.f32.mrf.mxu0
      %v1029 = vadd.f32 %v1006, %v1028
      %1030 = vmatmul.f32.gmra.mxu0 %v940
      %v1031 = vpop.f32.mrf.mxu0
      %v1032 = vadd.f32 %v1009, %v1031
      %1033 = vdwg.mxu0
      %v1034 = vld [vmem:[%s5] sm:$0xff]
      %v1035 = vld [vmem:[%s5 + $0x8] sm:$0xff]
      %v1036 = vld [vmem:[%s5 + $0x10] sm:$0xff]
      %v1037 = vld [vmem:[%s5 + $0x18] sm:$0xff]
      %1038 = vrot.lane.b32.xlu0 %v545, 17
      %v1039 = vpop.permute.xlu0 %1038
      %1040 = vrot.lane.b32.xlu0 %v548, 17
      %v1041 = vpop.permute.xlu0 %1040
      %1042 = vrot.lane.b32.xlu0 %v568, 17
      %v1043 = vpop.permute.xlu0 %1042
      %1044 = vrot.lane.b32.xlu0 %v571, 17
      %v1045 = vpop.permute.xlu0 %1044
      %v1046 = vsel %vm680, %v1039, %v1043
      %v1047 = vsel %vm680, %v1041, %v1045
      %v1048 = vsel %vm680, %v1043, %v1039
      %v1049 = vsel %vm680, %v1045, %v1041
      %v1050 = vld [vmem:[%s13] ss:$8 sm:$0x3]
      %v1052 = vperm.slane %v1050, 0
      %v1053 = vperm.slane %v1050, 1
      %v1056 = vmul.f32 %v1048, %v1052
      %v1057 = vmul.f32 %v1046, %v1053
      %v1058 = vmul.f32 %v1049, %v1052
      %v1059 = vmul.f32 %v1047, %v1053
      %1060 = vst [vmem:[#allocation2] sm:$0xff] %v1056
      %1061 = vst [vmem:[#allocation2 + $0x8] sm:$0xff] %v1057
      %1062 = vst [vmem:[#allocation2 + $0x10] sm:$0xff] %v1058
      %1063 = vst [vmem:[#allocation2 + $0x18] sm:$0xff] %v1059
      %1064 = vrot.lane.b32.xlu0 %v545, 16
      %v1065 = vpop.permute.xlu0 %1064
      %1066 = vrot.lane.b32.xlu0 %v548, 16
      %v1067 = vpop.permute.xlu0 %1066
      %1068 = vrot.lane.b32.xlu0 %v568, 16
      %v1069 = vpop.permute.xlu0 %1068
      %1070 = vrot.lane.b32.xlu0 %v571, 16
      %v1071 = vpop.permute.xlu0 %1070
      %v1072 = vsel %vm707, %v1065, %v1069
      %v1073 = vsel %vm707, %v1067, %v1071
      %v1074 = vsel %vm707, %v1069, %v1065
      %v1075 = vsel %vm707, %v1071, %v1067
      %v1076 = vld [vmem:[%s712] ss:$8 sm:$0x3]
      %v1078 = vperm.slane %v1076, 0
      %v1079 = vperm.slane %v1076, 1
      %v1082 = vmul.f32 %v1074, %v1078
      %v1083 = vmul.f32 %v1072, %v1079
      %v1084 = vmul.f32 %v1075, %v1078
      %v1085 = vmul.f32 %v1073, %v1079
      %1086 = vst [vmem:[#allocation2 + $0x20] sm:$0xff] %v1082
      %1087 = vst [vmem:[#allocation2 + $0x28] sm:$0xff] %v1083
      %1088 = vst [vmem:[#allocation2 + $0x30] sm:$0xff] %v1084
      %1089 = vst [vmem:[#allocation2 + $0x38] sm:$0xff] %v1085
      %1090 = vrot.lane.b32.xlu0 %v545, 15
      %v1091 = vpop.permute.xlu0 %1090
      %1092 = vrot.lane.b32.xlu0 %v548, 15
      %v1093 = vpop.permute.xlu0 %1092
      %1094 = vrot.lane.b32.xlu0 %v568, 15
      %v1095 = vpop.permute.xlu0 %1094
      %1096 = vrot.lane.b32.xlu0 %v571, 15
      %v1097 = vpop.permute.xlu0 %1096
      %v1098 = vsel %vm735, %v1091, %v1095
      %v1099 = vsel %vm735, %v1093, %v1097
      %v1100 = vsel %vm735, %v1095, %v1091
      %v1101 = vsel %vm735, %v1097, %v1093
      %v1102 = vld [vmem:[%s740] ss:$8 sm:$0x3]
      %v1104 = vperm.slane %v1102, 0
      %v1105 = vperm.slane %v1102, 1
      %v1108 = vmul.f32 %v1100, %v1104
      %v1109 = vmul.f32 %v1098, %v1105
      %v1110 = vmul.f32 %v1101, %v1104
      %v1111 = vmul.f32 %v1099, %v1105
      %1112 = vst [vmem:[#allocation2 + $0x40] sm:$0xff] %v1108
      %1113 = vst [vmem:[#allocation2 + $0x48] sm:$0xff] %v1109
      %1114 = vst [vmem:[#allocation2 + $0x50] sm:$0xff] %v1110
      %1115 = vst [vmem:[#allocation2 + $0x58] sm:$0xff] %v1111
      %1116 = vrot.lane.b32.xlu0 %v545, 1
      %v1117 = vpop.permute.xlu0 %1116
      %1118 = vrot.lane.b32.xlu0 %v548, 1
      %v1119 = vpop.permute.xlu0 %1118
      %1120 = vrot.lane.b32.xlu0 %v568, 1
      %v1121 = vpop.permute.xlu0 %1120
      %1122 = vrot.lane.b32.xlu0 %v571, 1
      %v1123 = vpop.permute.xlu0 %1122
      %v1124 = vsel %vm763, %v1117, %v1121
      %v1125 = vsel %vm763, %v1119, %v1123
      %v1126 = vsel %vm763, %v1121, %v1117
      %v1127 = vsel %vm763, %v1123, %v1119
      %v1128 = vld [vmem:[%s768] ss:$8 sm:$0x3]
      %v1130 = vperm.slane %v1128, 0
      %v1131 = vperm.slane %v1128, 1
      %v1134 = vmul.f32 %v1126, %v1130
      %v1135 = vmul.f32 %v1124, %v1131
      %v1136 = vmul.f32 %v1127, %v1130
      %v1137 = vmul.f32 %v1125, %v1131
      %1138 = vst [vmem:[#allocation2 + $0x60] sm:$0xff] %v1134
      %1139 = vst [vmem:[#allocation2 + $0x68] sm:$0xff] %v1135
      %1140 = vst [vmem:[#allocation2 + $0x70] sm:$0xff] %v1136
      %1141 = vst [vmem:[#allocation2 + $0x78] sm:$0xff] %v1137
      %1142 = vst [vmem:[#allocation2 + $0x80] sm:$0xff] %v545
      %1143 = vst [vmem:[#allocation2 + $0x88] sm:$0xff] %v568
      %1144 = vst [vmem:[#allocation2 + $0x90] sm:$0xff] %v548
      %1145 = vst [vmem:[#allocation2 + $0x98] sm:$0xff] %v571
      %1146 = vrot.lane.b32.xlu0 %v545, 127
      %v1147 = vpop.permute.xlu0 %1146
      %1148 = vrot.lane.b32.xlu0 %v548, 127
      %v1149 = vpop.permute.xlu0 %1148
      %1150 = vrot.lane.b32.xlu0 %v568, 127
      %v1151 = vpop.permute.xlu0 %1150
      %1152 = vrot.lane.b32.xlu0 %v571, 127
      %v1153 = vpop.permute.xlu0 %1152
      %v1154 = vsel %vm795, %v1147, %v1151
      %v1155 = vsel %vm795, %v1149, %v1153
      %v1156 = vsel %vm795, %v1151, %v1147
      %v1157 = vsel %vm795, %v1153, %v1149
      %v1158 = vld [vmem:[%s800] ss:$8 sm:$0x3]
      %v1160 = vperm.slane %v1158, 0
      %v1161 = vperm.slane %v1158, 1
      %v1164 = vmul.f32 %v1154, %v1160
      %v1165 = vmul.f32 %v1156, %v1161
      %v1166 = vmul.f32 %v1155, %v1160
      %v1167 = vmul.f32 %v1157, %v1161
      %1168 = vst [vmem:[#allocation2 + $0xa0] sm:$0xff] %v1164
      %1169 = vst [vmem:[#allocation2 + $0xa8] sm:$0xff] %v1165
      %1170 = vst [vmem:[#allocation2 + $0xb0] sm:$0xff] %v1166
      %1171 = vst [vmem:[#allocation2 + $0xb8] sm:$0xff] %v1167
      %1172 = vrot.lane.b32.xlu0 %v545, 113
      %v1173 = vpop.permute.xlu0 %1172
      %1174 = vrot.lane.b32.xlu0 %v548, 113
      %v1175 = vpop.permute.xlu0 %1174
      %1176 = vrot.lane.b32.xlu0 %v568, 113
      %v1177 = vpop.permute.xlu0 %1176
      %1178 = vrot.lane.b32.xlu0 %v571, 113
      %v1179 = vpop.permute.xlu0 %1178
      %v1180 = vsel %vm823, %v1173, %v1177
      %v1181 = vsel %vm823, %v1175, %v1179
      %v1182 = vsel %vm823, %v1177, %v1173
      %v1183 = vsel %vm823, %v1179, %v1175
      %v1184 = vld [vmem:[%s828] ss:$8 sm:$0x3]
      %v1186 = vperm.slane %v1184, 0
      %v1187 = vperm.slane %v1184, 1
      %v1190 = vmul.f32 %v1180, %v1186
      %v1191 = vmul.f32 %v1182, %v1187
      %v1192 = vmul.f32 %v1181, %v1186
      %v1193 = vmul.f32 %v1183, %v1187
      %1194 = vst [vmem:[#allocation2 + $0xc0] sm:$0xff] %v1190
      %1195 = vst [vmem:[#allocation2 + $0xc8] sm:$0xff] %v1191
      %1196 = vst [vmem:[#allocation2 + $0xd0] sm:$0xff] %v1192
      %1197 = vst [vmem:[#allocation2 + $0xd8] sm:$0xff] %v1193
      %1198 = vrot.lane.b32.xlu0 %v545, 112
      %v1199 = vpop.permute.xlu0 %1198
      %1200 = vrot.lane.b32.xlu0 %v548, 112
      %v1201 = vpop.permute.xlu0 %1200
      %1202 = vrot.lane.b32.xlu0 %v568, 112
      %v1203 = vpop.permute.xlu0 %1202
      %1204 = vrot.lane.b32.xlu0 %v571, 112
      %v1205 = vpop.permute.xlu0 %1204
      %v1206 = vsel %vm851, %v1199, %v1203
      %v1207 = vsel %vm851, %v1201, %v1205
      %v1208 = vsel %vm851, %v1203, %v1199
      %v1209 = vsel %vm851, %v1205, %v1201
      %v1210 = vld [vmem:[%s856] ss:$8 sm:$0x3]
      %v1212 = vperm.slane %v1210, 0
      %v1213 = vperm.slane %v1210, 1
      %v1216 = vmul.f32 %v1206, %v1212
      %v1217 = vmul.f32 %v1208, %v1213
      %v1218 = vmul.f32 %v1207, %v1212
      %v1219 = vmul.f32 %v1209, %v1213
      %1220 = vst [vmem:[#allocation2 + $0xe0] sm:$0xff] %v1216
      %1221 = vst [vmem:[#allocation2 + $0xe8] sm:$0xff] %v1217
      %1222 = vst [vmem:[#allocation2 + $0xf0] sm:$0xff] %v1218
      %1223 = vst [vmem:[#allocation2 + $0xf8] sm:$0xff] %v1219
      %1224 = vrot.lane.b32.xlu0 %v545, 111
      %v1225 = vpop.permute.xlu0 %1224
      %1226 = vrot.lane.b32.xlu0 %v548, 111
      %v1227 = vpop.permute.xlu0 %1226
      %1228 = vrot.lane.b32.xlu0 %v568, 111
      %v1229 = vpop.permute.xlu0 %1228
      %1230 = vrot.lane.b32.xlu0 %v571, 111
      %v1231 = vpop.permute.xlu0 %1230
      %v1232 = vsel %vm879, %v1225, %v1229
      %v1233 = vsel %vm879, %v1227, %v1231
      %v1234 = vsel %vm879, %v1229, %v1225
      %v1235 = vsel %vm879, %v1231, %v1227
      %v1236 = vld [vmem:[%s884] ss:$8 sm:$0x3]
      %v1238 = vperm.slane %v1236, 0
      %v1239 = vperm.slane %v1236, 1
      %v1242 = vmul.f32 %v1232, %v1238
      %v1243 = vmul.f32 %v1234, %v1239
      %v1244 = vmul.f32 %v1233, %v1238
      %v1245 = vmul.f32 %v1235, %v1239
      %1246 = vst [vmem:[#allocation2 + $0x100] sm:$0xff] %v1242
      %1247 = vst [vmem:[#allocation2 + $0x108] sm:$0xff] %v1243
      %1248 = vst [vmem:[#allocation2 + $0x110] sm:$0xff] %v1244
      %1249 = vst [vmem:[#allocation2 + $0x118] sm:$0xff] %v1245
      %v1250 = vld [vmem:[#allocation2] sm:$0xff]
      %v1251 = vld [vmem:[#allocation2 + $0x8] sm:$0xff]
      %v1252 = vld [vmem:[#allocation2 + $0x10] sm:$0xff]
      %v1253 = vld [vmem:[#allocation2 + $0x18] sm:$0xff]
      %v1254 = vld [vmem:[#allocation2 + $0x20] sm:$0xff]
      %v1255 = vld [vmem:[#allocation2 + $0x28] sm:$0xff]
      %v1256 = vld [vmem:[#allocation2 + $0x30] sm:$0xff]
      %v1257 = vld [vmem:[#allocation2 + $0x38] sm:$0xff]
      %v1258 = vld [vmem:[#allocation2 + $0x40] sm:$0xff]
      %v1259 = vld [vmem:[#allocation2 + $0x48] sm:$0xff]
      %v1260 = vld [vmem:[#allocation2 + $0x50] sm:$0xff]
      %v1261 = vld [vmem:[#allocation2 + $0x58] sm:$0xff]
      %v1262 = vld [vmem:[#allocation2 + $0x60] sm:$0xff]
      %v1263 = vld [vmem:[#allocation2 + $0x68] sm:$0xff]
      %v1264 = vld [vmem:[#allocation2 + $0x70] sm:$0xff]
      %v1265 = vld [vmem:[#allocation2 + $0x78] sm:$0xff]
      %v1266 = vld [vmem:[#allocation2 + $0x80] sm:$0xff]
      %v1267 = vld [vmem:[#allocation2 + $0x88] sm:$0xff]
      %v1268 = vld [vmem:[#allocation2 + $0x90] sm:$0xff]
      %v1269 = vld [vmem:[#allocation2 + $0x98] sm:$0xff]
      %v1270 = vld [vmem:[#allocation2 + $0xa0] sm:$0xff]
      %v1271 = vld [vmem:[#allocation2 + $0xa8] sm:$0xff]
      %v1272 = vld [vmem:[#allocation2 + $0xb0] sm:$0xff]
      %v1273 = vld [vmem:[#allocation2 + $0xb8] sm:$0xff]
      %v1274 = vld [vmem:[#allocation2 + $0xc0] sm:$0xff]
      %v1275 = vld [vmem:[#allocation2 + $0xc8] sm:$0xff]
      %v1276 = vld [vmem:[#allocation2 + $0xd0] sm:$0xff]
      %v1277 = vld [vmem:[#allocation2 + $0xd8] sm:$0xff]
      %v1278 = vld [vmem:[#allocation2 + $0xe0] sm:$0xff]
      %v1279 = vld [vmem:[#allocation2 + $0xe8] sm:$0xff]
      %v1280 = vld [vmem:[#allocation2 + $0xf0] sm:$0xff]
      %v1281 = vld [vmem:[#allocation2 + $0xf8] sm:$0xff]
      %v1282 = vld [vmem:[#allocation2 + $0x100] sm:$0xff]
      %v1283 = vld [vmem:[#allocation2 + $0x108] sm:$0xff]
      %v1284 = vld [vmem:[#allocation2 + $0x110] sm:$0xff]
      %v1285 = vld [vmem:[#allocation2 + $0x118] sm:$0xff]
      %v1287 = vsel %vm935, %v1035, 0
      %v1290 = vsel %vm935, %v1037, 0
      %1292 = vmatpush.msra.mxu0 %v1280
      %1293 = vmatpush.msra.mxu0 %v1278
      %1294 = vmatpush.msra.mxu0 %v1276
      %1295 = vmatpush.msra.mxu0 %v1274
      %1296 = vmatpush.msra.mxu0 %v1272
      %1297 = vmatpush.msra.mxu0 %v1270
      %1298 = vmatpush.msra.mxu0 %v1268
      %1299 = vmatpush.msra.mxu0 %v1266
      %1300 = vmatpush.msra.mxu0 %v1264
      %1301 = vmatpush.msra.mxu0 %v1262
      %1302 = vmatpush.msra.mxu0 %v1260
      %1303 = vmatpush.msra.mxu0 %v1258
      %1304 = vmatpush.msra.mxu0 %v1256
      %1305 = vmatpush.msra.mxu0 %v1254
      %1306 = vmatpush.msra.mxu0 %v1252
      %1307 = vmatpush.msra.mxu0 %v1250
      %1308 = vmatmul.f32.gmra.mxu0 %v1034
      %v1309 = vpop.f32.mrf.mxu0
      %v1310 = vadd.f32 0.0, %v1309
      %1311 = vmatmul.f32.gmra.mxu0 %v1036
      %v1312 = vpop.f32.mrf.mxu0
      %v1313 = vadd.f32 0.0, %v1312
      %1314 = vdwg.mxu0
      %1315 = vmatpush.msra.mxu0 0.0
      %1316 = vmatpush.msra.mxu0 0.0
      %1317 = vmatpush.msra.mxu0 0.0
      %1318 = vmatpush.msra.mxu0 0.0
      %1319 = vmatpush.msra.mxu0 0.0
      %1320 = vmatpush.msra.mxu0 0.0
      %1321 = vmatpush.msra.mxu0 0.0
      %1322 = vmatpush.msra.mxu0 0.0
      %1323 = vmatpush.msra.mxu0 0.0
      %1324 = vmatpush.msra.mxu0 0.0
      %1325 = vmatpush.msra.mxu0 0.0
      %1326 = vmatpush.msra.mxu0 0.0
      %1327 = vmatpush.msra.mxu0 0.0
      %1328 = vmatpush.msra.mxu0 0.0
      %1329 = vmatpush.msra.mxu0 %v1284
      %1330 = vmatpush.msra.mxu0 %v1282
      %1331 = vmatmul.f32.gmra.mxu0 %v1287
      %v1332 = vpop.f32.mrf.mxu0
      %v1333 = vadd.f32 %v1310, %v1332
      %1334 = vmatmul.f32.gmra.mxu0 %v1290
      %v1335 = vpop.f32.mrf.mxu0
      %v1336 = vadd.f32 %v1313, %v1335
      %1337 = vdwg.mxu0
      %1338 = vmatpush.msra.mxu0 %v1281
      %1339 = vmatpush.msra.mxu0 %v1279
      %1340 = vmatpush.msra.mxu0 %v1277
      %1341 = vmatpush.msra.mxu0 %v1275
      %1342 = vmatpush.msra.mxu0 %v1273
      %1343 = vmatpush.msra.mxu0 %v1271
      %1344 = vmatpush.msra.mxu0 %v1269
      %1345 = vmatpush.msra.mxu0 %v1267
      %1346 = vmatpush.msra.mxu0 %v1265
      %1347 = vmatpush.msra.mxu0 %v1263
      %1348 = vmatpush.msra.mxu0 %v1261
      %1349 = vmatpush.msra.mxu0 %v1259
      %1350 = vmatpush.msra.mxu0 %v1257
      %1351 = vmatpush.msra.mxu0 %v1255
      %1352 = vmatpush.msra.mxu0 %v1253
      %1353 = vmatpush.msra.mxu0 %v1251
      %1354 = vmatmul.f32.gmra.mxu0 %v1034
      %v1355 = vpop.f32.mrf.mxu0
      %v1356 = vadd.f32 0.0, %v1355
      %1357 = vmatmul.f32.gmra.mxu0 %v1036
      %v1358 = vpop.f32.mrf.mxu0
      %v1359 = vadd.f32 0.0, %v1358
      %1360 = vdwg.mxu0
      %1361 = vmatpush.msra.mxu0 0.0
      %1362 = vmatpush.msra.mxu0 0.0
      %1363 = vmatpush.msra.mxu0 0.0
      %1364 = vmatpush.msra.mxu0 0.0
      %1365 = vmatpush.msra.mxu0 0.0
      %1366 = vmatpush.msra.mxu0 0.0
      %1367 = vmatpush.msra.mxu0 0.0
      %1368 = vmatpush.msra.mxu0 0.0
      %1369 = vmatpush.msra.mxu0 0.0
      %1370 = vmatpush.msra.mxu0 0.0
      %1371 = vmatpush.msra.mxu0 0.0
      %1372 = vmatpush.msra.mxu0 0.0
      %1373 = vmatpush.msra.mxu0 0.0
      %1374 = vmatpush.msra.mxu0 0.0
      %1375 = vmatpush.msra.mxu0 %v1285
      %1376 = vmatpush.msra.mxu0 %v1283
      %1377 = vmatmul.f32.gmra.mxu0 %v1287
      %v1378 = vpop.f32.mrf.mxu0
      %v1379 = vadd.f32 %v1356, %v1378
      %1380 = vmatmul.f32.gmra.mxu0 %v1290
      %v1381 = vpop.f32.mrf.mxu0
      %v1382 = vadd.f32 %v1359, %v1381
      %1383 = vdwg.mxu0
      %v1384 = vld [vmem:[%s6] sm:$0xff]
      %v1385 = vld [vmem:[%s6 + $0x8] sm:$0xff]
      %v1386 = vld [vmem:[%s6 + $0x10] sm:$0xff]
      %v1387 = vld [vmem:[%s6 + $0x18] sm:$0xff]
      %v1388 = vld [vmem:[%s6 + $0x20] sm:$0xff]
      %v1389 = vld [vmem:[%s6 + $0x28] sm:$0xff]
      %1390 = vrot.lane.b32.xlu0 %v983, 17
      %v1391 = vpop.permute.xlu0 %1390
      %1392 = vrot.lane.b32.xlu0 %v986, 17
      %v1393 = vpop.permute.xlu0 %1392
      %1394 = vrot.lane.b32.xlu0 %v1029, 17
      %v1395 = vpop.permute.xlu0 %1394
      %1396 = vrot.lane.b32.xlu0 %v1032, 17
      %v1397 = vpop.permute.xlu0 %1396
      %v1398 = vsel %vm680, %v1391, %v1395
      %v1399 = vsel %vm680, %v1393, %v1397
      %v1400 = vsel %vm680, %v1395, %v1391
      %v1401 = vsel %vm680, %v1397, %v1393
      %v1402 = vld [vmem:[%s13] ss:$8 sm:$0x3]
      %v1404 = vperm.slane %v1402, 0
      %v1405 = vperm.slane %v1402, 1
      %v1408 = vmul.f32 %v1400, %v1404
      %v1409 = vmul.f32 %v1398, %v1405
      %v1410 = vmul.f32 %v1401, %v1404
      %v1411 = vmul.f32 %v1399, %v1405
      %1412 = vst [vmem:[#allocation2] sm:$0xff] %v1408
      %1413 = vst [vmem:[#allocation2 + $0x8] sm:$0xff] %v1409
      %1414 = vst [vmem:[#allocation2 + $0x10] sm:$0xff] %v1410
      %1415 = vst [vmem:[#allocation2 + $0x18] sm:$0xff] %v1411
      %1416 = vrot.lane.b32.xlu0 %v1333, 17
      %v1417 = vpop.permute.xlu0 %1416
      %1418 = vrot.lane.b32.xlu0 %v1336, 17
      %v1419 = vpop.permute.xlu0 %1418
      %1420 = vrot.lane.b32.xlu0 %v1379, 17
      %v1421 = vpop.permute.xlu0 %1420
      %1422 = vrot.lane.b32.xlu0 %v1382, 17
      %v1423 = vpop.permute.xlu0 %1422
      %v1424 = vsel %vm680, %v1417, %v1421
      %v1425 = vsel %vm680, %v1419, %v1423
      %v1426 = vsel %vm680, %v1421, %v1417
      %v1427 = vsel %vm680, %v1423, %v1419
      %v1428 = vld [vmem:[%s13] ss:$8 sm:$0x3]
      %v1430 = vperm.slane %v1428, 0
      %v1431 = vperm.slane %v1428, 1
      %v1434 = vmul.f32 %v1426, %v1430
      %v1435 = vmul.f32 %v1424, %v1431
      %v1436 = vmul.f32 %v1427, %v1430
      %v1437 = vmul.f32 %v1425, %v1431
      %1438 = vst [vmem:[#allocation2 + $0x20] sm:$0xff] %v1434
      %1439 = vst [vmem:[#allocation2 + $0x28] sm:$0xff] %v1435
      %1440 = vst [vmem:[#allocation2 + $0x30] sm:$0xff] %v1436
      %1441 = vst [vmem:[#allocation2 + $0x38] sm:$0xff] %v1437
      %1442 = vrot.lane.b32.xlu0 %v983, 16
      %v1443 = vpop.permute.xlu0 %1442
      %1444 = vrot.lane.b32.xlu0 %v986, 16
      %v1445 = vpop.permute.xlu0 %1444
      %1446 = vrot.lane.b32.xlu0 %v1029, 16
      %v1447 = vpop.permute.xlu0 %1446
      %1448 = vrot.lane.b32.xlu0 %v1032, 16
      %v1449 = vpop.permute.xlu0 %1448
      %v1450 = vsel %vm707, %v1443, %v1447
      %v1451 = vsel %vm707, %v1445, %v1449
      %v1452 = vsel %vm707, %v1447, %v1443
      %v1453 = vsel %vm707, %v1449, %v1445
      %v1454 = vld [vmem:[%s712] ss:$8 sm:$0x3]
      %v1456 = vperm.slane %v1454, 0
      %v1457 = vperm.slane %v1454, 1
      %v1460 = vmul.f32 %v1452, %v1456
      %v1461 = vmul.f32 %v1450, %v1457
      %v1462 = vmul.f32 %v1453, %v1456
      %v1463 = vmul.f32 %v1451, %v1457
      %1464 = vst [vmem:[#allocation2 + $0x40] sm:$0xff] %v1460
      %1465 = vst [vmem:[#allocation2 + $0x48] sm:$0xff] %v1461
      %1466 = vst [vmem:[#allocation2 + $0x50] sm:$0xff] %v1462
      %1467 = vst [vmem:[#allocation2 + $0x58] sm:$0xff] %v1463
      %1468 = vrot.lane.b32.xlu0 %v1333, 16
      %v1469 = vpop.permute.xlu0 %1468
      %1470 = vrot.lane.b32.xlu0 %v1336, 16
      %v1471 = vpop.permute.xlu0 %1470
      %1472 = vrot.lane.b32.xlu0 %v1379, 16
      %v1473 = vpop.permute.xlu0 %1472
      %1474 = vrot.lane.b32.xlu0 %v1382, 16
      %v1475 = vpop.permute.xlu0 %1474
      %v1476 = vsel %vm707, %v1469, %v1473
      %v1477 = vsel %vm707, %v1471, %v1475
      %v1478 = vsel %vm707, %v1473, %v1469
      %v1479 = vsel %vm707, %v1475, %v1471
      %v1480 = vld [vmem:[%s712] ss:$8 sm:$0x3]
      %v1482 = vperm.slane %v1480, 0
      %v1483 = vperm.slane %v1480, 1
      %v1486 = vmul.f32 %v1478, %v1482
      %v1487 = vmul.f32 %v1476, %v1483
      %v1488 = vmul.f32 %v1479, %v1482
      %v1489 = vmul.f32 %v1477, %v1483
      %1490 = vst [vmem:[#allocation2 + $0x60] sm:$0xff] %v1486
      %1491 = vst [vmem:[#allocation2 + $0x68] sm:$0xff] %v1487
      %1492 = vst [vmem:[#allocation2 + $0x70] sm:$0xff] %v1488
      %1493 = vst [vmem:[#allocation2 + $0x78] sm:$0xff] %v1489
      %1494 = vrot.lane.b32.xlu0 %v983, 15
      %v1495 = vpop.permute.xlu0 %1494
      %1496 = vrot.lane.b32.xlu0 %v986, 15
      %v1497 = vpop.permute.xlu0 %1496
      %1498 = vrot.lane.b32.xlu0 %v1029, 15
      %v1499 = vpop.permute.xlu0 %1498
      %1500 = vrot.lane.b32.xlu0 %v1032, 15
      %v1501 = vpop.permute.xlu0 %1500
      %v1502 = vsel %vm735, %v1495, %v1499
      %v1503 = vsel %vm735, %v1497, %v1501
      %v1504 = vsel %vm735, %v1499, %v1495
      %v1505 = vsel %vm735, %v1501, %v1497
      %v1506 = vld [vmem:[%s740] ss:$8 sm:$0x3]
      %v1508 = vperm.slane %v1506, 0
      %v1509 = vperm.slane %v1506, 1
      %v1512 = vmul.f32 %v1504, %v1508
      %v1513 = vmul.f32 %v1502, %v1509
      %v1514 = vmul.f32 %v1505, %v1508
      %v1515 = vmul.f32 %v1503, %v1509
      %1516 = vst [vmem:[#allocation2 + $0x80] sm:$0xff] %v1512
      %1517 = vst [vmem:[#allocation2 + $0x88] sm:$0xff] %v1513
      %1518 = vst [vmem:[#allocation2 + $0x90] sm:$0xff] %v1514
      %1519 = vst [vmem:[#allocation2 + $0x98] sm:$0xff] %v1515
      %1520 = vrot.lane.b32.xlu0 %v1333, 15
      %v1521 = vpop.permute.xlu0 %1520
      %1522 = vrot.lane.b32.xlu0 %v1336, 15
      %v1523 = vpop.permute.xlu0 %1522
      %1524 = vrot.lane.b32.xlu0 %v1379, 15
      %v1525 = vpop.permute.xlu0 %1524
      %1526 = vrot.lane.b32.xlu0 %v1382, 15
      %v1527 = vpop.permute.xlu0 %1526
      %v1528 = vsel %vm735, %v1521, %v1525
      %v1529 = vsel %vm735, %v1523, %v1527
      %v1530 = vsel %vm735, %v1525, %v1521
      %v1531 = vsel %vm735, %v1527, %v1523
      %v1532 = vld [vmem:[%s740] ss:$8 sm:$0x3]
      %v1534 = vperm.slane %v1532, 0
      %v1535 = vperm.slane %v1532, 1
      %v1538 = vmul.f32 %v1530, %v1534
      %v1539 = vmul.f32 %v1528, %v1535
      %v1540 = vmul.f32 %v1531, %v1534
      %v1541 = vmul.f32 %v1529, %v1535
      %1542 = vst [vmem:[#allocation2 + $0xa0] sm:$0xff] %v1538
      %1543 = vst [vmem:[#allocation2 + $0xa8] sm:$0xff] %v1539
      %1544 = vst [vmem:[#allocation2 + $0xb0] sm:$0xff] %v1540
      %1545 = vst [vmem:[#allocation2 + $0xb8] sm:$0xff] %v1541
      %1546 = vrot.lane.b32.xlu0 %v983, 1
      %v1547 = vpop.permute.xlu0 %1546
      %1548 = vrot.lane.b32.xlu0 %v986, 1
      %v1549 = vpop.permute.xlu0 %1548
      %1550 = vrot.lane.b32.xlu0 %v1029, 1
      %v1551 = vpop.permute.xlu0 %1550
      %1552 = vrot.lane.b32.xlu0 %v1032, 1
      %v1553 = vpop.permute.xlu0 %1552
      %v1554 = vsel %vm763, %v1547, %v1551
      %v1555 = vsel %vm763, %v1549, %v1553
      %v1556 = vsel %vm763, %v1551, %v1547
      %v1557 = vsel %vm763, %v1553, %v1549
      %v1558 = vld [vmem:[%s768] ss:$8 sm:$0x3]
      %v1560 = vperm.slane %v1558, 0
      %v1561 = vperm.slane %v1558, 1
      %v1564 = vmul.f32 %v1556, %v1560
      %v1565 = vmul.f32 %v1554, %v1561
      %v1566 = vmul.f32 %v1557, %v1560
      %v1567 = vmul.f32 %v1555, %v1561
      %1568 = vst [vmem:[#allocation2 + $0xc0] sm:$0xff] %v1564
      %1569 = vst [vmem:[#allocation2 + $0xc8] sm:$0xff] %v1565
      %1570 = vst [vmem:[#allocation2 + $0xd0] sm:$0xff] %v1566
      %1571 = vst [vmem:[#allocation2 + $0xd8] sm:$0xff] %v1567
      %1572 = vrot.lane.b32.xlu0 %v1333, 1
      %v1573 = vpop.permute.xlu0 %1572
      %1574 = vrot.lane.b32.xlu0 %v1336, 1
      %v1575 = vpop.permute.xlu0 %1574
      %1576 = vrot.lane.b32.xlu0 %v1379, 1
      %v1577 = vpop.permute.xlu0 %1576
      %1578 = vrot.lane.b32.xlu0 %v1382, 1
      %v1579 = vpop.permute.xlu0 %1578
      %v1580 = vsel %vm763, %v1573, %v1577
      %v1581 = vsel %vm763, %v1575, %v1579
      %v1582 = vsel %vm763, %v1577, %v1573
      %v1583 = vsel %vm763, %v1579, %v1575
      %v1584 = vld [vmem:[%s768] ss:$8 sm:$0x3]
      %v1586 = vperm.slane %v1584, 0
      %v1587 = vperm.slane %v1584, 1
      %v1590 = vmul.f32 %v1582, %v1586
      %v1591 = vmul.f32 %v1580, %v1587
      %v1592 = vmul.f32 %v1583, %v1586
      %v1593 = vmul.f32 %v1581, %v1587
      %1594 = vst [vmem:[#allocation2 + $0xe0] sm:$0xff] %v1590
      %1595 = vst [vmem:[#allocation2 + $0xe8] sm:$0xff] %v1591
      %1596 = vst [vmem:[#allocation2 + $0xf0] sm:$0xff] %v1592
      %1597 = vst [vmem:[#allocation2 + $0xf8] sm:$0xff] %v1593
      %1598 = vst [vmem:[#allocation2 + $0x100] sm:$0xff] %v983
      %1599 = vst [vmem:[#allocation2 + $0x108] sm:$0xff] %v1029
      %1600 = vst [vmem:[#allocation2 + $0x110] sm:$0xff] %v986
      %1601 = vst [vmem:[#allocation2 + $0x118] sm:$0xff] %v1032
      %1602 = vst [vmem:[#allocation2 + $0x120] sm:$0xff] %v1333
      %1603 = vst [vmem:[#allocation2 + $0x128] sm:$0xff] %v1379
      %1604 = vst [vmem:[#allocation2 + $0x130] sm:$0xff] %v1336
      %1605 = vst [vmem:[#allocation2 + $0x138] sm:$0xff] %v1382
      %1606 = vrot.lane.b32.xlu0 %v983, 127
      %v1607 = vpop.permute.xlu0 %1606
      %1608 = vrot.lane.b32.xlu0 %v986, 127
      %v1609 = vpop.permute.xlu0 %1608
      %1610 = vrot.lane.b32.xlu0 %v1029, 127
      %v1611 = vpop.permute.xlu0 %1610
      %1612 = vrot.lane.b32.xlu0 %v1032, 127
      %v1613 = vpop.permute.xlu0 %1612
      %v1614 = vsel %vm795, %v1607, %v1611
      %v1615 = vsel %vm795, %v1609, %v1613
      %v1616 = vsel %vm795, %v1611, %v1607
      %v1617 = vsel %vm795, %v1613, %v1609
      %v1618 = vld [vmem:[%s800] ss:$8 sm:$0x3]
      %v1620 = vperm.slane %v1618, 0
      %v1621 = vperm.slane %v1618, 1
      %v1624 = vmul.f32 %v1614, %v1620
      %v1625 = vmul.f32 %v1616, %v1621
      %v1626 = vmul.f32 %v1615, %v1620
      %v1627 = vmul.f32 %v1617, %v1621
      %1628 = vst [vmem:[#allocation2 + $0x140] sm:$0xff] %v1624
      %1629 = vst [vmem:[#allocation2 + $0x148] sm:$0xff] %v1625
      %1630 = vst [vmem:[#allocation2 + $0x150] sm:$0xff] %v1626
      %1631 = vst [vmem:[#allocation2 + $0x158] sm:$0xff] %v1627
      %1632 = vrot.lane.b32.xlu0 %v1333, 127
      %v1633 = vpop.permute.xlu0 %1632
      %1634 = vrot.lane.b32.xlu0 %v1336, 127
      %v1635 = vpop.permute.xlu0 %1634
      %1636 = vrot.lane.b32.xlu0 %v1379, 127
      %v1637 = vpop.permute.xlu0 %1636
      %1638 = vrot.lane.b32.xlu0 %v1382, 127
      %v1639 = vpop.permute.xlu0 %1638
      %v1640 = vsel %vm795, %v1633, %v1637
      %v1641 = vsel %vm795, %v1635, %v1639
      %v1642 = vsel %vm795, %v1637, %v1633
      %v1643 = vsel %vm795, %v1639, %v1635
      %v1644 = vld [vmem:[%s800] ss:$8 sm:$0x3]
      %v1646 = vperm.slane %v1644, 0
      %v1647 = vperm.slane %v1644, 1
      %v1650 = vmul.f32 %v1640, %v1646
      %v1651 = vmul.f32 %v1642, %v1647
      %v1652 = vmul.f32 %v1641, %v1646
      %v1653 = vmul.f32 %v1643, %v1647
      %1654 = vst [vmem:[#allocation2 + $0x160] sm:$0xff] %v1650
      %1655 = vst [vmem:[#allocation2 + $0x168] sm:$0xff] %v1651
      %1656 = vst [vmem:[#allocation2 + $0x170] sm:$0xff] %v1652
      %1657 = vst [vmem:[#allocation2 + $0x178] sm:$0xff] %v1653
      %1658 = vrot.lane.b32.xlu0 %v983, 113
      %v1659 = vpop.permute.xlu0 %1658
      %1660 = vrot.lane.b32.xlu0 %v986, 113
      %v1661 = vpop.permute.xlu0 %1660
      %1662 = vrot.lane.b32.xlu0 %v1029, 113
      %v1663 = vpop.permute.xlu0 %1662
      %1664 = vrot.lane.b32.xlu0 %v1032, 113
      %v1665 = vpop.permute.xlu0 %1664
      %v1666 = vsel %vm823, %v1659, %v1663
      %v1667 = vsel %vm823, %v1661, %v1665
      %v1668 = vsel %vm823, %v1663, %v1659
      %v1669 = vsel %vm823, %v1665, %v1661
      %v1670 = vld [vmem:[%s828] ss:$8 sm:$0x3]
      %v1672 = vperm.slane %v1670, 0
      %v1673 = vperm.slane %v1670, 1
      %v1676 = vmul.f32 %v1666, %v1672
      %v1677 = vmul.f32 %v1668, %v1673
      %v1678 = vmul.f32 %v1667, %v1672
      %v1679 = vmul.f32 %v1669, %v1673
      %1680 = vst [vmem:[#allocation2 + $0x180] sm:$0xff] %v1676
      %1681 = vst [vmem:[#allocation2 + $0x188] sm:$0xff] %v1677
      %1682 = vst [vmem:[#allocation2 + $0x190] sm:$0xff] %v1678
      %1683 = vst [vmem:[#allocation2 + $0x198] sm:$0xff] %v1679
      %1684 = vrot.lane.b32.xlu0 %v1333, 113
      %v1685 = vpop.permute.xlu0 %1684
      %1686 = vrot.lane.b32.xlu0 %v1336, 113
      %v1687 = vpop.permute.xlu0 %1686
      %1688 = vrot.lane.b32.xlu0 %v1379, 113
      %v1689 = vpop.permute.xlu0 %1688
      %1690 = vrot.lane.b32.xlu0 %v1382, 113
      %v1691 = vpop.permute.xlu0 %1690
      %v1692 = vsel %vm823, %v1685, %v1689
      %v1693 = vsel %vm823, %v1687, %v1691
      %v1694 = vsel %vm823, %v1689, %v1685
      %v1695 = vsel %vm823, %v1691, %v1687
      %v1696 = vld [vmem:[%s828] ss:$8 sm:$0x3]
      %v1698 = vperm.slane %v1696, 0
      %v1699 = vperm.slane %v1696, 1
      %v1702 = vmul.f32 %v1692, %v1698
      %v1703 = vmul.f32 %v1694, %v1699
      %v1704 = vmul.f32 %v1693, %v1698
      %v1705 = vmul.f32 %v1695, %v1699
      %1706 = vst [vmem:[#allocation2 + $0x1a0] sm:$0xff] %v1702
      %1707 = vst [vmem:[#allocation2 + $0x1a8] sm:$0xff] %v1703
      %1708 = vst [vmem:[#allocation2 + $0x1b0] sm:$0xff] %v1704
      %1709 = vst [vmem:[#allocation2 + $0x1b8] sm:$0xff] %v1705
      %1710 = vrot.lane.b32.xlu0 %v983, 112
      %v1711 = vpop.permute.xlu0 %1710
      %1712 = vrot.lane.b32.xlu0 %v986, 112
      %v1713 = vpop.permute.xlu0 %1712
      %1714 = vrot.lane.b32.xlu0 %v1029, 112
      %v1715 = vpop.permute.xlu0 %1714
      %1716 = vrot.lane.b32.xlu0 %v1032, 112
      %v1717 = vpop.permute.xlu0 %1716
      %v1718 = vsel %vm851, %v1711, %v1715
      %v1719 = vsel %vm851, %v1713, %v1717
      %v1720 = vsel %vm851, %v1715, %v1711
      %v1721 = vsel %vm851, %v1717, %v1713
      %v1722 = vld [vmem:[%s856] ss:$8 sm:$0x3]
      %v1724 = vperm.slane %v1722, 0
      %v1725 = vperm.slane %v1722, 1
      %v1728 = vmul.f32 %v1718, %v1724
      %v1729 = vmul.f32 %v1720, %v1725
      %v1730 = vmul.f32 %v1719, %v1724
      %v1731 = vmul.f32 %v1721, %v1725
      %1732 = vst [vmem:[#allocation2 + $0x1c0] sm:$0xff] %v1728
      %1733 = vst [vmem:[#allocation2 + $0x1c8] sm:$0xff] %v1729
      %1734 = vst [vmem:[#allocation2 + $0x1d0] sm:$0xff] %v1730
      %1735 = vst [vmem:[#allocation2 + $0x1d8] sm:$0xff] %v1731
      %1736 = vrot.lane.b32.xlu0 %v1333, 112
      %v1737 = vpop.permute.xlu0 %1736
      %1738 = vrot.lane.b32.xlu0 %v1336, 112
      %v1739 = vpop.permute.xlu0 %1738
      %1740 = vrot.lane.b32.xlu0 %v1379, 112
      %v1741 = vpop.permute.xlu0 %1740
      %1742 = vrot.lane.b32.xlu0 %v1382, 112
      %v1743 = vpop.permute.xlu0 %1742
      %v1744 = vsel %vm851, %v1737, %v1741
      %v1745 = vsel %vm851, %v1739, %v1743
      %v1746 = vsel %vm851, %v1741, %v1737
      %v1747 = vsel %vm851, %v1743, %v1739
      %v1748 = vld [vmem:[%s856] ss:$8 sm:$0x3]
      %v1750 = vperm.slane %v1748, 0
      %v1751 = vperm.slane %v1748, 1
      %v1754 = vmul.f32 %v1744, %v1750
      %v1755 = vmul.f32 %v1746, %v1751
      %v1756 = vmul.f32 %v1745, %v1750
      %v1757 = vmul.f32 %v1747, %v1751
      %1758 = vst [vmem:[#allocation2 + $0x1e0] sm:$0xff] %v1754
      %1759 = vst [vmem:[#allocation2 + $0x1e8] sm:$0xff] %v1755
      %1760 = vst [vmem:[#allocation2 + $0x1f0] sm:$0xff] %v1756
      %1761 = vst [vmem:[#allocation2 + $0x1f8] sm:$0xff] %v1757
      %1762 = vrot.lane.b32.xlu0 %v983, 111
      %v1763 = vpop.permute.xlu0 %1762
      %1764 = vrot.lane.b32.xlu0 %v986, 111
      %v1765 = vpop.permute.xlu0 %1764
      %1766 = vrot.lane.b32.xlu0 %v1029, 111
      %v1767 = vpop.permute.xlu0 %1766
      %1768 = vrot.lane.b32.xlu0 %v1032, 111
      %v1769 = vpop.permute.xlu0 %1768
      %v1770 = vsel %vm879, %v1763, %v1767
      %v1771 = vsel %vm879, %v1765, %v1769
      %v1772 = vsel %vm879, %v1767, %v1763
      %v1773 = vsel %vm879, %v1769, %v1765
      %v1774 = vld [vmem:[%s884] ss:$8 sm:$0x3]
      %v1776 = vperm.slane %v1774, 0
      %v1777 = vperm.slane %v1774, 1
      %v1780 = vmul.f32 %v1770, %v1776
      %v1781 = vmul.f32 %v1772, %v1777
      %v1782 = vmul.f32 %v1771, %v1776
      %v1783 = vmul.f32 %v1773, %v1777
      %1784 = vst [vmem:[#allocation2 + $0x200] sm:$0xff] %v1780
      %1785 = vst [vmem:[#allocation2 + $0x208] sm:$0xff] %v1781
      %1786 = vst [vmem:[#allocation2 + $0x210] sm:$0xff] %v1782
      %1787 = vst [vmem:[#allocation2 + $0x218] sm:$0xff] %v1783
      %1788 = vrot.lane.b32.xlu0 %v1333, 111
      %v1789 = vpop.permute.xlu0 %1788
      %1790 = vrot.lane.b32.xlu0 %v1336, 111
      %v1791 = vpop.permute.xlu0 %1790
      %1792 = vrot.lane.b32.xlu0 %v1379, 111
      %v1793 = vpop.permute.xlu0 %1792
      %1794 = vrot.lane.b32.xlu0 %v1382, 111
      %v1795 = vpop.permute.xlu0 %1794
      %v1796 = vsel %vm879, %v1789, %v1793
      %v1797 = vsel %vm879, %v1791, %v1795
      %v1798 = vsel %vm879, %v1793, %v1789
      %v1799 = vsel %vm879, %v1795, %v1791
      %v1800 = vld [vmem:[%s884] ss:$8 sm:$0x3]
      %v1802 = vperm.slane %v1800, 0
      %v1803 = vperm.slane %v1800, 1
      %v1806 = vmul.f32 %v1796, %v1802
      %v1807 = vmul.f32 %v1798, %v1803
      %v1808 = vmul.f32 %v1797, %v1802
      %v1809 = vmul.f32 %v1799, %v1803
      %1810 = vst [vmem:[#allocation2 + $0x220] sm:$0xff] %v1806
      %1811 = vst [vmem:[#allocation2 + $0x228] sm:$0xff] %v1807
      %1812 = vst [vmem:[#allocation2 + $0x230] sm:$0xff] %v1808
      %1813 = vst [vmem:[#allocation2 + $0x238] sm:$0xff] %v1809
      %v1814 = vld [vmem:[#allocation2] sm:$0xff]
      %v1815 = vld [vmem:[#allocation2 + $0x8] sm:$0xff]
      %v1816 = vld [vmem:[#allocation2 + $0x10] sm:$0xff]
      %v1817 = vld [vmem:[#allocation2 + $0x18] sm:$0xff]
      %v1818 = vld [vmem:[#allocation2 + $0x20] sm:$0xff]
      %v1819 = vld [vmem:[#allocation2 + $0x28] sm:$0xff]
      %v1820 = vld [vmem:[#allocation2 + $0x30] sm:$0xff]
      %v1821 = vld [vmem:[#allocation2 + $0x38] sm:$0xff]
      %v1822 = vld [vmem:[#allocation2 + $0x40] sm:$0xff]
      %v1823 = vld [vmem:[#allocation2 + $0x48] sm:$0xff]
      %v1824 = vld [vmem:[#allocation2 + $0x50] sm:$0xff]
      %v1825 = vld [vmem:[#allocation2 + $0x58] sm:$0xff]
      %v1826 = vld [vmem:[#allocation2 + $0x60] sm:$0xff]
      %v1827 = vld [vmem:[#allocation2 + $0x68] sm:$0xff]
      %v1828 = vld [vmem:[#allocation2 + $0x70] sm:$0xff]
      %v1829 = vld [vmem:[#allocation2 + $0x78] sm:$0xff]
      %v1830 = vld [vmem:[#allocation2 + $0x80] sm:$0xff]
      %v1831 = vld [vmem:[#allocation2 + $0x88] sm:$0xff]
      %v1832 = vld [vmem:[#allocation2 + $0x90] sm:$0xff]
      %v1833 = vld [vmem:[#allocation2 + $0x98] sm:$0xff]
      %v1834 = vld [vmem:[#allocation2 + $0xa0] sm:$0xff]
      %v1835 = vld [vmem:[#allocation2 + $0xa8] sm:$0xff]
      %v1836 = vld [vmem:[#allocation2 + $0xb0] sm:$0xff]
      %v1837 = vld [vmem:[#allocation2 + $0xb8] sm:$0xff]
      %v1838 = vld [vmem:[#allocation2 + $0xc0] sm:$0xff]
      %v1839 = vld [vmem:[#allocation2 + $0xc8] sm:$0xff]
      %v1840 = vld [vmem:[#allocation2 + $0xd0] sm:$0xff]
      %v1841 = vld [vmem:[#allocation2 + $0xd8] sm:$0xff]
      %v1842 = vld [vmem:[#allocation2 + $0xe0] sm:$0xff]
      %v1843 = vld [vmem:[#allocation2 + $0xe8] sm:$0xff]
      %v1844 = vld [vmem:[#allocation2 + $0xf0] sm:$0xff]
      %v1845 = vld [vmem:[#allocation2 + $0xf8] sm:$0xff]
      %v1846 = vld [vmem:[#allocation2 + $0x100] sm:$0xff]
      %v1847 = vld [vmem:[#allocation2 + $0x108] sm:$0xff]
      %v1848 = vld [vmem:[#allocation2 + $0x110] sm:$0xff]
      %v1849 = vld [vmem:[#allocation2 + $0x118] sm:$0xff]
      %v1850 = vld [vmem:[#allocation2 + $0x120] sm:$0xff]
      %v1851 = vld [vmem:[#allocation2 + $0x128] sm:$0xff]
      %v1852 = vld [vmem:[#allocation2 + $0x130] sm:$0xff]
      %v1853 = vld [vmem:[#allocation2 + $0x138] sm:$0xff]
      %v1854 = vld [vmem:[#allocation2 + $0x140] sm:$0xff]
      %v1855 = vld [vmem:[#allocation2 + $0x148] sm:$0xff]
      %v1856 = vld [vmem:[#allocation2 + $0x150] sm:$0xff]
      %v1857 = vld [vmem:[#allocation2 + $0x158] sm:$0xff]
      %v1858 = vld [vmem:[#allocation2 + $0x160] sm:$0xff]
      %v1859 = vld [vmem:[#allocation2 + $0x168] sm:$0xff]
      %v1860 = vld [vmem:[#allocation2 + $0x170] sm:$0xff]
      %v1861 = vld [vmem:[#allocation2 + $0x178] sm:$0xff]
      %v1862 = vld [vmem:[#allocation2 + $0x180] sm:$0xff]
      %v1863 = vld [vmem:[#allocation2 + $0x188] sm:$0xff]
      %v1864 = vld [vmem:[#allocation2 + $0x190] sm:$0xff]
      %v1865 = vld [vmem:[#allocation2 + $0x198] sm:$0xff]
      %v1866 = vld [vmem:[#allocation2 + $0x1a0] sm:$0xff]
      %v1867 = vld [vmem:[#allocation2 + $0x1a8] sm:$0xff]
      %v1868 = vld [vmem:[#allocation2 + $0x1b0] sm:$0xff]
      %v1869 = vld [vmem:[#allocation2 + $0x1b8] sm:$0xff]
      %v1870 = vld [vmem:[#allocation2 + $0x1c0] sm:$0xff]
      %v1871 = vld [vmem:[#allocation2 + $0x1c8] sm:$0xff]
      %v1872 = vld [vmem:[#allocation2 + $0x1d0] sm:$0xff]
      %v1873 = vld [vmem:[#allocation2 + $0x1d8] sm:$0xff]
      %v1874 = vld [vmem:[#allocation2 + $0x1e0] sm:$0xff]
      %v1875 = vld [vmem:[#allocation2 + $0x1e8] sm:$0xff]
      %v1876 = vld [vmem:[#allocation2 + $0x1f0] sm:$0xff]
      %v1877 = vld [vmem:[#allocation2 + $0x1f8] sm:$0xff]
      %v1878 = vld [vmem:[#allocation2 + $0x200] sm:$0xff]
      %v1879 = vld [vmem:[#allocation2 + $0x208] sm:$0xff]
      %v1880 = vld [vmem:[#allocation2 + $0x210] sm:$0xff]
      %v1881 = vld [vmem:[#allocation2 + $0x218] sm:$0xff]
      %v1882 = vld [vmem:[#allocation2 + $0x220] sm:$0xff]
      %v1883 = vld [vmem:[#allocation2 + $0x228] sm:$0xff]
      %v1884 = vld [vmem:[#allocation2 + $0x230] sm:$0xff]
      %v1885 = vld [vmem:[#allocation2 + $0x238] sm:$0xff]
      %vm1886 = vcmask 261120
      %v1888 = vsel %vm1886, %v1386, 0
      %v1891 = vsel %vm1886, %v1389, 0
      %1893 = vmatpush.msra.mxu0 %v1844
      %1894 = vmatpush.msra.mxu0 %v1842
      %1895 = vmatpush.msra.mxu0 %v1840
      %1896 = vmatpush.msra.mxu0 %v1838
      %1897 = vmatpush.msra.mxu0 %v1836
      %1898 = vmatpush.msra.mxu0 %v1834
      %1899 = vmatpush.msra.mxu0 %v1832
      %1900 = vmatpush.msra.mxu0 %v1830
      %1901 = vmatpush.msra.mxu0 %v1828
      %1902 = vmatpush.msra.mxu0 %v1826
      %1903 = vmatpush.msra.mxu0 %v1824
      %1904 = vmatpush.msra.mxu0 %v1822
      %1905 = vmatpush.msra.mxu0 %v1820
      %1906 = vmatpush.msra.mxu0 %v1818
      %1907 = vmatpush.msra.mxu0 %v1816
      %1908 = vmatpush.msra.mxu0 %v1814
      %1909 = vmatmul.f32.gmra.mxu0 %v1384
      %v1910 = vpop.f32.mrf.mxu0
      %v1911 = vadd.f32 0.0, %v1910
      %1912 = vmatmul.f32.gmra.mxu0 %v1387
      %v1913 = vpop.f32.mrf.mxu0
      %v1914 = vadd.f32 0.0, %v1913
      %1915 = vdwg.mxu0
      %1916 = vmatpush.msra.mxu0 %v1876
      %1917 = vmatpush.msra.mxu0 %v1874
      %1918 = vmatpush.msra.mxu0 %v1872
      %1919 = vmatpush.msra.mxu0 %v1870
      %1920 = vmatpush.msra.mxu0 %v1868
      %1921 = vmatpush.msra.mxu0 %v1866
      %1922 = vmatpush.msra.mxu0 %v1864
      %1923 = vmatpush.msra.mxu0 %v1862
      %1924 = vmatpush.msra.mxu0 %v1860
      %1925 = vmatpush.msra.mxu0 %v1858
      %1926 = vmatpush.msra.mxu0 %v1856
      %1927 = vmatpush.msra.mxu0 %v1854
      %1928 = vmatpush.msra.mxu0 %v1852
      %1929 = vmatpush.msra.mxu0 %v1850
      %1930 = vmatpush.msra.mxu0 %v1848
      %1931 = vmatpush.msra.mxu0 %v1846
      %1932 = vmatmul.f32.gmra.mxu0 %v1385
      %v1933 = vpop.f32.mrf.mxu0
      %v1934 = vadd.f32 %v1911, %v1933
      %1935 = vmatmul.f32.gmra.mxu0 %v1388
      %v1936 = vpop.f32.mrf.mxu0
      %v1937 = vadd.f32 %v1914, %v1936
      %1938 = vdwg.mxu0
      %1939 = vmatpush.msra.mxu0 0.0
      %1940 = vmatpush.msra.mxu0 0.0
      %1941 = vmatpush.msra.mxu0 0.0
      %1942 = vmatpush.msra.mxu0 0.0
      %1943 = vmatpush.msra.mxu0 0.0
      %1944 = vmatpush.msra.mxu0 0.0
      %1945 = vmatpush.msra.mxu0 0.0
      %1946 = vmatpush.msra.mxu0 0.0
      %1947 = vmatpush.msra.mxu0 0.0
      %1948 = vmatpush.msra.mxu0 0.0
      %1949 = vmatpush.msra.mxu0 0.0
      %1950 = vmatpush.msra.mxu0 0.0
      %1951 = vmatpush.msra.mxu0 %v1884
      %1952 = vmatpush.msra.mxu0 %v1882
      %1953 = vmatpush.msra.mxu0 %v1880
      %1954 = vmatpush.msra.mxu0 %v1878
      %1955 = vmatmul.f32.gmra.mxu0 %v1888
      %v1956 = vpop.f32.mrf.mxu0
      %v1957 = vadd.f32 %v1934, %v1956
      %1958 = vmatmul.f32.gmra.mxu0 %v1891
      %v1959 = vpop.f32.mrf.mxu0
      %v1960 = vadd.f32 %v1937, %v1959
      %1961 = vdwg.mxu0
      %1962 = vmatpush.msra.mxu0 %v1845
      %1963 = vmatpush.msra.mxu0 %v1843
      %1964 = vmatpush.msra.mxu0 %v1841
      %1965 = vmatpush.msra.mxu0 %v1839
      %1966 = vmatpush.msra.mxu0 %v1837
      %1967 = vmatpush.msra.mxu0 %v1835
      %1968 = vmatpush.msra.mxu0 %v1833
      %1969 = vmatpush.msra.mxu0 %v1831
      %1970 = vmatpush.msra.mxu0 %v1829
      %1971 = vmatpush.msra.mxu0 %v1827
      %1972 = vmatpush.msra.mxu0 %v1825
      %1973 = vmatpush.msra.mxu0 %v1823
      %1974 = vmatpush.msra.mxu0 %v1821
      %1975 = vmatpush.msra.mxu0 %v1819
      %1976 = vmatpush.msra.mxu0 %v1817
      %1977 = vmatpush.msra.mxu0 %v1815
      %1978 = vmatmul.f32.gmra.mxu0 %v1384
      %v1979 = vpop.f32.mrf.mxu0
      %v1980 = vadd.f32 0.0, %v1979
      %1981 = vmatmul.f32.gmra.mxu0 %v1387
      %v1982 = vpop.f32.mrf.mxu0
      %v1983 = vadd.f32 0.0, %v1982
      %1984 = vdwg.mxu0
      %1985 = vmatpush.msra.mxu0 %v1877
      %1986 = vmatpush.msra.mxu0 %v1875
      %1987 = vmatpush.msra.mxu0 %v1873
      %1988 = vmatpush.msra.mxu0 %v1871
      %1989 = vmatpush.msra.mxu0 %v1869
      %1990 = vmatpush.msra.mxu0 %v1867
      %1991 = vmatpush.msra.mxu0 %v1865
      %1992 = vmatpush.msra.mxu0 %v1863
      %1993 = vmatpush.msra.mxu0 %v1861
      %1994 = vmatpush.msra.mxu0 %v1859
      %1995 = vmatpush.msra.mxu0 %v1857
      %1996 = vmatpush.msra.mxu0 %v1855
      %1997 = vmatpush.msra.mxu0 %v1853
      %1998 = vmatpush.msra.mxu0 %v1851
      %1999 = vmatpush.msra.mxu0 %v1849
      %2000 = vmatpush.msra.mxu0 %v1847
      %2001 = vmatmul.f32.gmra.mxu0 %v1385
      %v2002 = vpop.f32.mrf.mxu0
      %v2003 = vadd.f32 %v1980, %v2002
      %2004 = vmatmul.f32.gmra.mxu0 %v1388
      %v2005 = vpop.f32.mrf.mxu0
      %v2006 = vadd.f32 %v1983, %v2005
      %2007 = vdwg.mxu0
      %2008 = vmatpush.msra.mxu0 0.0
      %2009 = vmatpush.msra.mxu0 0.0
      %2010 = vmatpush.msra.mxu0 0.0
      %2011 = vmatpush.msra.mxu0 0.0
      %2012 = vmatpush.msra.mxu0 0.0
      %2013 = vmatpush.msra.mxu0 0.0
      %2014 = vmatpush.msra.mxu0 0.0
      %2015 = vmatpush.msra.mxu0 0.0
      %2016 = vmatpush.msra.mxu0 0.0
      %2017 = vmatpush.msra.mxu0 0.0
      %2018 = vmatpush.msra.mxu0 0.0
      %2019 = vmatpush.msra.mxu0 0.0
      %2020 = vmatpush.msra.mxu0 %v1885
      %2021 = vmatpush.msra.mxu0 %v1883
      %2022 = vmatpush.msra.mxu0 %v1881
      %2023 = vmatpush.msra.mxu0 %v1879
      %2024 = vmatmul.f32.gmra.mxu0 %v1888
      %v2025 = vpop.f32.mrf.mxu0
      %v2026 = vadd.f32 %v2003, %v2025
      %2027 = vmatmul.f32.gmra.mxu0 %v1891
      %v2028 = vpop.f32.mrf.mxu0
      %v2029 = vadd.f32 %v2006, %v2028
      %2030 = vdwg.mxu0
      %v2031 = vmul.f32 %v1957, 0.1
      %v2032 = vmul.f32 %v2026, 0.1
      %v2033 = vmul.f32 %v1960, 0.1
      %v2034 = vmul.f32 %v2029, 0.1
      %v2035 = vmax.f32 %v1957, %v2031
      %v2036 = vmax.f32 %v2026, %v2032
      %v2037 = vmax.f32 %v1960, %v2033
      %v2038 = vmax.f32 %v2029, %v2034
      %v2039 = vxor.u32 %v2035, 2147483648
      %v2040 = vxor.u32 %v2036, 2147483648
      %v2041 = vxor.u32 %v2037, 2147483648
      %v2042 = vxor.u32 %v2038, 2147483648
      %v2043 = vmul.f32 %v2039, 1.442695
      %v2044 = vpow.pop %v2043
      %v2045 = vmul.f32 %v2040, 1.442695
      %v2046 = vpow.pop %v2045
      %v2047 = vmul.f32 %v2041, 1.442695
      %v2048 = vpow.pop %v2047
      %v2049 = vmul.f32 %v2042, 1.442695
      %v2050 = vpow.pop %v2049
      %v2051 = vadd.f32 %v2044, 1.0
      %v2052 = vadd.f32 %v2046, 1.0
      %v2053 = vadd.f32 %v2048, 1.0
      %v2054 = vadd.f32 %v2050, 1.0
      %v2055 = vrcp.pop %v2051
      %v2056 = vmul.f32 %v2051, %v2055
      %v2057 = vsub.f32 1.0, %v2056
      %v2058 = vmul.f32 %v2055, %v2057
      %v2059 = vadd.f32 %v2055, %v2058
      %vm2060 = vweird.f32 %v2051
      %vm2061 = vweird.f32 %v2055
      %vm2062 = vmor %vm2060, %vm2061
      %v2063 = vsel %vm2062, %v2055, %v2059
      %v2064 = vand.u32 2147483647, %v2051
      %vm2065 = vcmp.eq.f32.partialorder %v2064, 8.507059e+37
      %v2066 = vand.u32 %v2051, 2147483648
      %v2067 = vor.u32 1.1754944e-38, %v2066
      %v2068 = vsel %vm2065, %v2067, %v2063
      %v2069 = vmul.f32 1.0, %v2068
      %v2070 = vrcp.pop %v2052
      %v2071 = vmul.f32 %v2052, %v2070
      %v2072 = vsub.f32 1.0, %v2071
      %v2073 = vmul.f32 %v2070, %v2072
      %v2074 = vadd.f32 %v2070, %v2073
      %vm2075 = vweird.f32 %v2052
      %vm2076 = vweird.f32 %v2070
      %vm2077 = vmor %vm2075, %vm2076
      %v2078 = vsel %vm2077, %v2070, %v2074
      %v2079 = vand.u32 2147483647, %v2052
      %vm2080 = vcmp.eq.f32.partialorder %v2079, 8.507059e+37
      %v2081 = vand.u32 %v2052, 2147483648
      %v2082 = vor.u32 1.1754944e-38, %v2081
      %v2083 = vsel %vm2080, %v2082, %v2078
      %v2084 = vmul.f32 1.0, %v2083
      %v2085 = vrcp.pop %v2053
      %v2086 = vmul.f32 %v2053, %v2085
      %v2087 = vsub.f32 1.0, %v2086
      %v2088 = vmul.f32 %v2085, %v2087
      %v2089 = vadd.f32 %v2085, %v2088
      %vm2090 = vweird.f32 %v2053
      %vm2091 = vweird.f32 %v2085
      %vm2092 = vmor %vm2090, %vm2091
      %v2093 = vsel %vm2092, %v2085, %v2089
      %v2094 = vand.u32 2147483647, %v2053
      %vm2095 = vcmp.eq.f32.partialorder %v2094, 8.507059e+37
      %v2096 = vand.u32 %v2053, 2147483648
      %v2097 = vor.u32 1.1754944e-38, %v2096
      %v2098 = vsel %vm2095, %v2097, %v2093
      %v2099 = vmul.f32 1.0, %v2098
      %v2100 = vrcp.pop %v2054
      %v2101 = vmul.f32 %v2054, %v2100
      %v2102 = vsub.f32 1.0, %v2101
      %v2103 = vmul.f32 %v2100, %v2102
      %v2104 = vadd.f32 %v2100, %v2103
      %vm2105 = vweird.f32 %v2054
      %vm2106 = vweird.f32 %v2100
      %vm2107 = vmor %vm2105, %vm2106
      %v2108 = vsel %vm2107, %v2100, %v2104
      %v2109 = vand.u32 2147483647, %v2054
      %vm2110 = vcmp.eq.f32.partialorder %v2109, 8.507059e+37
      %v2111 = vand.u32 %v2054, 2147483648
      %v2112 = vor.u32 1.1754944e-38, %v2111
      %v2113 = vsel %vm2110, %v2112, %v2108
      %v2114 = vmul.f32 1.0, %v2113
      %v2115 = vmul.f32 %v2069, %v1333
      %v2116 = vmul.f32 %v2084, %v1379
      %v2117 = vmul.f32 %v2099, %v1336
      %v2118 = vmul.f32 %v2114, %v1382
      %v2119 = vadd.f32 %v2115, %v983
      %v2120 = vadd.f32 %v2116, %v1029
      %v2121 = vadd.f32 %v2117, %v986
      %v2122 = vadd.f32 %v2118, %v1032
      %v2123 = vsub.f32 1.0, %v2069
      %v2124 = vsub.f32 1.0, %v2084
      %v2125 = vsub.f32 1.0, %v2099
      %v2126 = vsub.f32 1.0, %v2114
      %v2127 = vmul.f32 %v2123, %v983
      %v2128 = vmul.f32 %v2124, %v1029
      %v2129 = vmul.f32 %v2125, %v986
      %v2130 = vmul.f32 %v2126, %v1032
      %v2131 = vadd.f32 %v2127, %v1333
      %v2132 = vadd.f32 %v2128, %v1379
      %v2133 = vadd.f32 %v2129, %v1336
      %v2134 = vadd.f32 %v2130, %v1382
      %2135 = vst [vmem:[#allocation3] sm:$0xff] %v2119
      %2136 = vst [vmem:[#allocation3 + $0x8] sm:$0xff] %v2120
      %2137 = vst [vmem:[#allocation3 + $0x10] sm:$0xff] %v2121
      %2138 = vst [vmem:[#allocation3 + $0x18] sm:$0xff] %v2122
      %2139 = vst [vmem:[#allocation3 + $0x20] sm:$0xff] %v2131
      %2140 = vst [vmem:[#allocation3 + $0x28] sm:$0xff] %v2132
      %2141 = vst [vmem:[#allocation3 + $0x30] sm:$0xff] %v2133
      %2142 = vst [vmem:[#allocation3 + $0x38] sm:$0xff] %v2134
      %v2143 = vld [vmem:[#allocation3] sm:$0xff]
      %v2144 = vld [vmem:[#allocation3 + $0x8] sm:$0xff]
      %v2145 = vld [vmem:[#allocation3 + $0x10] sm:$0xff]
      %v2146 = vld [vmem:[#allocation3 + $0x18] sm:$0xff]
      %v2147 = vld [vmem:[#allocation3 + $0x20] sm:$0xff]
      %v2148 = vld [vmem:[#allocation3 + $0x28] sm:$0xff]
      %v2149 = vld [vmem:[#allocation3 + $0x30] sm:$0xff]
      %v2150 = vld [vmem:[#allocation3 + $0x38] sm:$0xff]
      %v2151 = vadd.f32 %v2143, %v2144
      %2152 = vadd.xlane.f32.xlu0 %v2151
      %v2153 = vpop.xlane.xlu0 %2152
      %v2154 = vadd.f32 %v2145, %v2146
      %2155 = vadd.xlane.f32.xlu0 %v2154
      %v2156 = vpop.xlane.xlu0 %2155
      %v2157 = vadd.f32 %v2147, %v2148
      %2158 = vadd.xlane.f32.xlu0 %v2157
      %v2159 = vpop.xlane.xlu0 %2158
      %v2160 = vadd.f32 %v2149, %v2150
      %2161 = vadd.xlane.f32.xlu0 %v2160
      %v2162 = vpop.xlane.xlu0 %2161
      %v2163 = vmul.f32 %v2153, %v585
      %v2164 = vmul.f32 %v2156, %v585
      %v2165 = vmul.f32 %v2159, %v585
      %v2166 = vmul.f32 %v2162, %v585
      %v2167 = vsub.f32 %v2143, %v2163
      %v2168 = vsub.f32 %v2144, %v2163
      %v2169 = vsub.f32 %v2145, %v2164
      %v2170 = vsub.f32 %v2146, %v2164
      %v2171 = vsub.f32 %v2147, %v2165
      %v2172 = vsub.f32 %v2148, %v2165
      %v2173 = vsub.f32 %v2149, %v2166
      %v2174 = vsub.f32 %v2150, %v2166
      %v2175 = vmul.f32 %v2167, %v2167
      %v2176 = vmul.f32 %v2168, %v2168
      %v2177 = vmul.f32 %v2169, %v2169
      %v2178 = vmul.f32 %v2170, %v2170
      %v2179 = vmul.f32 %v2171, %v2171
      %v2180 = vmul.f32 %v2172, %v2172
      %v2181 = vmul.f32 %v2173, %v2173
      %v2182 = vmul.f32 %v2174, %v2174
      %v2183 = vadd.f32 %v2175, %v2176
      %2184 = vadd.xlane.f32.xlu0 %v2183
      %v2185 = vpop.xlane.xlu0 %2184
      %v2186 = vadd.f32 %v2177, %v2178
      %2187 = vadd.xlane.f32.xlu0 %v2186
      %v2188 = vpop.xlane.xlu0 %2187
      %v2189 = vadd.f32 %v2179, %v2180
      %2190 = vadd.xlane.f32.xlu0 %v2189
      %v2191 = vpop.xlane.xlu0 %2190
      %v2192 = vadd.f32 %v2181, %v2182
      %2193 = vadd.xlane.f32.xlu0 %v2192
      %v2194 = vpop.xlane.xlu0 %2193
      %v2195 = vmul.f32 %v2185, %v585
      %v2196 = vmul.f32 %v2188, %v585
      %v2197 = vmul.f32 %v2191, %v585
      %v2198 = vmul.f32 %v2194, %v585
      %v2199 = vrsqrt.pop %v2195
      %v2200 = vmul.f32 %v2199, %v2195
      %v2201 = vmul.f32 %v2200, %v2199
      %v2202 = vmul.f32 0.5, %v2201
      %v2203 = vsub.f32 1.5, %v2202
      %v2204 = vmul.f32 %v2199, %v2203
      %v2205 = vmul.f32 %v2195, %v2204
      %vm2206 = vcmp.eq.f32.partialorder %v2195, inf
      %v2207 = vsel %vm2206, %v2195, %v2205
      %vm2208 = vcmp.eq.f32.partialorder %v2195, 0.0
      %v2209 = vand.u32 %v2195, 2147483648
      %v2210 = vsel %vm2208, %v2209, %v2207
      %v2211 = vrsqrt.pop %v2196
      %v2212 = vmul.f32 %v2211, %v2196
      %v2213 = vmul.f32 %v2212, %v2211
      %v2214 = vmul.f32 0.5, %v2213
      %v2215 = vsub.f32 1.5, %v2214
      %v2216 = vmul.f32 %v2211, %v2215
      %v2217 = vmul.f32 %v2196, %v2216
      %vm2218 = vcmp.eq.f32.partialorder %v2196, inf
      %v2219 = vsel %vm2218, %v2196, %v2217
      %vm2220 = vcmp.eq.f32.partialorder %v2196, 0.0
      %v2221 = vand.u32 %v2196, 2147483648
      %v2222 = vsel %vm2220, %v2221, %v2219
      %v2223 = vrsqrt.pop %v2197
      %v2224 = vmul.f32 %v2223, %v2197
      %v2225 = vmul.f32 %v2224, %v2223
      %v2226 = vmul.f32 0.5, %v2225
      %v2227 = vsub.f32 1.5, %v2226
      %v2228 = vmul.f32 %v2223, %v2227
      %v2229 = vmul.f32 %v2197, %v2228
      %vm2230 = vcmp.eq.f32.partialorder %v2197, inf
      %v2231 = vsel %vm2230, %v2197, %v2229
      %vm2232 = vcmp.eq.f32.partialorder %v2197, 0.0
      %v2233 = vand.u32 %v2197, 2147483648
      %v2234 = vsel %vm2232, %v2233, %v2231
      %v2235 = vrsqrt.pop %v2198
      %v2236 = vmul.f32 %v2235, %v2198
      %v2237 = vmul.f32 %v2236, %v2235
      %v2238 = vmul.f32 0.5, %v2237
      %v2239 = vsub.f32 1.5, %v2238
      %v2240 = vmul.f32 %v2235, %v2239
      %v2241 = vmul.f32 %v2198, %v2240
      %vm2242 = vcmp.eq.f32.partialorder %v2198, inf
      %v2243 = vsel %vm2242, %v2198, %v2241
      %vm2244 = vcmp.eq.f32.partialorder %v2198, 0.0
      %v2245 = vand.u32 %v2198, 2147483648
      %v2246 = vsel %vm2244, %v2245, %v2243
      %v2247 = vadd.f32 %v2163, %v2210
      %v2248 = vadd.f32 %v2164, %v2222
      %v2249 = vadd.f32 %v2165, %v2234
      %v2250 = vadd.f32 %v2166, %v2246
      %v2251 = vld [vmem:[%s7] sm:$0xff]
      %v2252 = vld [vmem:[%s8] sm:$0xff]
      %v2254 = vsel %vm1886, %v2251, 0
      %2256 = vmatpush.msra.mxu0 0.0
      %2257 = vmatpush.msra.mxu0 0.0
      %2258 = vmatpush.msra.mxu0 0.0
      %2259 = vmatpush.msra.mxu0 0.0
      %2260 = vmatpush.msra.mxu0 0.0
      %2261 = vmatpush.msra.mxu0 0.0
      %2262 = vmatpush.msra.mxu0 0.0
      %2263 = vmatpush.msra.mxu0 0.0
      %2264 = vmatpush.msra.mxu0 0.0
      %2265 = vmatpush.msra.mxu0 0.0
      %2266 = vmatpush.msra.mxu0 0.0
      %2267 = vmatpush.msra.mxu0 0.0
      %2268 = vmatpush.msra.mxu0 %v2250
      %2269 = vmatpush.msra.mxu0 %v2249
      %2270 = vmatpush.msra.mxu0 %v2248
      %2271 = vmatpush.msra.mxu0 %v2247
      %2272 = vmatmul.f32.gmra.mxu0 %v2254
      %v2273 = vpop.f32.mrf.mxu0
      %v2274 = vadd.f32 %v2252, %v2273
      %2275 = vdwg.mxu0
      %v2276 = vmul.f32 %v2274, 0.1
      %v2277 = vmax.f32 %v2274, %v2276
      %v2278 = vld [vmem:[%s9] sm:$0xff]
      %v2279 = vld [vmem:[%s9 + $0x8] sm:$0xff]
      %v2280 = vld [vmem:[%s9 + $0x10] sm:$0xff]
      %v2281 = vld [vmem:[%s9 + $0x18] sm:$0xff]
      %v2282 = vld [vmem:[%s10] sm:$0xff]
      %v2283 = vld [vmem:[%s10 + $0x8] sm:$0xff]
      %v2284 = vld [vmem:[%s10 + $0x10] sm:$0xff]
      %v2285 = vld [vmem:[%s10 + $0x18] sm:$0xff]
      %vm2286 = vcmask 64512
      %v2288 = vsel %vm2286, %v2278, 0
      %v2291 = vsel %vm2286, %v2279, 0
      %v2294 = vsel %vm2286, %v2280, 0
      %v2297 = vsel %vm2286, %v2281, 0
      %2299 = vmatpush.msra.mxu0 0.0
      %2300 = vmatpush.msra.mxu0 0.0
      %2301 = vmatpush.msra.mxu0 0.0
      %2302 = vmatpush.msra.mxu0 0.0
      %2303 = vmatpush.msra.mxu0 0.0
      %2304 = vmatpush.msra.mxu0 0.0
      %2305 = vmatpush.msra.mxu0 0.0
      %2306 = vmatpush.msra.mxu0 0.0
      %2307 = vmatpush.msra.mxu0 0.0
      %2308 = vmatpush.msra.mxu0 0.0
      %2309 = vmatpush.msra.mxu0 0.0
      %2310 = vmatpush.msra.mxu0 0.0
      %2311 = vmatpush.msra.mxu0 0.0
      %2312 = vmatpush.msra.mxu0 0.0
      %2313 = vmatpush.msra.mxu0 0.0
      %2314 = vmatpush.msra.mxu0 %v2277
      %2315 = vmatmul.f32.gmra.mxu0 %v2288
      %v2316 = vpop.f32.mrf.mxu0
      %v2317 = vadd.f32 %v2282, %v2316
      %2318 = vmatmul.f32.gmra.mxu0 %v2291
      %v2319 = vpop.f32.mrf.mxu0
      %v2320 = vadd.f32 %v2283, %v2319
      %2321 = vmatmul.f32.gmra.mxu0 %v2294
      %v2322 = vpop.f32.mrf.mxu0
      %v2323 = vadd.f32 %v2284, %v2322
      %2324 = vmatmul.f32.gmra.mxu0 %v2297
      %v2325 = vpop.f32.mrf.mxu0
      %v2326 = vadd.f32 %v2285, %v2325
      %2327 = vdwg.mxu0
      %v2328 = vxor.u32 %v2317, 2147483648
      %v2329 = vxor.u32 %v2320, 2147483648
      %v2330 = vxor.u32 %v2323, 2147483648
      %v2331 = vxor.u32 %v2326, 2147483648
      %v2332 = vmul.f32 %v2328, 1.442695
      %v2333 = vpow.pop %v2332
      %v2334 = vmul.f32 %v2329, 1.442695
      %v2335 = vpow.pop %v2334
      %v2336 = vmul.f32 %v2330, 1.442695
      %v2337 = vpow.pop %v2336
      %v2338 = vmul.f32 %v2331, 1.442695
      %v2339 = vpow.pop %v2338
      %v2340 = vadd.f32 %v2333, 1.0
      %v2341 = vadd.f32 %v2335, 1.0
      %v2342 = vadd.f32 %v2337, 1.0
      %v2343 = vadd.f32 %v2339, 1.0
      %v2344 = vrcp.pop %v2340
      %v2345 = vmul.f32 %v2340, %v2344
      %v2346 = vsub.f32 1.0, %v2345
      %v2347 = vmul.f32 %v2344, %v2346
      %v2348 = vadd.f32 %v2344, %v2347
      %vm2349 = vweird.f32 %v2340
      %vm2350 = vweird.f32 %v2344
      %vm2351 = vmor %vm2349, %vm2350
      %v2352 = vsel %vm2351, %v2344, %v2348
      %v2353 = vand.u32 2147483647, %v2340
      %vm2354 = vcmp.eq.f32.partialorder %v2353, 8.507059e+37
      %v2355 = vand.u32 %v2340, 2147483648
      %v2356 = vor.u32 1.1754944e-38, %v2355
      %v2357 = vsel %vm2354, %v2356, %v2352
      %v2358 = vmul.f32 1.0, %v2357
      %v2359 = vrcp.pop %v2341
      %v2360 = vmul.f32 %v2341, %v2359
      %v2361 = vsub.f32 1.0, %v2360
      %v2362 = vmul.f32 %v2359, %v2361
      %v2363 = vadd.f32 %v2359, %v2362
      %vm2364 = vweird.f32 %v2341
      %vm2365 = vweird.f32 %v2359
      %vm2366 = vmor %vm2364, %vm2365
      %v2367 = vsel %vm2366, %v2359, %v2363
      %v2368 = vand.u32 2147483647, %v2341
      %vm2369 = vcmp.eq.f32.partialorder %v2368, 8.507059e+37
      %v2370 = vand.u32 %v2341, 2147483648
      %v2371 = vor.u32 1.1754944e-38, %v2370
      %v2372 = vsel %vm2369, %v2371, %v2367
      %v2373 = vmul.f32 1.0, %v2372
      %v2374 = vrcp.pop %v2342
      %v2375 = vmul.f32 %v2342, %v2374
      %v2376 = vsub.f32 1.0, %v2375
      %v2377 = vmul.f32 %v2374, %v2376
      %v2378 = vadd.f32 %v2374, %v2377
      %vm2379 = vweird.f32 %v2342
      %vm2380 = vweird.f32 %v2374
      %vm2381 = vmor %vm2379, %vm2380
      %v2382 = vsel %vm2381, %v2374, %v2378
      %v2383 = vand.u32 2147483647, %v2342
      %vm2384 = vcmp.eq.f32.partialorder %v2383, 8.507059e+37
      %v2385 = vand.u32 %v2342, 2147483648
      %v2386 = vor.u32 1.1754944e-38, %v2385
      %v2387 = vsel %vm2384, %v2386, %v2382
      %v2388 = vmul.f32 1.0, %v2387
      %v2389 = vrcp.pop %v2343
      %v2390 = vmul.f32 %v2343, %v2389
      %v2391 = vsub.f32 1.0, %v2390
      %v2392 = vmul.f32 %v2389, %v2391
      %v2393 = vadd.f32 %v2389, %v2392
      %vm2394 = vweird.f32 %v2343
      %vm2395 = vweird.f32 %v2389
      %vm2396 = vmor %vm2394, %vm2395
      %v2397 = vsel %vm2396, %v2389, %v2393
      %v2398 = vand.u32 2147483647, %v2343
      %vm2399 = vcmp.eq.f32.partialorder %v2398, 8.507059e+37
      %v2400 = vand.u32 %v2343, 2147483648
      %v2401 = vor.u32 1.1754944e-38, %v2400
      %v2402 = vsel %vm2399, %v2401, %v2397
      %v2403 = vmul.f32 1.0, %v2402
      %2405 = vset.pattern.permute.xlu0 0
      %2406 = vperm.xlu0 %2405, %v2358
      %v2407 = vpop.permute.xlu0 %2406
      %2410 = vset.pattern.permute.xlu0 0
      %2411 = vperm.xlu0 %2410, %v2373
      %v2412 = vpop.permute.xlu0 %2411
      %2415 = vset.pattern.permute.xlu0 0
      %2416 = vperm.xlu0 %2415, %v2388
      %v2417 = vpop.permute.xlu0 %2416
      %2420 = vset.pattern.permute.xlu0 0
      %2421 = vperm.xlu0 %2420, %v2403
      %v2422 = vpop.permute.xlu0 %2421
      %v2424 = vmul.f32 %v2407, %v2143
      %v2425 = vmul.f32 %v2407, %v2144
      %v2426 = vmul.f32 %v2412, %v2145
      %v2427 = vmul.f32 %v2412, %v2146
      %v2428 = vmul.f32 %v2417, %v2147
      %v2429 = vmul.f32 %v2417, %v2148
      %v2430 = vmul.f32 %v2422, %v2149
      %v2431 = vmul.f32 %v2422, %v2150
      %v2432 = vld [vmem:[%s11] sm:$0xff]
      %v2433 = vld [vmem:[%s11 + $0x8] sm:$0xff]
      %v2434 = vld [vmem:[%s12] sm:$0xff]
      %v2435 = vld [vmem:[%s12 + $0x8] sm:$0xff]
      %2437 = vset.pattern.permute.xlu0 0
      %2438 = vperm.xlu0 %2437, %v2434
      %v2439 = vpop.permute.xlu0 %2438
      %2442 = vset.pattern.permute.xlu0 0
      %2443 = vperm.xlu0 %2442, %v2435
      %v2444 = vpop.permute.xlu0 %2443
      %v2447 = vsel %vm1886, %v2432, 0
      %v2450 = vsel %vm1886, %v2433, 0
      %2452 = vmatpush.msra.mxu0 0.0
      %2453 = vmatpush.msra.mxu0 0.0
      %2454 = vmatpush.msra.mxu0 0.0
      %2455 = vmatpush.msra.mxu0 0.0
      %2456 = vmatpush.msra.mxu0 0.0
      %2457 = vmatpush.msra.mxu0 0.0
      %2458 = vmatpush.msra.mxu0 0.0
      %2459 = vmatpush.msra.mxu0 0.0
      %2460 = vmatpush.msra.mxu0 0.0
      %2461 = vmatpush.msra.mxu0 0.0
      %2462 = vmatpush.msra.mxu0 0.0
      %2463 = vmatpush.msra.mxu0 0.0
      %2464 = vmatpush.msra.mxu0 %v2430
      %2465 = vmatpush.msra.mxu0 %v2428
      %2466 = vmatpush.msra.mxu0 %v2426
      %2467 = vmatpush.msra.mxu0 %v2424
      %2468 = vmatmul.f32.gmra.mxu0 %v2447
      %v2469 = vpop.f32.mrf.mxu0
      %v2470 = vadd.f32 %v2439, %v2469
      %2471 = vmatmul.f32.gmra.mxu0 %v2450
      %v2472 = vpop.f32.mrf.mxu0
      %v2473 = vadd.f32 %v2444, %v2472
      %2474 = vdwg.mxu0
      %2475 = vmatpush.msra.mxu0 0.0
      %2476 = vmatpush.msra.mxu0 0.0
      %2477 = vmatpush.msra.mxu0 0.0
      %2478 = vmatpush.msra.mxu0 0.0
      %2479 = vmatpush.msra.mxu0 0.0
      %2480 = vmatpush.msra.mxu0 0.0
      %2481 = vmatpush.msra.mxu0 0.0
      %2482 = vmatpush.msra.mxu0 0.0
      %2483 = vmatpush.msra.mxu0 0.0
      %2484 = vmatpush.msra.mxu0 0.0
      %2485 = vmatpush.msra.mxu0 0.0
      %2486 = vmatpush.msra.mxu0 0.0
      %2487 = vmatpush.msra.mxu0 %v2431
      %2488 = vmatpush.msra.mxu0 %v2429
      %2489 = vmatpush.msra.mxu0 %v2427
      %2490 = vmatpush.msra.mxu0 %v2425
      %2491 = vmatmul.f32.gmra.mxu0 %v2447
      %v2492 = vpop.f32.mrf.mxu0
      %v2493 = vadd.f32 %v2439, %v2492
      %2494 = vmatmul.f32.gmra.mxu0 %v2450
      %v2495 = vpop.f32.mrf.mxu0
      %v2496 = vadd.f32 %v2444, %v2495
      %2497 = vdwg.mxu0
      %2498 = vst [vmem:[%s502] sm:$0xff] %v2470
      %2499 = vst [vmem:[%s502 + $0x8] sm:$0xff] %v2493
      %2500 = vst [vmem:[%s502 + $0x10] sm:$0xff] %v2473
      %2501 = vst [vmem:[%s502 + $0x18] sm:$0xff] %v2496
      %p2502 = scmp.lt.s32.totalorder %s27, 1
      %s2503 = scalar_select %p2502, %s27, 1
      %s2504 = smul.addr %s2503, 4
      %s2505 = smul.addr %s2504, 8
      %s2506 = scalar_lea.vmem %s14, %s2505
      %p2507 = scmp.lt.s32.totalorder %s27, 1
      %s2508 = scalar_select %p2507, %s27, 1
      %s2509 = smul.addr %s2508, 4
      %s2510 = smul.addr %s2509, 8
      %s2511 = scalar_lea.vmem %s15, %s2510
      // Predicated region
      $region77: #{atting_forward.1} parent=75 // pred_check
        %p2512 = pneg %p344
      $region78: #{atting_forward.1} parent=75 // pred_check_branch
        %2514 = sbr.rel (%p2512) target = $region80
      $region79: #{atting_forward.1} parent=75 // pred_region
        _
      $region80: #{atting_forward.1} parent=75 // pred_fallthru
        _
      // Predicated region
      $region81: #{atting_forward.1} parent=75 // pred_check
        %p2515 = pneg %p370
      $region82: #{atting_forward.1} parent=75 // pred_check_branch
        %2517 = sbr.rel (%p2515) target = $region84
      $region83: #{atting_forward.1} parent=75 // pred_region
        _
      $region84: #{atting_forward.1} parent=75 // pred_fallthru
        _
    $region76: #{atting_forward.1} parent=5 // pred_fallthru
      _
    %p2518 = scmp.le.s32.totalorder 2, %s22
    // Predicated region
    $region85: #{atting_forward.1} parent=5 // pred_check
      %p2519 = pneg %p2518
    $region86: #{atting_forward.1} parent=5 // pred_check_branch
      %2521 = sbr.rel (%p2519) target = $region88
    $region87: #{atting_forward.1} parent=5 // pred_region
      %s2522 = ssub.s32 %s22, 2
      // Predicated region
      $region89: #{atting_forward.1} parent=87 // pred_check
        %p2523 = pneg %p350
      $region90: #{atting_forward.1} parent=87 // pred_check_branch
        %2525 = sbr.rel (%p2523) target = $region92
      $region91: #{atting_forward.1} parent=87 // pred_region
        %p2526 = scmp.lt.s32.totalorder %s28, 1
        %s2527 = scalar_select %p2526, %s28, 1
        %s2528 = smul.addr %s2527, 4
        %s2529 = smul.addr %s2528, 8
        %s2530 = scalar_lea.vmem %s14, %s2529
      $region92: #{atting_forward.1} parent=87 // pred_fallthru
        _
      // Predicated region
      $region93: #{atting_forward.1} parent=87 // pred_check
        %p2531 = pneg %p376
      $region94: #{atting_forward.1} parent=87 // pred_check_branch
        %2533 = sbr.rel (%p2531) target = $region96
      $region95: #{atting_forward.1} parent=87 // pred_region
        %p2534 = scmp.lt.s32.totalorder %s28, 1
        %s2535 = scalar_select %p2534, %s28, 1
        %s2536 = smul.addr %s2535, 4
        %s2537 = smul.addr %s2536, 8
        %s2538 = scalar_lea.vmem %s15, %s2537
      $region96: #{atting_forward.1} parent=87 // pred_fallthru
        _
    $region88: #{atting_forward.1} parent=5 // pred_fallthru
      _
  $region6: #{atting_forward.1} parent=0 // loop_footer
    %s26 = sadd.s32 1, %s22
  $region7: #{atting_forward.1} parent=0 // loop_footer_branch
    %21 = sbr.rel target = $region3
  $region8: #{atting_forward.1} parent=0 // loop_exit
    _

</llo_original>
